<compile_context>
chip_gen: v6e
topology: v6e:2x2x1
jax: 0.10.0
libtpu: 0.0.40
codegen_flags: <defaults>
</compile_context>

<pallas_src>
import functools

import jax
import jax.numpy as jnp
from jax.experimental import pallas as pl
from jax.experimental.pallas import tpu as pltpu


def _sigmoid_via_tanh(x):
    # 1 EUP op + 2 VPU ops instead of exp + reciprocal.
    return 0.5 * jnp.tanh(0.5 * x) + 0.5


def _lstm_classifier_kernel(x_ref,            # (T*Bp, D)    bf16, time-major
                            wih0_ref,         # (D, 4*HP)    bf16   gates (i,f,o,g)
                            whh0_ref,         # (HP, 4*HP)   bf16
                            b0_ref,           # (1, 4*HP)    f32
                            wih1_ref,         # (HP, 4*HP)   bf16
                            whh1_ref,         # (HP, 4*HP)   bf16
                            b1_ref,           # (1, 4*HP)    f32
                            wfc1_ref, bfc1_ref,
                            wfc2_ref, bfc2_ref,
                            wfc3_ref, bfc3_ref,   # fc3 cols padded to 128 lanes
                            out_ref,          # (Bp, 128)    f32
                            z0_scr,           # VMEM (T*Bp, 4*HP) f32
                            *, seq_len, batch_p, hp):
    T, Bp, HP = seq_len, batch_p, hp

    # ---- Hoisted layer-0 input projection: one MXU matmul over all timesteps,
    # bias folded in, single full (aligned) store to scratch.
    z0_scr[...] = (jnp.dot(x_ref[...], wih0_ref[...],
                           preferred_element_type=jnp.float32)
                   + b0_ref[...])                                  # (T*Bp, 4*HP) f32

    whh0 = whh0_ref[...]
    wih1 = wih1_ref[...]
    whh1 = whh1_ref[...]
    # Hoisted bias broadcast (layer 1); layer-0 bias is already inside z0.
    b1b = jnp.broadcast_to(b1_ref[...], (Bp, 4 * HP))

    def gate_update(z, c):
        # Gate order is (i, f, o, g): one EUP pass covers the contiguous i/f/o block.
        ifo = _sigmoid_via_tanh(z[:, 0:3 * HP])
        g = jnp.tanh(z[:, 3 * HP:4 * HP])
        i = ifo[:, 0 * HP:1 * HP]
        f = ifo[:, 1 * HP:2 * HP]
        o = ifo[:, 2 * HP:3 * HP]
        c_new = f * c + i * g
        h_new = o * jnp.tanh(c_new)
        return h_new, c_new

    zeros = jnp.zeros((Bp, HP), jnp.float32)
    h0, c0, h1, c1 = zeros, zeros, zeros, zeros

    # ---- Fully unrolled recurrence (T static, small).
    for t in range(T):
        z0_t = z0_scr[t * Bp:(t + 1) * Bp, :]          # aligned (8, 4*HP) load
        # Two independent recurrent matmuls issued up front -> MXU pushes overlap.
        z0 = z0_t + jnp.dot(h0.astype(jnp.bfloat16), whh0,
                            preferred_element_type=jnp.float32)
        r1 = jnp.dot(h1.astype(jnp.bfloat16), whh1,
                     preferred_element_type=jnp.float32)
        h0, c0 = gate_update(z0, c0)
        z1 = r1 + jnp.dot(h0.astype(jnp.bfloat16), wih1,
                          preferred_element_type=jnp.float32) + b1b
        h1, c1 = gate_update(z1, c1)

    # ---- DenseBlock (one-time, f32): relu(fc1) -> relu(fc2) -> fc3 -> sigmoid.
    y = jnp.maximum(jnp.dot(h1, wfc1_ref[...],
                            preferred_element_type=jnp.float32) + bfc1_ref[...], 0.0)
    y = jnp.maximum(jnp.dot(y, wfc2_ref[...],
                            preferred_element_type=jnp.float32) + bfc2_ref[...], 0.0)
    y = jnp.dot(y, wfc3_ref[...], preferred_element_type=jnp.float32) + bfc3_ref[...]
    # Lane-dense (Bp, 128) store; padded rows/cols are sliced off in the wrapper.
    out_ref[...] = jax.nn.sigmoid(y).astype(out_ref.dtype)


# ----------------------------- wrapper / param prep -----------------------------

def _round_up(n, m):
    return ((n + m - 1) // m) * m


# PyTorch LSTM gate order is (i, f, g, o); kernel uses (i, f, o, g) so one sigmoid
# covers a contiguous 3*HP block.
_GATE_SRC = (0, 1, 3, 2)


def _pad_gate_cols(w_t, H, HP):
    """(K, 4H), torch gate order -> (K, 4*HP), kernel gate order (i,f,o,g);
    each gate's H cols at the start of its HP lane block, zeros elsewhere (exact)."""
    K = w_t.shape[0]
    out = jnp.zeros((K, 4 * HP), w_t.dtype)
    for dst in range(4):
        src = _GATE_SRC[dst]
        out = out.at[:, dst * HP:dst * HP + H].set(w_t[:, src * H:(src + 1) * H])
    return out


def _pad_rows(w, rows):
    out = jnp.zeros((rows, w.shape[1]), w.dtype)
    return out.at[:w.shape[0], :].set(w)


def _pad_cols(w, cols):
    out = jnp.zeros((w.shape[0], cols), w.dtype)
    return out.at[:, :w.shape[1]].set(w)


def prepare_kernel_inputs(x, p, hidden_dim, output_dim):
    """Transpose / pad / reorder / cast PyTorch-layout f32 params for the kernel."""
    H = hidden_dim
    HP = _round_up(H, 128)
    B, T, D = x.shape
    Bp = _round_up(B, 8)          # sublane padding: unmasked full-tile accesses

    # time-major, batch-padded, flattened: row index = t * Bp + b
    xp = jnp.zeros((T, Bp, D), jnp.float32).at[:, :B, :].set(x.transpose(1, 0, 2))
    x2d = xp.reshape(T * Bp, D).astype(jnp.bfloat16)

    wih0 = _pad_gate_cols(p["wih0"].T, H, HP).astype(jnp.bfloat16)                 # (D, 4HP)
    whh0 = _pad_rows(_pad_gate_cols(p["whh0"].T, H, HP), HP).astype(jnp.bfloat16)  # (HP, 4HP)
    b0 = _pad_gate_cols((p["bih0"] + p["bhh0"]).reshape(1, -1), H, HP)             # (1, 4HP)

    wih1 = _pad_rows(_pad_gate_cols(p["wih1"].T, H, HP), HP).astype(jnp.bfloat16)  # (HP, 4HP)
    whh1 = _pad_rows(_pad_gate_cols(p["whh1"].T, H, HP), HP).astype(jnp.bfloat16)  # (HP, 4HP)
    b1 = _pad_gate_cols((p["bih1"] + p["bhh1"]).reshape(1, -1), H, HP)             # (1, 4HP)

    w_fc1 = _pad_rows(p["w_fc1"].T, HP)                                            # (HP, H/2)
    b_fc1 = p["b_fc1"].reshape(1, -1)
    w_fc2 = p["w_fc2"].T
    b_fc2 = p["b_fc2"].reshape(1, -1)
    OP = _round_up(output_dim, 128)
    w_fc3 = _pad_cols(p["w_fc3"].T, OP)                                            # (H/4, 128)
    b_fc3 = _pad_cols(p["b_fc3"].reshape(1, -1), OP)                               # (1, 128)

    inputs = [x2d, wih0, whh0, b0, wih1, whh1, b1,
              w_fc1, b_fc1, w_fc2, b_fc2, w_fc3, b_fc3]
    return inputs, HP, Bp, OP


def lstm_classifier_pallas(x, params, *, hidden_dim, output_dim):
    """x: (B, T, D) float32.  params: PyTorch-layout f32 dict (see init_torch_params)."""
    B, T, _ = x.shape
    inputs, HP, Bp, OP = prepare_kernel_inputs(x, params, hidden_dim, output_dim)
    kernel = functools.partial(_lstm_classifier_kernel,
                               seq_len=T, batch_p=Bp, hp=HP)
    out_full = pl.pallas_call(
        kernel,
        out_shape=jax.ShapeDtypeStruct((Bp, OP), jnp.float32),
        in_specs=[pl.BlockSpec(memory_space=pltpu.MemorySpace.VMEM)] * len(inputs),
        out_specs=pl.BlockSpec(memory_space=pltpu.MemorySpace.VMEM),
        scratch_shapes=[pltpu.VMEM((T * Bp, 4 * HP), jnp.float32)],
    )(*inputs)
    # Padded batch rows carry junk (sigmoid(bias)-driven state); drop them here.
    return out_full[:B, :output_dim]


# ----------------------------- init + reference ---------------------------------

def init_torch_params(key, input_dim, hidden_dim, output_dim):
    """Deterministic init mirroring PyTorch layer shapes (f32, PyTorch layout)."""
    H = hidden_dim
    H2, H4 = H // 2, H // 4
    ks = jax.random.split(key, 14)
    kl = 1.0 / jnp.sqrt(H)

    def u(k, shape, bound):
        return jax.random.uniform(k, shape, jnp.float32, -bound, bound)

    return {
        "wih0": u(ks[0], (4 * H, input_dim), kl),
        "whh0": u(ks[1], (4 * H, H), kl),
        "bih0": u(ks[2], (4 * H,), kl),
        "bhh0": u(ks[3], (4 * H,), kl),
        "wih1": u(ks[4], (4 * H, H), kl),
        "whh1": u(ks[5], (4 * H, H), kl),
        "bih1": u(ks[6], (4 * H,), kl),
        "bhh1": u(ks[7], (4 * H,), kl),
        "w_fc1": u(ks[8], (H2, H), 1.0 / jnp.sqrt(H)),
        "b_fc1": u(ks[9], (H2,), 1.0 / jnp.sqrt(H)),
        "w_fc2": u(ks[10], (H4, H2), 1.0 / jnp.sqrt(H2)),
        "b_fc2": u(ks[11], (H4,), 1.0 / jnp.sqrt(H2)),
        "w_fc3": u(ks[12], (output_dim, H4), 1.0 / jnp.sqrt(H4)),
        "b_fc3": u(ks[13], (output_dim,), 1.0 / jnp.sqrt(H4)),
    }


def reference_forward(x, p, hidden_dim):
    """Plain-JAX reference mirroring the kernel's bf16 operand precision."""
    H = hidden_dim
    B, T, _ = x.shape

    def bf(a):  # emulate bf16 operands with f32 accumulation
        return a.astype(jnp.bfloat16).astype(jnp.float32)

    xb = bf(x)
    wih0, whh0 = bf(p["wih0"].T), bf(p["whh0"].T)
    wih1, whh1 = bf(p["wih1"].T), bf(p["whh1"].T)
    b0 = (p["bih0"] + p["bhh0"])[None, :]
    b1 = (p["bih1"] + p["bhh1"])[None, :]

    def gate(z, c):  # torch gate order i, f, g, o
        i = jax.nn.sigmoid(z[:, 0 * H:1 * H])
        f = jax.nn.sigmoid(z[:, 1 * H:2 * H])
        g = jnp.tanh(z[:, 2 * H:3 * H])
        o = jax.nn.sigmoid(z[:, 3 * H:4 * H])
        c = f * c + i * g
        return o * jnp.tanh(c), c

    h0 = jnp.zeros((B, H)); c0 = jnp.zeros((B, H))
    h1 = jnp.zeros((B, H)); c1 = jnp.zeros((B, H))
    for t in range(T):
        z0 = xb[:, t, :] @ wih0 + bf(h0) @ whh0 + b0
        h0, c0 = gate(z0, c0)
        z1 = bf(h0) @ wih1 + bf(h1) @ whh1 + b1
        h1, c1 = gate(z1, c1)

    y = jnp.maximum(h1 @ p["w_fc1"].T + p["b_fc1"], 0.0)
    y = jnp.maximum(y @ p["w_fc2"].T + p["b_fc2"], 0.0)
    y = y @ p["w_fc3"].T + p["b_fc3"]
    return jax.nn.sigmoid(y)


if __name__ == "__main__":
    INPUT_DIM, HIDDEN_DIM, NUM_LAYERS, OUTPUT_DIM = 16, 32, 2, 4
    B, T = 2, 8

    key = jax.random.PRNGKey(0)
    k_x, k_p = jax.random.split(key)
    x = jax.random.normal(k_x, (B, T, INPUT_DIM), jnp.float32)
    params = init_torch_params(k_p, INPUT_DIM, HIDDEN_DIM, OUTPUT_DIM)

    out = lstm_classifier_pallas(x, params,
                                 hidden_dim=HIDDEN_DIM, output_dim=OUTPUT_DIM)
    out = jax.block_until_ready(out)

    ref = reference_forward(x, params, HIDDEN_DIM)
    assert out.shape == (B, OUTPUT_DIM)
    # Slightly widened tolerance: bf16 MXU accumulation order differs from the
    # f32 reference matmuls.
    assert jnp.allclose(out, ref, atol=5e-4, rtol=5e-3), (out, ref)

    print("KERNEL_OK")
</pallas_src>

<mosaic_0001>
module attributes {stable_mosaic.version = 11 : i64} {
  func.func @_lstm_classifier_kernel(%arg0: memref<64x16xbf16, #tpu.memory_space<vmem>>, %arg1: memref<16x512xbf16, #tpu.memory_space<vmem>>, %arg2: memref<128x512xbf16, #tpu.memory_space<vmem>>, %arg3: memref<1x512xf32, #tpu.memory_space<vmem>>, %arg4: memref<128x512xbf16, #tpu.memory_space<vmem>>, %arg5: memref<128x512xbf16, #tpu.memory_space<vmem>>, %arg6: memref<1x512xf32, #tpu.memory_space<vmem>>, %arg7: memref<128x16xf32, #tpu.memory_space<vmem>>, %arg8: memref<1x16xf32, #tpu.memory_space<vmem>>, %arg9: memref<16x8xf32, #tpu.memory_space<vmem>>, %arg10: memref<1x8xf32, #tpu.memory_space<vmem>>, %arg11: memref<8x128xf32, #tpu.memory_space<vmem>>, %arg12: memref<1x128xf32, #tpu.memory_space<vmem>>, %arg13: memref<8x128xf32, #tpu.memory_space<vmem>>, %arg14: memref<64x512xf32, #tpu.memory_space<vmem>>) attributes {dimension_semantics = [], scalar_prefetch = 0 : i64, scratch_operands = 1 : i64, tpu.core_type = #tpu.core_type<tc>} {
    %c0 = arith.constant 0 : index
    %c0_0 = arith.constant 0 : index
    %0 = vector.load %arg0[%c0, %c0_0] : memref<64x16xbf16, #tpu.memory_space<vmem>>, vector<64x16xbf16>
    %c0_1 = arith.constant 0 : index
    %c0_2 = arith.constant 0 : index
    %1 = vector.load %arg1[%c0_1, %c0_2] : memref<16x512xbf16, #tpu.memory_space<vmem>>, vector<16x512xbf16>
    %cst = arith.constant dense<0.000000e+00> : vector<64x512xf32>
    %2 = tpu.matmul %0, %1, %cst {dimension_numbers = #tpu.dot_dimension_numbers<[1], [0], [0], [1], [0, 0, 1, 1], [], []>} : vector<64x16xbf16>, vector<16x512xbf16>, vector<64x512xf32> -> vector<64x512xf32>
    %c0_3 = arith.constant 0 : index
    %c0_4 = arith.constant 0 : index
    %3 = vector.load %arg3[%c0_3, %c0_4] : memref<1x512xf32, #tpu.memory_space<vmem>>, vector<1x512xf32>
    %4 = vector.broadcast %3 : vector<1x512xf32> to vector<64x512xf32>
    %5 = arith.addf %2, %4 : vector<64x512xf32>
    %c0_5 = arith.constant 0 : index
    %c0_6 = arith.constant 0 : index
    %6 = vector.load %arg14[%c0_5, %c0_6] : memref<64x512xf32, #tpu.memory_space<vmem>>, vector<64x512xf32>
    tpu.vector_store %arg14[%c0_5, %c0_6], %5 {strides = array<i32>} : memref<64x512xf32, #tpu.memory_space<vmem>>, vector<64x512xf32>,
    %c0_7 = arith.constant 0 : index
    %c0_8 = arith.constant 0 : index
    %7 = vector.load %arg2[%c0_7, %c0_8] : memref<128x512xbf16, #tpu.memory_space<vmem>>, vector<128x512xbf16>
    %c0_9 = arith.constant 0 : index
    %c0_10 = arith.constant 0 : index
    %8 = vector.load %arg4[%c0_9, %c0_10] : memref<128x512xbf16, #tpu.memory_space<vmem>>, vector<128x512xbf16>
    %c0_11 = arith.constant 0 : index
    %c0_12 = arith.constant 0 : index
    %9 = vector.load %arg5[%c0_11, %c0_12] : memref<128x512xbf16, #tpu.memory_space<vmem>>, vector<128x512xbf16>
    %c0_13 = arith.constant 0 : index
    %c0_14 = arith.constant 0 : index
    %10 = vector.load %arg6[%c0_13, %c0_14] : memref<1x512xf32, #tpu.memory_space<vmem>>, vector<1x512xf32>
    %11 = vector.shape_cast %10 : vector<1x512xf32> to vector<1x512xf32>
    %12 = vector.broadcast %11 : vector<1x512xf32> to vector<8x512xf32>
    %cst_15 = arith.constant 0.000000e+00 : f32
    %13 = vector.broadcast %cst_15 : f32 to vector<8x128xf32>
    %c0_16 = arith.constant 0 : index
    %c0_17 = arith.constant 0 : index
    %14 = vector.load %arg14[%c0_16, %c0_17] : memref<64x512xf32, #tpu.memory_space<vmem>>, vector<8x512xf32>
    %15 = arith.truncf %13 : vector<8x128xf32> to vector<8x128xbf16>
    %cst_18 = arith.constant dense<0.000000e+00> : vector<8x512xf32>
    %16 = tpu.matmul %15, %7, %cst_18 {dimension_numbers = #tpu.dot_dimension_numbers<[1], [0], [0], [1], [0, 0, 1, 1], [], []>} : vector<8x128xbf16>, vector<128x512xbf16>, vector<8x512xf32> -> vector<8x512xf32>
    %17 = arith.addf %14, %16 : vector<8x512xf32>
    %18 = arith.truncf %13 : vector<8x128xf32> to vector<8x128xbf16>
    %cst_19 = arith.constant dense<0.000000e+00> : vector<8x512xf32>
    %19 = tpu.matmul %18, %9, %cst_19 {dimension_numbers = #tpu.dot_dimension_numbers<[1], [0], [0], [1], [0, 0, 1, 1], [], []>} : vector<8x128xbf16>, vector<128x512xbf16>, vector<8x512xf32> -> vector<8x512xf32>
    %20 = vector.extract_strided_slice %17 {offsets = [0, 0], sizes = [8, 384], strides = [1, 1]} : vector<8x512xf32> to vector<8x384xf32>
    %cst_20 = arith.constant 5.000000e-01 : f32
    %21 = vector.broadcast %cst_20 : f32 to vector<8x384xf32>
    %22 = arith.mulf %21, %20 : vector<8x384xf32>
    %23 = math.tanh %22 : vector<8x384xf32>
    %cst_21 = arith.constant 5.000000e-01 : f32
    %24 = vector.broadcast %cst_21 : f32 to vector<8x384xf32>
    %25 = arith.mulf %24, %23 : vector<8x384xf32>
    %cst_22 = arith.constant 5.000000e-01 : f32
    %26 = vector.broadcast %cst_22 : f32 to vector<8x384xf32>
    %27 = arith.addf %25, %26 : vector<8x384xf32>
    %28 = vector.extract_strided_slice %17 {offsets = [0, 384], sizes = [8, 128], strides = [1, 1]} : vector<8x512xf32> to vector<8x128xf32>
    %29 = math.tanh %28 : vector<8x128xf32>
    %30 = vector.extract_strided_slice %27 {offsets = [0, 0], sizes = [8, 128], strides = [1, 1]} : vector<8x384xf32> to vector<8x128xf32>
    %31 = vector.extract_strided_slice %27 {offsets = [0, 128], sizes = [8, 128], strides = [1, 1]} : vector<8x384xf32> to vector<8x128xf32>
    %32 = vector.extract_strided_slice %27 {offsets = [0, 256], sizes = [8, 128], strides = [1, 1]} : vector<8x384xf32> to vector<8x128xf32>
    %33 = arith.mulf %31, %13 : vector<8x128xf32>
    %34 = arith.mulf %30, %29 : vector<8x128xf32>
    %35 = arith.addf %33, %34 : vector<8x128xf32>
    %36 = math.tanh %35 : vector<8x128xf32>
    %37 = arith.mulf %32, %36 : vector<8x128xf32>
    %38 = arith.truncf %37 : vector<8x128xf32> to vector<8x128xbf16>
    %cst_23 = arith.constant dense<0.000000e+00> : vector<8x512xf32>
    %39 = tpu.matmul %38, %8, %cst_23 {dimension_numbers = #tpu.dot_dimension_numbers<[1], [0], [0], [1], [0, 0, 1, 1], [], []>} : vector<8x128xbf16>, vector<128x512xbf16>, vector<8x512xf32> -> vector<8x512xf32>
    %40 = arith.addf %19, %39 : vector<8x512xf32>
    %41 = arith.addf %40, %12 : vector<8x512xf32>
    %42 = vector.extract_strided_slice %41 {offsets = [0, 0], sizes = [8, 384], strides = [1, 1]} : vector<8x512xf32> to vector<8x384xf32>
    %cst_24 = arith.constant 5.000000e-01 : f32
    %43 = vector.broadcast %cst_24 : f32 to vector<8x384xf32>
    %44 = arith.mulf %43, %42 : vector<8x384xf32>
    %45 = math.tanh %44 : vector<8x384xf32>
    %cst_25 = arith.constant 5.000000e-01 : f32
    %46 = vector.broadcast %cst_25 : f32 to vector<8x384xf32>
    %47 = arith.mulf %46, %45 : vector<8x384xf32>
    %cst_26 = arith.constant 5.000000e-01 : f32
    %48 = vector.broadcast %cst_26 : f32 to vector<8x384xf32>
    %49 = arith.addf %47, %48 : vector<8x384xf32>
    %50 = vector.extract_strided_slice %41 {offsets = [0, 384], sizes = [8, 128], strides = [1, 1]} : vector<8x512xf32> to vector<8x128xf32>
    %51 = math.tanh %50 : vector<8x128xf32>
    %52 = vector.extract_strided_slice %49 {offsets = [0, 0], sizes = [8, 128], strides = [1, 1]} : vector<8x384xf32> to vector<8x128xf32>
    %53 = vector.extract_strided_slice %49 {offsets = [0, 128], sizes = [8, 128], strides = [1, 1]} : vector<8x384xf32> to vector<8x128xf32>
    %54 = vector.extract_strided_slice %49 {offsets = [0, 256], sizes = [8, 128], strides = [1, 1]} : vector<8x384xf32> to vector<8x128xf32>
    %55 = arith.mulf %53, %13 : vector<8x128xf32>
    %56 = arith.mulf %52, %51 : vector<8x128xf32>
    %57 = arith.addf %55, %56 : vector<8x128xf32>
    %58 = math.tanh %57 : vector<8x128xf32>
    %59 = arith.mulf %54, %58 : vector<8x128xf32>
    %c8 = arith.constant 8 : index
    %c0_27 = arith.constant 0 : index
    %60 = vector.load %arg14[%c8, %c0_27] : memref<64x512xf32, #tpu.memory_space<vmem>>, vector<8x512xf32>
    %61 = arith.truncf %37 : vector<8x128xf32> to vector<8x128xbf16>
    %cst_28 = arith.constant dense<0.000000e+00> : vector<8x512xf32>
    %62 = tpu.matmul %61, %7, %cst_28 {dimension_numbers = #tpu.dot_dimension_numbers<[1], [0], [0], [1], [0, 0, 1, 1], [], []>} : vector<8x128xbf16>, vector<128x512xbf16>, vector<8x512xf32> -> vector<8x512xf32>
    %63 = arith.addf %60, %62 : vector<8x512xf32>
    %64 = arith.truncf %59 : vector<8x128xf32> to vector<8x128xbf16>
    %cst_29 = arith.constant dense<0.000000e+00> : vector<8x512xf32>
    %65 = tpu.matmul %64, %9, %cst_29 {dimension_numbers = #tpu.dot_dimension_numbers<[1], [0], [0], [1], [0, 0, 1, 1], [], []>} : vector<8x128xbf16>, vector<128x512xbf16>, vector<8x512xf32> -> vector<8x512xf32>
    %66 = vector.extract_strided_slice %63 {offsets = [0, 0], sizes = [8, 384], strides = [1, 1]} : vector<8x512xf32> to vector<8x384xf32>
    %cst_30 = arith.constant 5.000000e-01 : f32
    %67 = vector.broadcast %cst_30 : f32 to vector<8x384xf32>
    %68 = arith.mulf %67, %66 : vector<8x384xf32>
    %69 = math.tanh %68 : vector<8x384xf32>
    %cst_31 = arith.constant 5.000000e-01 : f32
    %70 = vector.broadcast %cst_31 : f32 to vector<8x384xf32>
    %71 = arith.mulf %70, %69 : vector<8x384xf32>
    %cst_32 = arith.constant 5.000000e-01 : f32
    %72 = vector.broadcast %cst_32 : f32 to vector<8x384xf32>
    %73 = arith.addf %71, %72 : vector<8x384xf32>
    %74 = vector.extract_strided_slice %63 {offsets = [0, 384], sizes = [8, 128], strides = [1, 1]} : vector<8x512xf32> to vector<8x128xf32>
    %75 = math.tanh %74 : vector<8x128xf32>
    %76 = vector.extract_strided_slice %73 {offsets = [0, 0], sizes = [8, 128], strides = [1, 1]} : vector<8x384xf32> to vector<8x128xf32>
    %77 = vector.extract_strided_slice %73 {offsets = [0, 128], sizes = [8, 128], strides = [1, 1]} : vector<8x384xf32> to vector<8x128xf32>
    %78 = vector.extract_strided_slice %73 {offsets = [0, 256], sizes = [8, 128], strides = [1, 1]} : vector<8x384xf32> to vector<8x128xf32>
    %79 = arith.mulf %77, %35 : vector<8x128xf32>
    %80 = arith.mulf %76, %75 : vector<8x128xf32>
    %81 = arith.addf %79, %80 : vector<8x128xf32>
    %82 = math.tanh %81 : vector<8x128xf32>
    %83 = arith.mulf %78, %82 : vector<8x128xf32>
    %84 = arith.truncf %83 : vector<8x128xf32> to vector<8x128xbf16>
    %cst_33 = arith.constant dense<0.000000e+00> : vector<8x512xf32>
    %85 = tpu.matmul %84, %8, %cst_33 {dimension_numbers = #tpu.dot_dimension_numbers<[1], [0], [0], [1], [0, 0, 1, 1], [], []>} : vector<8x128xbf16>, vector<128x512xbf16>, vector<8x512xf32> -> vector<8x512xf32>
    %86 = arith.addf %65, %85 : vector<8x512xf32>
    %87 = arith.addf %86, %12 : vector<8x512xf32>
    %88 = vector.extract_strided_slice %87 {offsets = [0, 0], sizes = [8, 384], strides = [1, 1]} : vector<8x512xf32> to vector<8x384xf32>
    %cst_34 = arith.constant 5.000000e-01 : f32
    %89 = vector.broadcast %cst_34 : f32 to vector<8x384xf32>
    %90 = arith.mulf %89, %88 : vector<8x384xf32>
    %91 = math.tanh %90 : vector<8x384xf32>
    %cst_35 = arith.constant 5.000000e-01 : f32
    %92 = vector.broadcast %cst_35 : f32 to vector<8x384xf32>
    %93 = arith.mulf %92, %91 : vector<8x384xf32>
    %cst_36 = arith.constant 5.000000e-01 : f32
    %94 = vector.broadcast %cst_36 : f32 to vector<8x384xf32>
    %95 = arith.addf %93, %94 : vector<8x384xf32>
    %96 = vector.extract_strided_slice %87 {offsets = [0, 384], sizes = [8, 128], strides = [1, 1]} : vector<8x512xf32> to vector<8x128xf32>
    %97 = math.tanh %96 : vector<8x128xf32>
    %98 = vector.extract_strided_slice %95 {offsets = [0, 0], sizes = [8, 128], strides = [1, 1]} : vector<8x384xf32> to vector<8x128xf32>
    %99 = vector.extract_strided_slice %95 {offsets = [0, 128], sizes = [8, 128], strides = [1, 1]} : vector<8x384xf32> to vector<8x128xf32>
    %100 = vector.extract_strided_slice %95 {offsets = [0, 256], sizes = [8, 128], strides = [1, 1]} : vector<8x384xf32> to vector<8x128xf32>
    %101 = arith.mulf %99, %57 : vector<8x128xf32>
    %102 = arith.mulf %98, %97 : vector<8x128xf32>
    %103 = arith.addf %101, %102 : vector<8x128xf32>
    %104 = math.tanh %103 : vector<8x128xf32>
    %105 = arith.mulf %100, %104 : vector<8x128xf32>
    %c16 = arith.constant 16 : index
    %c0_37 = arith.constant 0 : index
    %106 = vector.load %arg14[%c16, %c0_37] : memref<64x512xf32, #tpu.memory_space<vmem>>, vector<8x512xf32>
    %107 = arith.truncf %83 : vector<8x128xf32> to vector<8x128xbf16>
    %cst_38 = arith.constant dense<0.000000e+00> : vector<8x512xf32>
    %108 = tpu.matmul %107, %7, %cst_38 {dimension_numbers = #tpu.dot_dimension_numbers<[1], [0], [0], [1], [0, 0, 1, 1], [], []>} : vector<8x128xbf16>, vector<128x512xbf16>, vector<8x512xf32> -> vector<8x512xf32>
    %109 = arith.addf %106, %108 : vector<8x512xf32>
    %110 = arith.truncf %105 : vector<8x128xf32> to vector<8x128xbf16>
    %cst_39 = arith.constant dense<0.000000e+00> : vector<8x512xf32>
    %111 = tpu.matmul %110, %9, %cst_39 {dimension_numbers = #tpu.dot_dimension_numbers<[1], [0], [0], [1], [0, 0, 1, 1], [], []>} : vector<8x128xbf16>, vector<128x512xbf16>, vector<8x512xf32> -> vector<8x512xf32>
    %112 = vector.extract_strided_slice %109 {offsets = [0, 0], sizes = [8, 384], strides = [1, 1]} : vector<8x512xf32> to vector<8x384xf32>
    %cst_40 = arith.constant 5.000000e-01 : f32
    %113 = vector.broadcast %cst_40 : f32 to vector<8x384xf32>
    %114 = arith.mulf %113, %112 : vector<8x384xf32>
    %115 = math.tanh %114 : vector<8x384xf32>
    %cst_41 = arith.constant 5.000000e-01 : f32
    %116 = vector.broadcast %cst_41 : f32 to vector<8x384xf32>
    %117 = arith.mulf %116, %115 : vector<8x384xf32>
    %cst_42 = arith.constant 5.000000e-01 : f32
    %118 = vector.broadcast %cst_42 : f32 to vector<8x384xf32>
    %119 = arith.addf %117, %118 : vector<8x384xf32>
    %120 = vector.extract_strided_slice %109 {offsets = [0, 384], sizes = [8, 128], strides = [1, 1]} : vector<8x512xf32> to vector<8x128xf32>
    %121 = math.tanh %120 : vector<8x128xf32>
    %122 = vector.extract_strided_slice %119 {offsets = [0, 0], sizes = [8, 128], strides = [1, 1]} : vector<8x384xf32> to vector<8x128xf32>
    %123 = vector.extract_strided_slice %119 {offsets = [0, 128], sizes = [8, 128], strides = [1, 1]} : vector<8x384xf32> to vector<8x128xf32>
    %124 = vector.extract_strided_slice %119 {offsets = [0, 256], sizes = [8, 128], strides = [1, 1]} : vector<8x384xf32> to vector<8x128xf32>
    %125 = arith.mulf %123, %81 : vector<8x128xf32>
    %126 = arith.mulf %122, %121 : vector<8x128xf32>
    %127 = arith.addf %125, %126 : vector<8x128xf32>
    %128 = math.tanh %127 : vector<8x128xf32>
    %129 = arith.mulf %124, %128 : vector<8x128xf32>
    %130 = arith.truncf %129 : vector<8x128xf32> to vector<8x128xbf16>
    %cst_43 = arith.constant dense<0.000000e+00> : vector<8x512xf32>
    %131 = tpu.matmul %130, %8, %cst_43 {dimension_numbers = #tpu.dot_dimension_numbers<[1], [0], [0], [1], [0, 0, 1, 1], [], []>} : vector<8x128xbf16>, vector<128x512xbf16>, vector<8x512xf32> -> vector<8x512xf32>
    %132 = arith.addf %111, %131 : vector<8x512xf32>
    %133 = arith.addf %132, %12 : vector<8x512xf32>
    %134 = vector.extract_strided_slice %133 {offsets = [0, 0], sizes = [8, 384], strides = [1, 1]} : vector<8x512xf32> to vector<8x384xf32>
    %cst_44 = arith.constant 5.000000e-01 : f32
    %135 = vector.broadcast %cst_44 : f32 to vector<8x384xf32>
    %136 = arith.mulf %135, %134 : vector<8x384xf32>
    %137 = math.tanh %136 : vector<8x384xf32>
    %cst_45 = arith.constant 5.000000e-01 : f32
    %138 = vector.broadcast %cst_45 : f32 to vector<8x384xf32>
    %139 = arith.mulf %138, %137 : vector<8x384xf32>
    %cst_46 = arith.constant 5.000000e-01 : f32
    %140 = vector.broadcast %cst_46 : f32 to vector<8x384xf32>
    %141 = arith.addf %139, %140 : vector<8x384xf32>
    %142 = vector.extract_strided_slice %133 {offsets = [0, 384], sizes = [8, 128], strides = [1, 1]} : vector<8x512xf32> to vector<8x128xf32>
    %143 = math.tanh %142 : vector<8x128xf32>
    %144 = vector.extract_strided_slice %141 {offsets = [0, 0], sizes = [8, 128], strides = [1, 1]} : vector<8x384xf32> to vector<8x128xf32>
    %145 = vector.extract_strided_slice %141 {offsets = [0, 128], sizes = [8, 128], strides = [1, 1]} : vector<8x384xf32> to vector<8x128xf32>
    %146 = vector.extract_strided_slice %141 {offsets = [0, 256], sizes = [8, 128], strides = [1, 1]} : vector<8x384xf32> to vector<8x128xf32>
    %147 = arith.mulf %145, %103 : vector<8x128xf32>
    %148 = arith.mulf %144, %143 : vector<8x128xf32>
    %149 = arith.addf %147, %148 : vector<8x128xf32>
    %150 = math.tanh %149 : vector<8x128xf32>
    %151 = arith.mulf %146, %150 : vector<8x128xf32>
    %c24 = arith.constant 24 : index
    %c0_47 = arith.constant 0 : index
    %152 = vector.load %arg14[%c24, %c0_47] : memref<64x512xf32, #tpu.memory_space<vmem>>, vector<8x512xf32>
    %153 = arith.truncf %129 : vector<8x128xf32> to vector<8x128xbf16>
    %cst_48 = arith.constant dense<0.000000e+00> : vector<8x512xf32>
    %154 = tpu.matmul %153, %7, %cst_48 {dimension_numbers = #tpu.dot_dimension_numbers<[1], [0], [0], [1], [0, 0, 1, 1], [], []>} : vector<8x128xbf16>, vector<128x512xbf16>, vector<8x512xf32> -> vector<8x512xf32>
    %155 = arith.addf %152, %154 : vector<8x512xf32>
    %156 = arith.truncf %151 : vector<8x128xf32> to vector<8x128xbf16>
    %cst_49 = arith.constant dense<0.000000e+00> : vector<8x512xf32>
    %157 = tpu.matmul %156, %9, %cst_49 {dimension_numbers = #tpu.dot_dimension_numbers<[1], [0], [0], [1], [0, 0, 1, 1], [], []>} : vector<8x128xbf16>, vector<128x512xbf16>, vector<8x512xf32> -> vector<8x512xf32>
    %158 = vector.extract_strided_slice %155 {offsets = [0, 0], sizes = [8, 384], strides = [1, 1]} : vector<8x512xf32> to vector<8x384xf32>
    %cst_50 = arith.constant 5.000000e-01 : f32
    %159 = vector.broadcast %cst_50 : f32 to vector<8x384xf32>
    %160 = arith.mulf %159, %158 : vector<8x384xf32>
    %161 = math.tanh %160 : vector<8x384xf32>
    %cst_51 = arith.constant 5.000000e-01 : f32
    %162 = vector.broadcast %cst_51 : f32 to vector<8x384xf32>
    %163 = arith.mulf %162, %161 : vector<8x384xf32>
    %cst_52 = arith.constant 5.000000e-01 : f32
    %164 = vector.broadcast %cst_52 : f32 to vector<8x384xf32>
    %165 = arith.addf %163, %164 : vector<8x384xf32>
    %166 = vector.extract_strided_slice %155 {offsets = [0, 384], sizes = [8, 128], strides = [1, 1]} : vector<8x512xf32> to vector<8x128xf32>
    %167 = math.tanh %166 : vector<8x128xf32>
    %168 = vector.extract_strided_slice %165 {offsets = [0, 0], sizes = [8, 128], strides = [1, 1]} : vector<8x384xf32> to vector<8x128xf32>
    %169 = vector.extract_strided_slice %165 {offsets = [0, 128], sizes = [8, 128], strides = [1, 1]} : vector<8x384xf32> to vector<8x128xf32>
    %170 = vector.extract_strided_slice %165 {offsets = [0, 256], sizes = [8, 128], strides = [1, 1]} : vector<8x384xf32> to vector<8x128xf32>
    %171 = arith.mulf %169, %127 : vector<8x128xf32>
    %172 = arith.mulf %168, %167 : vector<8x128xf32>
    %173 = arith.addf %171, %172 : vector<8x128xf32>
    %174 = math.tanh %173 : vector<8x128xf32>
    %175 = arith.mulf %170, %174 : vector<8x128xf32>
    %176 = arith.truncf %175 : vector<8x128xf32> to vector<8x128xbf16>
    %cst_53 = arith.constant dense<0.000000e+00> : vector<8x512xf32>
    %177 = tpu.matmul %176, %8, %cst_53 {dimension_numbers = #tpu.dot_dimension_numbers<[1], [0], [0], [1], [0, 0, 1, 1], [], []>} : vector<8x128xbf16>, vector<128x512xbf16>, vector<8x512xf32> -> vector<8x512xf32>
    %178 = arith.addf %157, %177 : vector<8x512xf32>
    %179 = arith.addf %178, %12 : vector<8x512xf32>
    %180 = vector.extract_strided_slice %179 {offsets = [0, 0], sizes = [8, 384], strides = [1, 1]} : vector<8x512xf32> to vector<8x384xf32>
    %cst_54 = arith.constant 5.000000e-01 : f32
    %181 = vector.broadcast %cst_54 : f32 to vector<8x384xf32>
    %182 = arith.mulf %181, %180 : vector<8x384xf32>
    %183 = math.tanh %182 : vector<8x384xf32>
    %cst_55 = arith.constant 5.000000e-01 : f32
    %184 = vector.broadcast %cst_55 : f32 to vector<8x384xf32>
    %185 = arith.mulf %184, %183 : vector<8x384xf32>
    %cst_56 = arith.constant 5.000000e-01 : f32
    %186 = vector.broadcast %cst_56 : f32 to vector<8x384xf32>
    %187 = arith.addf %185, %186 : vector<8x384xf32>
    %188 = vector.extract_strided_slice %179 {offsets = [0, 384], sizes = [8, 128], strides = [1, 1]} : vector<8x512xf32> to vector<8x128xf32>
    %189 = math.tanh %188 : vector<8x128xf32>
    %190 = vector.extract_strided_slice %187 {offsets = [0, 0], sizes = [8, 128], strides = [1, 1]} : vector<8x384xf32> to vector<8x128xf32>
    %191 = vector.extract_strided_slice %187 {offsets = [0, 128], sizes = [8, 128], strides = [1, 1]} : vector<8x384xf32> to vector<8x128xf32>
    %192 = vector.extract_strided_slice %187 {offsets = [0, 256], sizes = [8, 128], strides = [1, 1]} : vector<8x384xf32> to vector<8x128xf32>
    %193 = arith.mulf %191, %149 : vector<8x128xf32>
    %194 = arith.mulf %190, %189 : vector<8x128xf32>
    %195 = arith.addf %193, %194 : vector<8x128xf32>
    %196 = math.tanh %195 : vector<8x128xf32>
    %197 = arith.mulf %192, %196 : vector<8x128xf32>
    %c32 = arith.constant 32 : index
    %c0_57 = arith.constant 0 : index
    %198 = vector.load %arg14[%c32, %c0_57] : memref<64x512xf32, #tpu.memory_space<vmem>>, vector<8x512xf32>
    %199 = arith.truncf %175 : vector<8x128xf32> to vector<8x128xbf16>
    %cst_58 = arith.constant dense<0.000000e+00> : vector<8x512xf32>
    %200 = tpu.matmul %199, %7, %cst_58 {dimension_numbers = #tpu.dot_dimension_numbers<[1], [0], [0], [1], [0, 0, 1, 1], [], []>} : vector<8x128xbf16>, vector<128x512xbf16>, vector<8x512xf32> -> vector<8x512xf32>
    %201 = arith.addf %198, %200 : vector<8x512xf32>
    %202 = arith.truncf %197 : vector<8x128xf32> to vector<8x128xbf16>
    %cst_59 = arith.constant dense<0.000000e+00> : vector<8x512xf32>
    %203 = tpu.matmul %202, %9, %cst_59 {dimension_numbers = #tpu.dot_dimension_numbers<[1], [0], [0], [1], [0, 0, 1, 1], [], []>} : vector<8x128xbf16>, vector<128x512xbf16>, vector<8x512xf32> -> vector<8x512xf32>
    %204 = vector.extract_strided_slice %201 {offsets = [0, 0], sizes = [8, 384], strides = [1, 1]} : vector<8x512xf32> to vector<8x384xf32>
    %cst_60 = arith.constant 5.000000e-01 : f32
    %205 = vector.broadcast %cst_60 : f32 to vector<8x384xf32>
    %206 = arith.mulf %205, %204 : vector<8x384xf32>
    %207 = math.tanh %206 : vector<8x384xf32>
    %cst_61 = arith.constant 5.000000e-01 : f32
    %208 = vector.broadcast %cst_61 : f32 to vector<8x384xf32>
    %209 = arith.mulf %208, %207 : vector<8x384xf32>
    %cst_62 = arith.constant 5.000000e-01 : f32
    %210 = vector.broadcast %cst_62 : f32 to vector<8x384xf32>
    %211 = arith.addf %209, %210 : vector<8x384xf32>
    %212 = vector.extract_strided_slice %201 {offsets = [0, 384], sizes = [8, 128], strides = [1, 1]} : vector<8x512xf32> to vector<8x128xf32>
    %213 = math.tanh %212 : vector<8x128xf32>
    %214 = vector.extract_strided_slice %211 {offsets = [0, 0], sizes = [8, 128], strides = [1, 1]} : vector<8x384xf32> to vector<8x128xf32>
    %215 = vector.extract_strided_slice %211 {offsets = [0, 128], sizes = [8, 128], strides = [1, 1]} : vector<8x384xf32> to vector<8x128xf32>
    %216 = vector.extract_strided_slice %211 {offsets = [0, 256], sizes = [8, 128], strides = [1, 1]} : vector<8x384xf32> to vector<8x128xf32>
    %217 = arith.mulf %215, %173 : vector<8x128xf32>
    %218 = arith.mulf %214, %213 : vector<8x128xf32>
    %219 = arith.addf %217, %218 : vector<8x128xf32>
    %220 = math.tanh %219 : vector<8x128xf32>
    %221 = arith.mulf %216, %220 : vector<8x128xf32>
    %222 = arith.truncf %221 : vector<8x128xf32> to vector<8x128xbf16>
    %cst_63 = arith.constant dense<0.000000e+00> : vector<8x512xf32>
    %223 = tpu.matmul %222, %8, %cst_63 {dimension_numbers = #tpu.dot_dimension_numbers<[1], [0], [0], [1], [0, 0, 1, 1], [], []>} : vector<8x128xbf16>, vector<128x512xbf16>, vector<8x512xf32> -> vector<8x512xf32>
    %224 = arith.addf %203, %223 : vector<8x512xf32>
    %225 = arith.addf %224, %12 : vector<8x512xf32>
    %226 = vector.extract_strided_slice %225 {offsets = [0, 0], sizes = [8, 384], strides = [1, 1]} : vector<8x512xf32> to vector<8x384xf32>
    %cst_64 = arith.constant 5.000000e-01 : f32
    %227 = vector.broadcast %cst_64 : f32 to vector<8x384xf32>
    %228 = arith.mulf %227, %226 : vector<8x384xf32>
    %229 = math.tanh %228 : vector<8x384xf32>
    %cst_65 = arith.constant 5.000000e-01 : f32
    %230 = vector.broadcast %cst_65 : f32 to vector<8x384xf32>
    %231 = arith.mulf %230, %229 : vector<8x384xf32>
    %cst_66 = arith.constant 5.000000e-01 : f32
    %232 = vector.broadcast %cst_66 : f32 to vector<8x384xf32>
    %233 = arith.addf %231, %232 : vector<8x384xf32>
    %234 = vector.extract_strided_slice %225 {offsets = [0, 384], sizes = [8, 128], strides = [1, 1]} : vector<8x512xf32> to vector<8x128xf32>
    %235 = math.tanh %234 : vector<8x128xf32>
    %236 = vector.extract_strided_slice %233 {offsets = [0, 0], sizes = [8, 128], strides = [1, 1]} : vector<8x384xf32> to vector<8x128xf32>
    %237 = vector.extract_strided_slice %233 {offsets = [0, 128], sizes = [8, 128], strides = [1, 1]} : vector<8x384xf32> to vector<8x128xf32>
    %238 = vector.extract_strided_slice %233 {offsets = [0, 256], sizes = [8, 128], strides = [1, 1]} : vector<8x384xf32> to vector<8x128xf32>
    %239 = arith.mulf %237, %195 : vector<8x128xf32>
    %240 = arith.mulf %236, %235 : vector<8x128xf32>
    %241 = arith.addf %239, %240 : vector<8x128xf32>
    %242 = math.tanh %241 : vector<8x128xf32>
    %243 = arith.mulf %238, %242 : vector<8x128xf32>
    %c40 = arith.constant 40 : index
    %c0_67 = arith.constant 0 : index
    %244 = vector.load %arg14[%c40, %c0_67] : memref<64x512xf32, #tpu.memory_space<vmem>>, vector<8x512xf32>
    %245 = arith.truncf %221 : vector<8x128xf32> to vector<8x128xbf16>
    %cst_68 = arith.constant dense<0.000000e+00> : vector<8x512xf32>
    %246 = tpu.matmul %245, %7, %cst_68 {dimension_numbers = #tpu.dot_dimension_numbers<[1], [0], [0], [1], [0, 0, 1, 1], [], []>} : vector<8x128xbf16>, vector<128x512xbf16>, vector<8x512xf32> -> vector<8x512xf32>
    %247 = arith.addf %244, %246 : vector<8x512xf32>
    %248 = arith.truncf %243 : vector<8x128xf32> to vector<8x128xbf16>
    %cst_69 = arith.constant dense<0.000000e+00> : vector<8x512xf32>
    %249 = tpu.matmul %248, %9, %cst_69 {dimension_numbers = #tpu.dot_dimension_numbers<[1], [0], [0], [1], [0, 0, 1, 1], [], []>} : vector<8x128xbf16>, vector<128x512xbf16>, vector<8x512xf32> -> vector<8x512xf32>
    %250 = vector.extract_strided_slice %247 {offsets = [0, 0], sizes = [8, 384], strides = [1, 1]} : vector<8x512xf32> to vector<8x384xf32>
    %cst_70 = arith.constant 5.000000e-01 : f32
    %251 = vector.broadcast %cst_70 : f32 to vector<8x384xf32>
    %252 = arith.mulf %251, %250 : vector<8x384xf32>
    %253 = math.tanh %252 : vector<8x384xf32>
    %cst_71 = arith.constant 5.000000e-01 : f32
    %254 = vector.broadcast %cst_71 : f32 to vector<8x384xf32>
    %255 = arith.mulf %254, %253 : vector<8x384xf32>
    %cst_72 = arith.constant 5.000000e-01 : f32
    %256 = vector.broadcast %cst_72 : f32 to vector<8x384xf32>
    %257 = arith.addf %255, %256 : vector<8x384xf32>
    %258 = vector.extract_strided_slice %247 {offsets = [0, 384], sizes = [8, 128], strides = [1, 1]} : vector<8x512xf32> to vector<8x128xf32>
    %259 = math.tanh %258 : vector<8x128xf32>
    %260 = vector.extract_strided_slice %257 {offsets = [0, 0], sizes = [8, 128], strides = [1, 1]} : vector<8x384xf32> to vector<8x128xf32>
    %261 = vector.extract_strided_slice %257 {offsets = [0, 128], sizes = [8, 128], strides = [1, 1]} : vector<8x384xf32> to vector<8x128xf32>
    %262 = vector.extract_strided_slice %257 {offsets = [0, 256], sizes = [8, 128], strides = [1, 1]} : vector<8x384xf32> to vector<8x128xf32>
    %263 = arith.mulf %261, %219 : vector<8x128xf32>
    %264 = arith.mulf %260, %259 : vector<8x128xf32>
    %265 = arith.addf %263, %264 : vector<8x128xf32>
    %266 = math.tanh %265 : vector<8x128xf32>
    %267 = arith.mulf %262, %266 : vector<8x128xf32>
    %268 = arith.truncf %267 : vector<8x128xf32> to vector<8x128xbf16>
    %cst_73 = arith.constant dense<0.000000e+00> : vector<8x512xf32>
    %269 = tpu.matmul %268, %8, %cst_73 {dimension_numbers = #tpu.dot_dimension_numbers<[1], [0], [0], [1], [0, 0, 1, 1], [], []>} : vector<8x128xbf16>, vector<128x512xbf16>, vector<8x512xf32> -> vector<8x512xf32>
    %270 = arith.addf %249, %269 : vector<8x512xf32>
    %271 = arith.addf %270, %12 : vector<8x512xf32>
    %272 = vector.extract_strided_slice %271 {offsets = [0, 0], sizes = [8, 384], strides = [1, 1]} : vector<8x512xf32> to vector<8x384xf32>
    %cst_74 = arith.constant 5.000000e-01 : f32
    %273 = vector.broadcast %cst_74 : f32 to vector<8x384xf32>
    %274 = arith.mulf %273, %272 : vector<8x384xf32>
    %275 = math.tanh %274 : vector<8x384xf32>
    %cst_75 = arith.constant 5.000000e-01 : f32
    %276 = vector.broadcast %cst_75 : f32 to vector<8x384xf32>
    %277 = arith.mulf %276, %275 : vector<8x384xf32>
    %cst_76 = arith.constant 5.000000e-01 : f32
    %278 = vector.broadcast %cst_76 : f32 to vector<8x384xf32>
    %279 = arith.addf %277, %278 : vector<8x384xf32>
    %280 = vector.extract_strided_slice %271 {offsets = [0, 384], sizes = [8, 128], strides = [1, 1]} : vector<8x512xf32> to vector<8x128xf32>
    %281 = math.tanh %280 : vector<8x128xf32>
    %282 = vector.extract_strided_slice %279 {offsets = [0, 0], sizes = [8, 128], strides = [1, 1]} : vector<8x384xf32> to vector<8x128xf32>
    %283 = vector.extract_strided_slice %279 {offsets = [0, 128], sizes = [8, 128], strides = [1, 1]} : vector<8x384xf32> to vector<8x128xf32>
    %284 = vector.extract_strided_slice %279 {offsets = [0, 256], sizes = [8, 128], strides = [1, 1]} : vector<8x384xf32> to vector<8x128xf32>
    %285 = arith.mulf %283, %241 : vector<8x128xf32>
    %286 = arith.mulf %282, %281 : vector<8x128xf32>
    %287 = arith.addf %285, %286 : vector<8x128xf32>
    %288 = math.tanh %287 : vector<8x128xf32>
    %289 = arith.mulf %284, %288 : vector<8x128xf32>
    %c48 = arith.constant 48 : index
    %c0_77 = arith.constant 0 : index
    %290 = vector.load %arg14[%c48, %c0_77] : memref<64x512xf32, #tpu.memory_space<vmem>>, vector<8x512xf32>
    %291 = arith.truncf %267 : vector<8x128xf32> to vector<8x128xbf16>
    %cst_78 = arith.constant dense<0.000000e+00> : vector<8x512xf32>
    %292 = tpu.matmul %291, %7, %cst_78 {dimension_numbers = #tpu.dot_dimension_numbers<[1], [0], [0], [1], [0, 0, 1, 1], [], []>} : vector<8x128xbf16>, vector<128x512xbf16>, vector<8x512xf32> -> vector<8x512xf32>
    %293 = arith.addf %290, %292 : vector<8x512xf32>
    %294 = arith.truncf %289 : vector<8x128xf32> to vector<8x128xbf16>
    %cst_79 = arith.constant dense<0.000000e+00> : vector<8x512xf32>
    %295 = tpu.matmul %294, %9, %cst_79 {dimension_numbers = #tpu.dot_dimension_numbers<[1], [0], [0], [1], [0, 0, 1, 1], [], []>} : vector<8x128xbf16>, vector<128x512xbf16>, vector<8x512xf32> -> vector<8x512xf32>
    %296 = vector.extract_strided_slice %293 {offsets = [0, 0], sizes = [8, 384], strides = [1, 1]} : vector<8x512xf32> to vector<8x384xf32>
    %cst_80 = arith.constant 5.000000e-01 : f32
    %297 = vector.broadcast %cst_80 : f32 to vector<8x384xf32>
    %298 = arith.mulf %297, %296 : vector<8x384xf32>
    %299 = math.tanh %298 : vector<8x384xf32>
    %cst_81 = arith.constant 5.000000e-01 : f32
    %300 = vector.broadcast %cst_81 : f32 to vector<8x384xf32>
    %301 = arith.mulf %300, %299 : vector<8x384xf32>
    %cst_82 = arith.constant 5.000000e-01 : f32
    %302 = vector.broadcast %cst_82 : f32 to vector<8x384xf32>
    %303 = arith.addf %301, %302 : vector<8x384xf32>
    %304 = vector.extract_strided_slice %293 {offsets = [0, 384], sizes = [8, 128], strides = [1, 1]} : vector<8x512xf32> to vector<8x128xf32>
    %305 = math.tanh %304 : vector<8x128xf32>
    %306 = vector.extract_strided_slice %303 {offsets = [0, 0], sizes = [8, 128], strides = [1, 1]} : vector<8x384xf32> to vector<8x128xf32>
    %307 = vector.extract_strided_slice %303 {offsets = [0, 128], sizes = [8, 128], strides = [1, 1]} : vector<8x384xf32> to vector<8x128xf32>
    %308 = vector.extract_strided_slice %303 {offsets = [0, 256], sizes = [8, 128], strides = [1, 1]} : vector<8x384xf32> to vector<8x128xf32>
    %309 = arith.mulf %307, %265 : vector<8x128xf32>
    %310 = arith.mulf %306, %305 : vector<8x128xf32>
    %311 = arith.addf %309, %310 : vector<8x128xf32>
    %312 = math.tanh %311 : vector<8x128xf32>
    %313 = arith.mulf %308, %312 : vector<8x128xf32>
    %314 = arith.truncf %313 : vector<8x128xf32> to vector<8x128xbf16>
    %cst_83 = arith.constant dense<0.000000e+00> : vector<8x512xf32>
    %315 = tpu.matmul %314, %8, %cst_83 {dimension_numbers = #tpu.dot_dimension_numbers<[1], [0], [0], [1], [0, 0, 1, 1], [], []>} : vector<8x128xbf16>, vector<128x512xbf16>, vector<8x512xf32> -> vector<8x512xf32>
    %316 = arith.addf %295, %315 : vector<8x512xf32>
    %317 = arith.addf %316, %12 : vector<8x512xf32>
    %318 = vector.extract_strided_slice %317 {offsets = [0, 0], sizes = [8, 384], strides = [1, 1]} : vector<8x512xf32> to vector<8x384xf32>
    %cst_84 = arith.constant 5.000000e-01 : f32
    %319 = vector.broadcast %cst_84 : f32 to vector<8x384xf32>
    %320 = arith.mulf %319, %318 : vector<8x384xf32>
    %321 = math.tanh %320 : vector<8x384xf32>
    %cst_85 = arith.constant 5.000000e-01 : f32
    %322 = vector.broadcast %cst_85 : f32 to vector<8x384xf32>
    %323 = arith.mulf %322, %321 : vector<8x384xf32>
    %cst_86 = arith.constant 5.000000e-01 : f32
    %324 = vector.broadcast %cst_86 : f32 to vector<8x384xf32>
    %325 = arith.addf %323, %324 : vector<8x384xf32>
    %326 = vector.extract_strided_slice %317 {offsets = [0, 384], sizes = [8, 128], strides = [1, 1]} : vector<8x512xf32> to vector<8x128xf32>
    %327 = math.tanh %326 : vector<8x128xf32>
    %328 = vector.extract_strided_slice %325 {offsets = [0, 0], sizes = [8, 128], strides = [1, 1]} : vector<8x384xf32> to vector<8x128xf32>
    %329 = vector.extract_strided_slice %325 {offsets = [0, 128], sizes = [8, 128], strides = [1, 1]} : vector<8x384xf32> to vector<8x128xf32>
    %330 = vector.extract_strided_slice %325 {offsets = [0, 256], sizes = [8, 128], strides = [1, 1]} : vector<8x384xf32> to vector<8x128xf32>
    %331 = arith.mulf %329, %287 : vector<8x128xf32>
    %332 = arith.mulf %328, %327 : vector<8x128xf32>
    %333 = arith.addf %331, %332 : vector<8x128xf32>
    %334 = math.tanh %333 : vector<8x128xf32>
    %335 = arith.mulf %330, %334 : vector<8x128xf32>
    %c56 = arith.constant 56 : index
    %c0_87 = arith.constant 0 : index
    %336 = vector.load %arg14[%c56, %c0_87] : memref<64x512xf32, #tpu.memory_space<vmem>>, vector<8x512xf32>
    %337 = arith.truncf %313 : vector<8x128xf32> to vector<8x128xbf16>
    %cst_88 = arith.constant dense<0.000000e+00> : vector<8x512xf32>
    %338 = tpu.matmul %337, %7, %cst_88 {dimension_numbers = #tpu.dot_dimension_numbers<[1], [0], [0], [1], [0, 0, 1, 1], [], []>} : vector<8x128xbf16>, vector<128x512xbf16>, vector<8x512xf32> -> vector<8x512xf32>
    %339 = arith.addf %336, %338 : vector<8x512xf32>
    %340 = arith.truncf %335 : vector<8x128xf32> to vector<8x128xbf16>
    %cst_89 = arith.constant dense<0.000000e+00> : vector<8x512xf32>
    %341 = tpu.matmul %340, %9, %cst_89 {dimension_numbers = #tpu.dot_dimension_numbers<[1], [0], [0], [1], [0, 0, 1, 1], [], []>} : vector<8x128xbf16>, vector<128x512xbf16>, vector<8x512xf32> -> vector<8x512xf32>
    %342 = vector.extract_strided_slice %339 {offsets = [0, 0], sizes = [8, 384], strides = [1, 1]} : vector<8x512xf32> to vector<8x384xf32>
    %cst_90 = arith.constant 5.000000e-01 : f32
    %343 = vector.broadcast %cst_90 : f32 to vector<8x384xf32>
    %344 = arith.mulf %343, %342 : vector<8x384xf32>
    %345 = math.tanh %344 : vector<8x384xf32>
    %cst_91 = arith.constant 5.000000e-01 : f32
    %346 = vector.broadcast %cst_91 : f32 to vector<8x384xf32>
    %347 = arith.mulf %346, %345 : vector<8x384xf32>
    %cst_92 = arith.constant 5.000000e-01 : f32
    %348 = vector.broadcast %cst_92 : f32 to vector<8x384xf32>
    %349 = arith.addf %347, %348 : vector<8x384xf32>
    %350 = vector.extract_strided_slice %339 {offsets = [0, 384], sizes = [8, 128], strides = [1, 1]} : vector<8x512xf32> to vector<8x128xf32>
    %351 = math.tanh %350 : vector<8x128xf32>
    %352 = vector.extract_strided_slice %349 {offsets = [0, 0], sizes = [8, 128], strides = [1, 1]} : vector<8x384xf32> to vector<8x128xf32>
    %353 = vector.extract_strided_slice %349 {offsets = [0, 128], sizes = [8, 128], strides = [1, 1]} : vector<8x384xf32> to vector<8x128xf32>
    %354 = vector.extract_strided_slice %349 {offsets = [0, 256], sizes = [8, 128], strides = [1, 1]} : vector<8x384xf32> to vector<8x128xf32>
    %355 = arith.mulf %353, %311 : vector<8x128xf32>
    %356 = arith.mulf %352, %351 : vector<8x128xf32>
    %357 = arith.addf %355, %356 : vector<8x128xf32>
    %358 = math.tanh %357 : vector<8x128xf32>
    %359 = arith.mulf %354, %358 : vector<8x128xf32>
    %360 = arith.truncf %359 : vector<8x128xf32> to vector<8x128xbf16>
    %cst_93 = arith.constant dense<0.000000e+00> : vector<8x512xf32>
    %361 = tpu.matmul %360, %8, %cst_93 {dimension_numbers = #tpu.dot_dimension_numbers<[1], [0], [0], [1], [0, 0, 1, 1], [], []>} : vector<8x128xbf16>, vector<128x512xbf16>, vector<8x512xf32> -> vector<8x512xf32>
    %362 = arith.addf %341, %361 : vector<8x512xf32>
    %363 = arith.addf %362, %12 : vector<8x512xf32>
    %364 = vector.extract_strided_slice %363 {offsets = [0, 0], sizes = [8, 384], strides = [1, 1]} : vector<8x512xf32> to vector<8x384xf32>
    %cst_94 = arith.constant 5.000000e-01 : f32
    %365 = vector.broadcast %cst_94 : f32 to vector<8x384xf32>
    %366 = arith.mulf %365, %364 : vector<8x384xf32>
    %367 = math.tanh %366 : vector<8x384xf32>
    %cst_95 = arith.constant 5.000000e-01 : f32
    %368 = vector.broadcast %cst_95 : f32 to vector<8x384xf32>
    %369 = arith.mulf %368, %367 : vector<8x384xf32>
    %cst_96 = arith.constant 5.000000e-01 : f32
    %370 = vector.broadcast %cst_96 : f32 to vector<8x384xf32>
    %371 = arith.addf %369, %370 : vector<8x384xf32>
    %372 = vector.extract_strided_slice %363 {offsets = [0, 384], sizes = [8, 128], strides = [1, 1]} : vector<8x512xf32> to vector<8x128xf32>
    %373 = math.tanh %372 : vector<8x128xf32>
    %374 = vector.extract_strided_slice %371 {offsets = [0, 0], sizes = [8, 128], strides = [1, 1]} : vector<8x384xf32> to vector<8x128xf32>
    %375 = vector.extract_strided_slice %371 {offsets = [0, 128], sizes = [8, 128], strides = [1, 1]} : vector<8x384xf32> to vector<8x128xf32>
    %376 = vector.extract_strided_slice %371 {offsets = [0, 256], sizes = [8, 128], strides = [1, 1]} : vector<8x384xf32> to vector<8x128xf32>
    %377 = arith.mulf %375, %333 : vector<8x128xf32>
    %378 = arith.mulf %374, %373 : vector<8x128xf32>
    %379 = arith.addf %377, %378 : vector<8x128xf32>
    %380 = math.tanh %379 : vector<8x128xf32>
    %381 = arith.mulf %376, %380 : vector<8x128xf32>
    %c0_97 = arith.constant 0 : index
    %c0_98 = arith.constant 0 : index
    %382 = vector.load %arg7[%c0_97, %c0_98] : memref<128x16xf32, #tpu.memory_space<vmem>>, vector<128x16xf32>
    %cst_99 = arith.constant dense<0.000000e+00> : vector<8x16xf32>
    %383 = tpu.matmul %381, %382, %cst_99 {dimension_numbers = #tpu.dot_dimension_numbers<[1], [0], [0], [1], [0, 0, 1, 1], [], []>} : vector<8x128xf32>, vector<128x16xf32>, vector<8x16xf32> -> vector<8x16xf32>
    %c0_100 = arith.constant 0 : index
    %c0_101 = arith.constant 0 : index
    %384 = vector.load %arg8[%c0_100, %c0_101] : memref<1x16xf32, #tpu.memory_space<vmem>>, vector<1x16xf32>
    %385 = vector.broadcast %384 : vector<1x16xf32> to vector<8x16xf32>
    %386 = arith.addf %383, %385 : vector<8x16xf32>
    %cst_102 = arith.constant 0.000000e+00 : f32
    %387 = vector.broadcast %cst_102 : f32 to vector<8x16xf32>
    %388 = arith.maximumf %386, %387 : vector<8x16xf32>
    %c0_103 = arith.constant 0 : index
    %c0_104 = arith.constant 0 : index
    %389 = vector.load %arg9[%c0_103, %c0_104] : memref<16x8xf32, #tpu.memory_space<vmem>>, vector<16x8xf32>
    %cst_105 = arith.constant dense<0.000000e+00> : vector<8x8xf32>
    %390 = tpu.matmul %388, %389, %cst_105 {dimension_numbers = #tpu.dot_dimension_numbers<[1], [0], [0], [1], [0, 0, 1, 1], [], []>} : vector<8x16xf32>, vector<16x8xf32>, vector<8x8xf32> -> vector<8x8xf32>
    %c0_106 = arith.constant 0 : index
    %c0_107 = arith.constant 0 : index
    %391 = vector.load %arg10[%c0_106, %c0_107] : memref<1x8xf32, #tpu.memory_space<vmem>>, vector<1x8xf32>
    %392 = vector.broadcast %391 : vector<1x8xf32> to vector<8x8xf32>
    %393 = arith.addf %390, %392 : vector<8x8xf32>
    %cst_108 = arith.constant 0.000000e+00 : f32
    %394 = vector.broadcast %cst_108 : f32 to vector<8x8xf32>
    %395 = arith.maximumf %393, %394 : vector<8x8xf32>
    %c0_109 = arith.constant 0 : index
    %c0_110 = arith.constant 0 : index
    %396 = vector.load %arg11[%c0_109, %c0_110] : memref<8x128xf32, #tpu.memory_space<vmem>>, vector<8x128xf32>
    %cst_111 = arith.constant dense<0.000000e+00> : vector<8x128xf32>
    %397 = tpu.matmul %395, %396, %cst_111 {dimension_numbers = #tpu.dot_dimension_numbers<[1], [0], [0], [1], [0, 0, 1, 1], [], []>} : vector<8x8xf32>, vector<8x128xf32>, vector<8x128xf32> -> vector<8x128xf32>
    %c0_112 = arith.constant 0 : index
    %c0_113 = arith.constant 0 : index
    %398 = vector.load %arg12[%c0_112, %c0_113] : memref<1x128xf32, #tpu.memory_space<vmem>>, vector<1x128xf32>
    %399 = vector.broadcast %398 : vector<1x128xf32> to vector<8x128xf32>
    %400 = arith.addf %397, %399 : vector<8x128xf32>
    %401 = arith.negf %400 : vector<8x128xf32>
    %402 = math.exp %401 : vector<8x128xf32>
    %cst_114 = arith.constant 1.000000e+00 : f32
    %403 = vector.broadcast %cst_114 : f32 to vector<8x128xf32>
    %404 = arith.addf %403, %402 : vector<8x128xf32>
    %405 = arith.divf %403, %404 : vector<8x128xf32>
    %c0_115 = arith.constant 0 : index
    %c0_116 = arith.constant 0 : index
    %406 = vector.load %arg13[%c0_115, %c0_116] : memref<8x128xf32, #tpu.memory_space<vmem>>, vector<8x128xf32>
    tpu.vector_store %arg13[%c0_115, %c0_116], %405 {strides = array<i32>} : memref<8x128xf32, #tpu.memory_space<vmem>>, vector<8x128xf32>,
    return
  }
}

</mosaic_0001>

<llo_original>
// kernel: tpu_custom_call.1
$region0: #{tpu_custom_call.1}
  #allocation0 [shape = 'u32[]', space=smem, size = 0x4, offset = 0x4, fixed_abs, tag = 'smem constant byte address 0x4 - core index']
  #allocation1 [shape = 'u32[144,128]{1,0:T(1,128)}', space=vmem, size = 0x12000, scoped, tag = 'internal scratch']
  #allocation2 [shape = 'f32[64,512]{1,0:T(8,128)}', space=vmem, size = 0x20000, scoped, tag = 'scratch operand']
  %s0 = inlined_call_operand.vmem [shape: bf16[64,16], index: 0, kind: input, shape index: {}]
  %s1 = inlined_call_operand.vmem [shape: bf16[16,512], index: 1, kind: input, shape index: {}]
  %s2 = inlined_call_operand.hbm [shape: bf16[128,512], index: 2, kind: input, shape index: {}]
  %s3 = inlined_call_operand.vmem [shape: f32[1,512], index: 3, kind: input, shape index: {}]
  %s4 = inlined_call_operand.hbm [shape: bf16[128,512], index: 4, kind: input, shape index: {}]
  %s5 = inlined_call_operand.hbm [shape: bf16[128,512], index: 5, kind: input, shape index: {}]
  %s6 = inlined_call_operand.vmem [shape: f32[1,512], index: 6, kind: input, shape index: {}]
  %s7 = inlined_call_operand.vmem [shape: f32[128,16], index: 7, kind: input, shape index: {}]
  %s8 = inlined_call_operand.vmem [shape: f32[1,16], index: 8, kind: input, shape index: {}]
  %s9 = inlined_call_operand.vmem [shape: f32[16,8], index: 9, kind: input, shape index: {}]
  %s10 = inlined_call_operand.vmem [shape: f32[1,8], index: 10, kind: input, shape index: {}]
  %s11 = inlined_call_operand.vmem [shape: f32[8,128], index: 11, kind: input, shape index: {}]
  %s12 = inlined_call_operand.vmem [shape: f32[1,128], index: 12, kind: input, shape index: {}]
  %s13 = inlined_call_operand.hbm [shape: f32[8,128], index: 13, kind: output, shape index: {}]
  %s14 = sld [smem:[#allocation0]]
  $region74: #{tpu_custom_call.1} parent=0
    _
  %s16 = ssub.s32 1, %s14
  %s17 = scalar_select 0, %s16, %s14
  $region1: #{tpu_custom_call.1} parent=0
    #allocation3 [shape = 'u8[131072]{0}', space=vmem, size = 0x20000, scoped, tag = 'input window, operand 2, single buffered']
    #allocation4 [shape = 's32[1]{0}', space=sflag, size = 0x4, scoped, tag = 'scoped memory for tpu_custom_call.1']
    #allocation5 [shape = 's32[1]{0}', space=sflag, size = 0x4, scoped, tag = 'scoped memory for tpu_custom_call.1']
    #allocation6 [shape = 'u8[131072]{0}', space=vmem, size = 0x20000, scoped, tag = 'input window, operand 4, single buffered']
    #allocation7 [shape = 's32[1]{0}', space=sflag, size = 0x4, scoped, tag = 'scoped memory for tpu_custom_call.1']
    #allocation8 [shape = 'u8[131072]{0}', space=vmem, size = 0x20000, scoped, tag = 'input window, operand 5, single buffered']
    #allocation9 [shape = 'u8[4096]{0}', space=vmem, size = 0x1000, scoped, tag = 'output window, operand 0, single buffered']
    %18 = vsyncpa [#allocation4], 0
    %19 = vsyncpa [#allocation7], 0
    %20 = vsyncpa [#allocation5], 0
    // Predicated region
    $region2: #{tpu_custom_call.1} parent=1 // pred_check
      _
    $region3: #{tpu_custom_call.1} parent=1 // pred_check_branch
      %22 = sbr.rel (0) target = $region5
    $region4: #{tpu_custom_call.1} parent=1 // pred_region
      _
    $region5: #{tpu_custom_call.1} parent=1 // pred_fallthru
      _
    // Predicated region
    $region6: #{tpu_custom_call.1} parent=1 // pred_check
      _
    $region7: #{tpu_custom_call.1} parent=1 // pred_check_branch
      %24 = sbr.rel (0) target = $region9
    $region8: #{tpu_custom_call.1} parent=1 // pred_region
      _
    $region9: #{tpu_custom_call.1} parent=1 // pred_fallthru
      _
    // Predicated region
    $region10: #{tpu_custom_call.1} parent=1 // pred_check
      _
    $region11: #{tpu_custom_call.1} parent=1 // pred_check_branch
      %26 = sbr.rel (0) target = $region13
    $region12: #{tpu_custom_call.1} parent=1 // pred_region
      %s28 = ssub.s32 4096, 4096
      %29 = vsyncadd [#allocation4], %s28
      %s30 = sshll.u32 [#allocation3], 4
      %s31 = int_to_ptr.vmem [resolvable:$true] %s30
      %36 = dma.hbm_to_vmem [thread:$0]  %s2, 4096, %s31, [#allocation4], 256, 256, 16
    $region13: #{tpu_custom_call.1} parent=1 // pred_fallthru
      _
    // Predicated region
    $region14: #{tpu_custom_call.1} parent=1 // pred_check
      _
    $region15: #{tpu_custom_call.1} parent=1 // pred_check_branch
      %38 = sbr.rel (0) target = $region17
    $region16: #{tpu_custom_call.1} parent=1 // pred_region
      _
    $region17: #{tpu_custom_call.1} parent=1 // pred_fallthru
      _
    // Predicated region
    $region18: #{tpu_custom_call.1} parent=1 // pred_check
      _
    $region19: #{tpu_custom_call.1} parent=1 // pred_check_branch
      %40 = sbr.rel (0) target = $region21
    $region20: #{tpu_custom_call.1} parent=1 // pred_region
      %s42 = ssub.s32 4096, 4096
      %43 = vsyncadd [#allocation7], %s42
      %s44 = sshll.u32 [#allocation6], 4
      %s45 = int_to_ptr.vmem [resolvable:$true] %s44
      %50 = dma.hbm_to_vmem [thread:$0]  %s4, 4096, %s45, [#allocation7], 256, 256, 16
    $region21: #{tpu_custom_call.1} parent=1 // pred_fallthru
      _
    // Predicated region
    $region22: #{tpu_custom_call.1} parent=1 // pred_check
      _
    $region23: #{tpu_custom_call.1} parent=1 // pred_check_branch
      %52 = sbr.rel (0) target = $region25
    $region24: #{tpu_custom_call.1} parent=1 // pred_region
      %s54 = ssub.s32 4096, 4096
      %55 = vsyncadd [#allocation7], %s54
      %s56 = sshll.u32 [#allocation8], 4
      %s57 = int_to_ptr.vmem [resolvable:$true] %s56
      %62 = dma.hbm_to_vmem [thread:$0]  %s5, 4096, %s57, [#allocation7], 256, 256, 16
    $region25: #{tpu_custom_call.1} parent=1 // pred_fallthru
      _
    // Predicated region
    $region26: #{tpu_custom_call.1} parent=1 // pred_check
      _
    $region27: #{tpu_custom_call.1} parent=1 // pred_check_branch
      %64 = sbr.rel (0) target = $region29
    $region28: #{tpu_custom_call.1} parent=1 // pred_region
      _
    $region29: #{tpu_custom_call.1} parent=1 // pred_fallthru
      _
    // Predicated region
    $region30: #{tpu_custom_call.1} parent=1 // pred_check
      _
    $region31: #{tpu_custom_call.1} parent=1 // pred_check_branch
      %66 = sbr.rel (0) target = $region33
    $region32: #{tpu_custom_call.1} parent=1 // pred_region
      _
    $region33: #{tpu_custom_call.1} parent=1 // pred_fallthru
      _
    // Predicated region
    $region34: #{tpu_custom_call.1} parent=1 // pred_check
      _
    $region35: #{tpu_custom_call.1} parent=1 // pred_check_branch
      %68 = sbr.rel (0) target = $region37
    $region36: #{tpu_custom_call.1} parent=1 // pred_region
      _
    $region37: #{tpu_custom_call.1} parent=1 // pred_fallthru
      _
    // Predicated region
    $region38: #{tpu_custom_call.1} parent=1 // pred_check
      _
    $region39: #{tpu_custom_call.1} parent=1 // pred_check_branch
      %70 = sbr.rel (0) target = $region41
    $region40: #{tpu_custom_call.1} parent=1 // pred_region
      _
    $region41: #{tpu_custom_call.1} parent=1 // pred_fallthru
      _
    // Predicated region
    $region42: #{tpu_custom_call.1} parent=1 // pred_check
      _
    $region43: #{tpu_custom_call.1} parent=1 // pred_check_branch
      %72 = sbr.rel (0) target = $region45
    $region44: #{tpu_custom_call.1} parent=1 // pred_region
      _
    $region45: #{tpu_custom_call.1} parent=1 // pred_fallthru
      _
    // Predicated region
    $region46: #{tpu_custom_call.1} parent=1 // pred_check
      _
    $region47: #{tpu_custom_call.1} parent=1 // pred_check_branch
      %74 = sbr.rel (0) target = $region49
    $region48: #{tpu_custom_call.1} parent=1 // pred_region
      _
    $region49: #{tpu_custom_call.1} parent=1 // pred_fallthru
      _
    // Predicated region
    $region50: #{tpu_custom_call.1} parent=1 // pred_check
      _
    $region51: #{tpu_custom_call.1} parent=1 // pred_check_branch
      %76 = sbr.rel (0) target = $region53
    $region52: #{tpu_custom_call.1} parent=1 // pred_region
      _
    $region53: #{tpu_custom_call.1} parent=1 // pred_fallthru
      _
    // Predicated region
    $region54: #{tpu_custom_call.1} parent=1 // pred_check
      _
    $region55: #{tpu_custom_call.1} parent=1 // pred_check_branch
      %78 = sbr.rel (0) target = $region57
    $region56: #{tpu_custom_call.1} parent=1 // pred_region
      %79 = dma.done [#allocation4], 4096
    $region57: #{tpu_custom_call.1} parent=1 // pred_fallthru
      _
    // Predicated region
    $region58: #{tpu_custom_call.1} parent=1 // pred_check
      _
    $region59: #{tpu_custom_call.1} parent=1 // pred_check_branch
      %81 = sbr.rel (0) target = $region61
    $region60: #{tpu_custom_call.1} parent=1 // pred_region
      %82 = dma.done [#allocation7], 4096
    $region61: #{tpu_custom_call.1} parent=1 // pred_fallthru
      _
    // Predicated region
    $region62: #{tpu_custom_call.1} parent=1 // pred_check
      _
    $region63: #{tpu_custom_call.1} parent=1 // pred_check_branch
      %84 = sbr.rel (0) target = $region65
    $region64: #{tpu_custom_call.1} parent=1 // pred_region
      %85 = dma.done [#allocation7], 4096
    $region65: #{tpu_custom_call.1} parent=1 // pred_fallthru
      _
    %v87 = vld [vmem:[%s0] sm:$0xf]
    %v88 = vld [vmem:[%s0 + $0x4] sm:$0xf]
    %v89 = vld [vmem:[%s0 + $0x8] sm:$0xf]
    %v90 = vld [vmem:[%s0 + $0xc] sm:$0xf]
    %v91 = vld [vmem:[%s0 + $0x10] sm:$0xf]
    %v92 = vld [vmem:[%s0 + $0x14] sm:$0xf]
    %v93 = vld [vmem:[%s0 + $0x18] sm:$0xf]
    %v94 = vld [vmem:[%s0 + $0x1c] sm:$0xf]
    %v95 = vld [vmem:[%s1] sm:$0xff]
    %v96 = vld [vmem:[%s1 + $0x8] sm:$0xff]
    %v97 = vld [vmem:[%s1 + $0x10] sm:$0xff]
    %v98 = vld [vmem:[%s1 + $0x18] sm:$0xff]
    %v99 = vld [vmem:[%s3] sm:$0xf]
    %v101 = vlaneseq
    %v102 = vshrl.u32 %v101, 7
    %v103 = vsub.s32 0, %v102
    %v104 = vrot.slane %v99, %v103
    %v105 = vlaneseq
    %v106 = vshrl.u32 %v105, 7
    %v107 = vsub.s32 1, %v106
    %v108 = vrot.slane %v99, %v107
    %v109 = vlaneseq
    %v110 = vshrl.u32 %v109, 7
    %v111 = vsub.s32 2, %v110
    %v112 = vrot.slane %v99, %v111
    %v113 = vlaneseq
    %v114 = vshrl.u32 %v113, 7
    %v115 = vsub.s32 3, %v114
    %v116 = vrot.slane %v99, %v115
    %v129 = vunpack.c.l.b16 %v87
    %v130 = vunpack.c.l.b16 %v88
    %v131 = vunpack.c.l.b16 %v89
    %v132 = vunpack.c.l.b16 %v90
    %v133 = vunpack.c.l.b16 %v91
    %v134 = vunpack.c.l.b16 %v92
    %v135 = vunpack.c.l.b16 %v93
    %v136 = vunpack.c.l.b16 %v94
    %v137 = vpack.c.b16 %v130, %v129
    %v138 = vpack.c.b16 %v132, %v131
    %v139 = vpack.c.b16 %v134, %v133
    %v140 = vpack.c.b16 %v136, %v135
    %v145 = vunpack.c.l.b16 %v95
    %v146 = vunpack.c.h.b16 %v95
    %v147 = vunpack.c.l.b16 %v96
    %v148 = vunpack.c.h.b16 %v96
    %v149 = vunpack.c.l.b16 %v97
    %v150 = vunpack.c.h.b16 %v97
    %v151 = vunpack.c.l.b16 %v98
    %v152 = vunpack.c.h.b16 %v98
    %v153 = vpack.c.b16 %v149, %v145
    %v154 = vpack.c.b16 %v150, %v146
    %v155 = vpack.c.b16 %v151, %v147
    %v156 = vpack.c.b16 %v152, %v148
    %vm161 = vcmask 130048
    %v163 = vsel %vm161, %v137, 0
    %v166 = vsel %vm161, %v138, 0
    %v169 = vsel %vm161, %v139, 0
    %v172 = vsel %vm161, %v140, 0
    %174 = vmatprep.subr.bf16.mxu0 0
    %175 = vmatpush1.bf16.msra.mxu0 0
    %176 = vmatprep.subr.bf16.mxu0 0
    %177 = vmatpush1.bf16.msra.mxu0 0
    %178 = vmatprep.subr.bf16.mxu0 0
    %179 = vmatpush1.bf16.msra.mxu0 0
    %180 = vmatprep.subr.bf16.mxu0 0
    %181 = vmatpush1.bf16.msra.mxu0 0
    %182 = vmatprep.subr.bf16.mxu0 0
    %183 = vmatpush1.bf16.msra.mxu0 0
    %184 = vmatprep.subr.bf16.mxu0 0
    %185 = vmatpush1.bf16.msra.mxu0 0
    %186 = vmatprep.subr.bf16.mxu0 0
    %187 = vmatpush1.bf16.msra.mxu0 0
    %188 = vmatprep.subr.bf16.mxu0 %v154
    %189 = vmatpush1.bf16.msra.mxu0 %v153
    %190 = vmatprep.subr.bf16.mxu0 0
    %191 = vmatpush2.bf16.msra.mxu0 0
    %192 = vmatprep.subr.bf16.mxu0 0
    %193 = vmatpush2.bf16.msra.mxu0 0
    %194 = vmatprep.subr.bf16.mxu0 0
    %195 = vmatpush2.bf16.msra.mxu0 0
    %196 = vmatprep.subr.bf16.mxu0 0
    %197 = vmatpush2.bf16.msra.mxu0 0
    %198 = vmatprep.subr.bf16.mxu0 0
    %199 = vmatpush2.bf16.msra.mxu0 0
    %200 = vmatprep.subr.bf16.mxu0 0
    %201 = vmatpush2.bf16.msra.mxu0 0
    %202 = vmatprep.subr.bf16.mxu0 0
    %203 = vmatpush2.bf16.msra.mxu0 0
    %204 = vmatprep.subr.bf16.mxu0 0
    %205 = vmatpush2.bf16.msra.mxu0 0
    %206 = vmatprep.mubr.bf16.mxu0 0
    %207 = vmatmul.mubr.bf16.gmra.mxu0 %v163
    %v208 = vpop.f32.mrf.mxu0
    %v209 = vadd.f32 %v104, %v208
    %v210 = vpop.f32.mrf.mxu0
    %v211 = vadd.f32 %v108, %v210
    %v212 = vpop.f32.mrf.mxu0
    %v213 = vadd.f32 %v104, %v212
    %v214 = vpop.f32.mrf.mxu0
    %v215 = vadd.f32 %v108, %v214
    %216 = vmatprep.mubr.bf16.mxu0 0
    %217 = vmatmul.mubr.bf16.gmra.mxu0 %v166
    %v218 = vpop.f32.mrf.mxu0
    %v219 = vadd.f32 %v104, %v218
    %v220 = vpop.f32.mrf.mxu0
    %v221 = vadd.f32 %v108, %v220
    %v222 = vpop.f32.mrf.mxu0
    %v223 = vadd.f32 %v104, %v222
    %v224 = vpop.f32.mrf.mxu0
    %v225 = vadd.f32 %v108, %v224
    %226 = vmatprep.mubr.bf16.mxu0 0
    %227 = vmatmul.mubr.bf16.gmra.mxu0 %v169
    %v228 = vpop.f32.mrf.mxu0
    %v229 = vadd.f32 %v104, %v228
    %v230 = vpop.f32.mrf.mxu0
    %v231 = vadd.f32 %v108, %v230
    %v232 = vpop.f32.mrf.mxu0
    %v233 = vadd.f32 %v104, %v232
    %v234 = vpop.f32.mrf.mxu0
    %v235 = vadd.f32 %v108, %v234
    %236 = vmatprep.mubr.bf16.mxu0 0
    %237 = vmatmul.mubr.bf16.gmra.mxu0 %v172
    %v238 = vpop.f32.mrf.mxu0
    %v239 = vadd.f32 %v104, %v238
    %v240 = vpop.f32.mrf.mxu0
    %v241 = vadd.f32 %v108, %v240
    %v242 = vpop.f32.mrf.mxu0
    %v243 = vadd.f32 %v104, %v242
    %v244 = vpop.f32.mrf.mxu0
    %v245 = vadd.f32 %v108, %v244
    %246 = vdwg.mxu0
    %247 = vmatprep.subr.bf16.mxu0 0
    %248 = vmatpush1.bf16.msra.mxu0 0
    %249 = vmatprep.subr.bf16.mxu0 0
    %250 = vmatpush1.bf16.msra.mxu0 0
    %251 = vmatprep.subr.bf16.mxu0 0
    %252 = vmatpush1.bf16.msra.mxu0 0
    %253 = vmatprep.subr.bf16.mxu0 0
    %254 = vmatpush1.bf16.msra.mxu0 0
    %255 = vmatprep.subr.bf16.mxu0 0
    %256 = vmatpush1.bf16.msra.mxu0 0
    %257 = vmatprep.subr.bf16.mxu0 0
    %258 = vmatpush1.bf16.msra.mxu0 0
    %259 = vmatprep.subr.bf16.mxu0 0
    %260 = vmatpush1.bf16.msra.mxu0 0
    %261 = vmatprep.subr.bf16.mxu0 %v156
    %262 = vmatpush1.bf16.msra.mxu0 %v155
    %263 = vmatprep.subr.bf16.mxu0 0
    %264 = vmatpush2.bf16.msra.mxu0 0
    %265 = vmatprep.subr.bf16.mxu0 0
    %266 = vmatpush2.bf16.msra.mxu0 0
    %267 = vmatprep.subr.bf16.mxu0 0
    %268 = vmatpush2.bf16.msra.mxu0 0
    %269 = vmatprep.subr.bf16.mxu0 0
    %270 = vmatpush2.bf16.msra.mxu0 0
    %271 = vmatprep.subr.bf16.mxu0 0
    %272 = vmatpush2.bf16.msra.mxu0 0
    %273 = vmatprep.subr.bf16.mxu0 0
    %274 = vmatpush2.bf16.msra.mxu0 0
    %275 = vmatprep.subr.bf16.mxu0 0
    %276 = vmatpush2.bf16.msra.mxu0 0
    %277 = vmatprep.subr.bf16.mxu0 0
    %278 = vmatpush2.bf16.msra.mxu0 0
    %279 = vmatprep.mubr.bf16.mxu0 0
    %280 = vmatmul.mubr.bf16.gmra.mxu0 %v163
    %v281 = vpop.f32.mrf.mxu0
    %v282 = vadd.f32 %v112, %v281
    %v283 = vpop.f32.mrf.mxu0
    %v284 = vadd.f32 %v116, %v283
    %v285 = vpop.f32.mrf.mxu0
    %v286 = vadd.f32 %v112, %v285
    %v287 = vpop.f32.mrf.mxu0
    %v288 = vadd.f32 %v116, %v287
    %289 = vmatprep.mubr.bf16.mxu0 0
    %290 = vmatmul.mubr.bf16.gmra.mxu0 %v166
    %v291 = vpop.f32.mrf.mxu0
    %v292 = vadd.f32 %v112, %v291
    %v293 = vpop.f32.mrf.mxu0
    %v294 = vadd.f32 %v116, %v293
    %v295 = vpop.f32.mrf.mxu0
    %v296 = vadd.f32 %v112, %v295
    %v297 = vpop.f32.mrf.mxu0
    %v298 = vadd.f32 %v116, %v297
    %299 = vmatprep.mubr.bf16.mxu0 0
    %300 = vmatmul.mubr.bf16.gmra.mxu0 %v169
    %v301 = vpop.f32.mrf.mxu0
    %v302 = vadd.f32 %v112, %v301
    %v303 = vpop.f32.mrf.mxu0
    %v304 = vadd.f32 %v116, %v303
    %v305 = vpop.f32.mrf.mxu0
    %v306 = vadd.f32 %v112, %v305
    %v307 = vpop.f32.mrf.mxu0
    %v308 = vadd.f32 %v116, %v307
    %309 = vmatprep.mubr.bf16.mxu0 0
    %310 = vmatmul.mubr.bf16.gmra.mxu0 %v172
    %v311 = vpop.f32.mrf.mxu0
    %v312 = vadd.f32 %v112, %v311
    %v313 = vpop.f32.mrf.mxu0
    %v314 = vadd.f32 %v116, %v313
    %v315 = vpop.f32.mrf.mxu0
    %v316 = vadd.f32 %v112, %v315
    %v317 = vpop.f32.mrf.mxu0
    %v318 = vadd.f32 %v116, %v317
    %319 = vdwg.mxu0
    %320 = vst [vmem:[#allocation2] sm:$0xff] %v209
    %321 = vst [vmem:[#allocation2 + $0x8] sm:$0xff] %v211
    %322 = vst [vmem:[#allocation2 + $0x10] sm:$0xff] %v282
    %323 = vst [vmem:[#allocation2 + $0x18] sm:$0xff] %v284
    %324 = vst [vmem:[#allocation2 + $0x20] sm:$0xff] %v213
    %325 = vst [vmem:[#allocation2 + $0x28] sm:$0xff] %v215
    %326 = vst [vmem:[#allocation2 + $0x30] sm:$0xff] %v286
    %327 = vst [vmem:[#allocation2 + $0x38] sm:$0xff] %v288
    %328 = vst [vmem:[#allocation2 + $0x40] sm:$0xff] %v219
    %329 = vst [vmem:[#allocation2 + $0x48] sm:$0xff] %v221
    %330 = vst [vmem:[#allocation2 + $0x50] sm:$0xff] %v292
    %331 = vst [vmem:[#allocation2 + $0x58] sm:$0xff] %v294
    %332 = vst [vmem:[#allocation2 + $0x60] sm:$0xff] %v223
    %333 = vst [vmem:[#allocation2 + $0x68] sm:$0xff] %v225
    %334 = vst [vmem:[#allocation2 + $0x70] sm:$0xff] %v296
    %335 = vst [vmem:[#allocation2 + $0x78] sm:$0xff] %v298
    %336 = vst [vmem:[#allocation2 + $0x80] sm:$0xff] %v229
    %337 = vst [vmem:[#allocation2 + $0x88] sm:$0xff] %v231
    %338 = vst [vmem:[#allocation2 + $0x90] sm:$0xff] %v302
    %339 = vst [vmem:[#allocation2 + $0x98] sm:$0xff] %v304
    %340 = vst [vmem:[#allocation2 + $0xa0] sm:$0xff] %v233
    %341 = vst [vmem:[#allocation2 + $0xa8] sm:$0xff] %v235
    %342 = vst [vmem:[#allocation2 + $0xb0] sm:$0xff] %v306
    %343 = vst [vmem:[#allocation2 + $0xb8] sm:$0xff] %v308
    %344 = vst [vmem:[#allocation2 + $0xc0] sm:$0xff] %v239
    %345 = vst [vmem:[#allocation2 + $0xc8] sm:$0xff] %v241
    %346 = vst [vmem:[#allocation2 + $0xd0] sm:$0xff] %v312
    %347 = vst [vmem:[#allocation2 + $0xd8] sm:$0xff] %v314
    %348 = vst [vmem:[#allocation2 + $0xe0] sm:$0xff] %v243
    %349 = vst [vmem:[#allocation2 + $0xe8] sm:$0xff] %v245
    %350 = vst [vmem:[#allocation2 + $0xf0] sm:$0xff] %v316
    %351 = vst [vmem:[#allocation2 + $0xf8] sm:$0xff] %v318
    %v352 = vld [vmem:[#allocation3] sm:$0xff]
    %v353 = vld [vmem:[#allocation3 + $0x8] sm:$0xff]
    %v354 = vld [vmem:[#allocation3 + $0x10] sm:$0xff]
    %v355 = vld [vmem:[#allocation3 + $0x18] sm:$0xff]
    %v356 = vld [vmem:[#allocation3 + $0x20] sm:$0xff]
    %v357 = vld [vmem:[#allocation3 + $0x28] sm:$0xff]
    %v358 = vld [vmem:[#allocation3 + $0x30] sm:$0xff]
    %v359 = vld [vmem:[#allocation3 + $0x38] sm:$0xff]
    %v360 = vld [vmem:[#allocation3 + $0x40] sm:$0xff]
    %v361 = vld [vmem:[#allocation3 + $0x48] sm:$0xff]
    %v362 = vld [vmem:[#allocation3 + $0x50] sm:$0xff]
    %v363 = vld [vmem:[#allocation3 + $0x58] sm:$0xff]
    %v364 = vld [vmem:[#allocation3 + $0x60] sm:$0xff]
    %v365 = vld [vmem:[#allocation3 + $0x68] sm:$0xff]
    %v366 = vld [vmem:[#allocation3 + $0x70] sm:$0xff]
    %v367 = vld [vmem:[#allocation3 + $0x78] sm:$0xff]
    %v368 = vld [vmem:[#allocation3 + $0x80] sm:$0xff]
    %v369 = vld [vmem:[#allocation3 + $0x88] sm:$0xff]
    %v370 = vld [vmem:[#allocation3 + $0x90] sm:$0xff]
    %v371 = vld [vmem:[#allocation3 + $0x98] sm:$0xff]
    %v372 = vld [vmem:[#allocation3 + $0xa0] sm:$0xff]
    %v373 = vld [vmem:[#allocation3 + $0xa8] sm:$0xff]
    %v374 = vld [vmem:[#allocation3 + $0xb0] sm:$0xff]
    %v375 = vld [vmem:[#allocation3 + $0xb8] sm:$0xff]
    %v376 = vld [vmem:[#allocation3 + $0xc0] sm:$0xff]
    %v377 = vld [vmem:[#allocation3 + $0xc8] sm:$0xff]
    %v378 = vld [vmem:[#allocation3 + $0xd0] sm:$0xff]
    %v379 = vld [vmem:[#allocation3 + $0xd8] sm:$0xff]
    %v380 = vld [vmem:[#allocation3 + $0xe0] sm:$0xff]
    %v381 = vld [vmem:[#allocation3 + $0xe8] sm:$0xff]
    %v382 = vld [vmem:[#allocation3 + $0xf0] sm:$0xff]
    %v383 = vld [vmem:[#allocation3 + $0xf8] sm:$0xff]
    %v384 = vld [vmem:[#allocation6] sm:$0xff]
    %v385 = vld [vmem:[#allocation6 + $0x8] sm:$0xff]
    %v386 = vld [vmem:[#allocation6 + $0x10] sm:$0xff]
    %v387 = vld [vmem:[#allocation6 + $0x18] sm:$0xff]
    %v388 = vld [vmem:[#allocation6 + $0x20] sm:$0xff]
    %v389 = vld [vmem:[#allocation6 + $0x28] sm:$0xff]
    %v390 = vld [vmem:[#allocation6 + $0x30] sm:$0xff]
    %v391 = vld [vmem:[#allocation6 + $0x38] sm:$0xff]
    %v392 = vld [vmem:[#allocation6 + $0x40] sm:$0xff]
    %v393 = vld [vmem:[#allocation6 + $0x48] sm:$0xff]
    %v394 = vld [vmem:[#allocation6 + $0x50] sm:$0xff]
    %v395 = vld [vmem:[#allocation6 + $0x58] sm:$0xff]
    %v396 = vld [vmem:[#allocation6 + $0x60] sm:$0xff]
    %v397 = vld [vmem:[#allocation6 + $0x68] sm:$0xff]
    %v398 = vld [vmem:[#allocation6 + $0x70] sm:$0xff]
    %v399 = vld [vmem:[#allocation6 + $0x78] sm:$0xff]
    %v400 = vld [vmem:[#allocation6 + $0x80] sm:$0xff]
    %v401 = vld [vmem:[#allocation6 + $0x88] sm:$0xff]
    %v402 = vld [vmem:[#allocation6 + $0x90] sm:$0xff]
    %v403 = vld [vmem:[#allocation6 + $0x98] sm:$0xff]
    %v404 = vld [vmem:[#allocation6 + $0xa0] sm:$0xff]
    %v405 = vld [vmem:[#allocation6 + $0xa8] sm:$0xff]
    %v406 = vld [vmem:[#allocation6 + $0xb0] sm:$0xff]
    %v407 = vld [vmem:[#allocation6 + $0xb8] sm:$0xff]
    %v408 = vld [vmem:[#allocation6 + $0xc0] sm:$0xff]
    %v409 = vld [vmem:[#allocation6 + $0xc8] sm:$0xff]
    %v410 = vld [vmem:[#allocation6 + $0xd0] sm:$0xff]
    %v411 = vld [vmem:[#allocation6 + $0xd8] sm:$0xff]
    %v412 = vld [vmem:[#allocation6 + $0xe0] sm:$0xff]
    %v413 = vld [vmem:[#allocation6 + $0xe8] sm:$0xff]
    %v414 = vld [vmem:[#allocation6 + $0xf0] sm:$0xff]
    %v415 = vld [vmem:[#allocation6 + $0xf8] sm:$0xff]
    %v416 = vld [vmem:[#allocation8] sm:$0xff]
    %v417 = vld [vmem:[#allocation8 + $0x8] sm:$0xff]
    %v418 = vld [vmem:[#allocation8 + $0x10] sm:$0xff]
    %v419 = vld [vmem:[#allocation8 + $0x18] sm:$0xff]
    %v420 = vld [vmem:[#allocation8 + $0x20] sm:$0xff]
    %v421 = vld [vmem:[#allocation8 + $0x28] sm:$0xff]
    %v422 = vld [vmem:[#allocation8 + $0x30] sm:$0xff]
    %v423 = vld [vmem:[#allocation8 + $0x38] sm:$0xff]
    %v424 = vld [vmem:[#allocation8 + $0x40] sm:$0xff]
    %v425 = vld [vmem:[#allocation8 + $0x48] sm:$0xff]
    %v426 = vld [vmem:[#allocation8 + $0x50] sm:$0xff]
    %v427 = vld [vmem:[#allocation8 + $0x58] sm:$0xff]
    %v428 = vld [vmem:[#allocation8 + $0x60] sm:$0xff]
    %v429 = vld [vmem:[#allocation8 + $0x68] sm:$0xff]
    %v430 = vld [vmem:[#allocation8 + $0x70] sm:$0xff]
    %v431 = vld [vmem:[#allocation8 + $0x78] sm:$0xff]
    %v432 = vld [vmem:[#allocation8 + $0x80] sm:$0xff]
    %v433 = vld [vmem:[#allocation8 + $0x88] sm:$0xff]
    %v434 = vld [vmem:[#allocation8 + $0x90] sm:$0xff]
    %v435 = vld [vmem:[#allocation8 + $0x98] sm:$0xff]
    %v436 = vld [vmem:[#allocation8 + $0xa0] sm:$0xff]
    %v437 = vld [vmem:[#allocation8 + $0xa8] sm:$0xff]
    %v438 = vld [vmem:[#allocation8 + $0xb0] sm:$0xff]
    %v439 = vld [vmem:[#allocation8 + $0xb8] sm:$0xff]
    %v440 = vld [vmem:[#allocation8 + $0xc0] sm:$0xff]
    %v441 = vld [vmem:[#allocation8 + $0xc8] sm:$0xff]
    %v442 = vld [vmem:[#allocation8 + $0xd0] sm:$0xff]
    %v443 = vld [vmem:[#allocation8 + $0xd8] sm:$0xff]
    %v444 = vld [vmem:[#allocation8 + $0xe0] sm:$0xff]
    %v445 = vld [vmem:[#allocation8 + $0xe8] sm:$0xff]
    %v446 = vld [vmem:[#allocation8 + $0xf0] sm:$0xff]
    %v447 = vld [vmem:[#allocation8 + $0xf8] sm:$0xff]
    %v448 = vld [vmem:[%s6] sm:$0xf]
    %v450 = vlaneseq
    %v451 = vshrl.u32 %v450, 7
    %v452 = vsub.s32 0, %v451
    %v453 = vrot.slane %v448, %v452
    %v454 = vlaneseq
    %v455 = vshrl.u32 %v454, 7
    %v456 = vsub.s32 1, %v455
    %v457 = vrot.slane %v448, %v456
    %v458 = vlaneseq
    %v459 = vshrl.u32 %v458, 7
    %v460 = vsub.s32 2, %v459
    %v461 = vrot.slane %v448, %v460
    %v462 = vlaneseq
    %v463 = vshrl.u32 %v462, 7
    %v464 = vsub.s32 3, %v463
    %v465 = vrot.slane %v448, %v464
    %v470 = vld [vmem:[#allocation2] sm:$0xff]
    %v471 = vld [vmem:[#allocation2 + $0x8] sm:$0xff]
    %v472 = vld [vmem:[#allocation2 + $0x10] sm:$0xff]
    %v473 = vld [vmem:[#allocation2 + $0x18] sm:$0xff]
    %v506 = vunpack.c.l.b16 %v352
    %v507 = vunpack.c.h.b16 %v352
    %v508 = vunpack.c.l.b16 %v353
    %v509 = vunpack.c.h.b16 %v353
    %v510 = vunpack.c.l.b16 %v354
    %v511 = vunpack.c.h.b16 %v354
    %v512 = vunpack.c.l.b16 %v355
    %v513 = vunpack.c.h.b16 %v355
    %v514 = vunpack.c.l.b16 %v356
    %v515 = vunpack.c.h.b16 %v356
    %v516 = vunpack.c.l.b16 %v357
    %v517 = vunpack.c.h.b16 %v357
    %v518 = vunpack.c.l.b16 %v358
    %v519 = vunpack.c.h.b16 %v358
    %v520 = vunpack.c.l.b16 %v359
    %v521 = vunpack.c.h.b16 %v359
    %v522 = vunpack.c.l.b16 %v360
    %v523 = vunpack.c.h.b16 %v360
    %v524 = vunpack.c.l.b16 %v361
    %v525 = vunpack.c.h.b16 %v361
    %v526 = vunpack.c.l.b16 %v362
    %v527 = vunpack.c.h.b16 %v362
    %v528 = vunpack.c.l.b16 %v363
    %v529 = vunpack.c.h.b16 %v363
    %v530 = vunpack.c.l.b16 %v364
    %v531 = vunpack.c.h.b16 %v364
    %v532 = vunpack.c.l.b16 %v365
    %v533 = vunpack.c.h.b16 %v365
    %v534 = vunpack.c.l.b16 %v366
    %v535 = vunpack.c.h.b16 %v366
    %v536 = vunpack.c.l.b16 %v367
    %v537 = vunpack.c.h.b16 %v367
    %v538 = vunpack.c.l.b16 %v368
    %v539 = vunpack.c.h.b16 %v368
    %v540 = vunpack.c.l.b16 %v369
    %v541 = vunpack.c.h.b16 %v369
    %v542 = vunpack.c.l.b16 %v370
    %v543 = vunpack.c.h.b16 %v370
    %v544 = vunpack.c.l.b16 %v371
    %v545 = vunpack.c.h.b16 %v371
    %v546 = vunpack.c.l.b16 %v372
    %v547 = vunpack.c.h.b16 %v372
    %v548 = vunpack.c.l.b16 %v373
    %v549 = vunpack.c.h.b16 %v373
    %v550 = vunpack.c.l.b16 %v374
    %v551 = vunpack.c.h.b16 %v374
    %v552 = vunpack.c.l.b16 %v375
    %v553 = vunpack.c.h.b16 %v375
    %v554 = vunpack.c.l.b16 %v376
    %v555 = vunpack.c.h.b16 %v376
    %v556 = vunpack.c.l.b16 %v377
    %v557 = vunpack.c.h.b16 %v377
    %v558 = vunpack.c.l.b16 %v378
    %v559 = vunpack.c.h.b16 %v378
    %v560 = vunpack.c.l.b16 %v379
    %v561 = vunpack.c.h.b16 %v379
    %v562 = vunpack.c.l.b16 %v380
    %v563 = vunpack.c.h.b16 %v380
    %v564 = vunpack.c.l.b16 %v381
    %v565 = vunpack.c.h.b16 %v381
    %v566 = vunpack.c.l.b16 %v382
    %v567 = vunpack.c.h.b16 %v382
    %v568 = vunpack.c.l.b16 %v383
    %v569 = vunpack.c.h.b16 %v383
    %v570 = vpack.c.b16 %v510, %v506
    %v571 = vpack.c.b16 %v511, %v507
    %v572 = vpack.c.b16 %v512, %v508
    %v573 = vpack.c.b16 %v513, %v509
    %v574 = vpack.c.b16 %v518, %v514
    %v575 = vpack.c.b16 %v519, %v515
    %v576 = vpack.c.b16 %v520, %v516
    %v577 = vpack.c.b16 %v521, %v517
    %v578 = vpack.c.b16 %v526, %v522
    %v579 = vpack.c.b16 %v527, %v523
    %v580 = vpack.c.b16 %v528, %v524
    %v581 = vpack.c.b16 %v529, %v525
    %v582 = vpack.c.b16 %v534, %v530
    %v583 = vpack.c.b16 %v535, %v531
    %v584 = vpack.c.b16 %v536, %v532
    %v585 = vpack.c.b16 %v537, %v533
    %v586 = vpack.c.b16 %v542, %v538
    %v587 = vpack.c.b16 %v543, %v539
    %v588 = vpack.c.b16 %v544, %v540
    %v589 = vpack.c.b16 %v545, %v541
    %v590 = vpack.c.b16 %v550, %v546
    %v591 = vpack.c.b16 %v551, %v547
    %v592 = vpack.c.b16 %v552, %v548
    %v593 = vpack.c.b16 %v553, %v549
    %v594 = vpack.c.b16 %v558, %v554
    %v595 = vpack.c.b16 %v559, %v555
    %v596 = vpack.c.b16 %v560, %v556
    %v597 = vpack.c.b16 %v561, %v557
    %v598 = vpack.c.b16 %v566, %v562
    %v599 = vpack.c.b16 %v567, %v563
    %v600 = vpack.c.b16 %v568, %v564
    %v601 = vpack.c.b16 %v569, %v565
    %634 = vmatprep.subr.bf16.mxu0 %v599
    %635 = vmatpush1.bf16.msra.mxu0 %v598
    %636 = vmatprep.subr.bf16.mxu0 %v595
    %637 = vmatpush1.bf16.msra.mxu0 %v594
    %638 = vmatprep.subr.bf16.mxu0 %v591
    %639 = vmatpush1.bf16.msra.mxu0 %v590
    %640 = vmatprep.subr.bf16.mxu0 %v587
    %641 = vmatpush1.bf16.msra.mxu0 %v586
    %642 = vmatprep.subr.bf16.mxu0 %v583
    %643 = vmatpush1.bf16.msra.mxu0 %v582
    %644 = vmatprep.subr.bf16.mxu0 %v579
    %645 = vmatpush1.bf16.msra.mxu0 %v578
    %646 = vmatprep.subr.bf16.mxu0 %v575
    %647 = vmatpush1.bf16.msra.mxu0 %v574
    %648 = vmatprep.subr.bf16.mxu0 %v571
    %649 = vmatpush1.bf16.msra.mxu0 %v570
    %650 = vmatprep.subr.bf16.mxu0 0
    %651 = vmatpush2.bf16.msra.mxu0 0
    %652 = vmatprep.subr.bf16.mxu0 0
    %653 = vmatpush2.bf16.msra.mxu0 0
    %654 = vmatprep.subr.bf16.mxu0 0
    %655 = vmatpush2.bf16.msra.mxu0 0
    %656 = vmatprep.subr.bf16.mxu0 0
    %657 = vmatpush2.bf16.msra.mxu0 0
    %658 = vmatprep.subr.bf16.mxu0 0
    %659 = vmatpush2.bf16.msra.mxu0 0
    %660 = vmatprep.subr.bf16.mxu0 0
    %661 = vmatpush2.bf16.msra.mxu0 0
    %662 = vmatprep.subr.bf16.mxu0 0
    %663 = vmatpush2.bf16.msra.mxu0 0
    %664 = vmatprep.subr.bf16.mxu0 0
    %665 = vmatpush2.bf16.msra.mxu0 0
    %666 = vmatprep.mubr.bf16.mxu0 0
    %667 = vmatmul.mubr.bf16.gmra.mxu0 0
    %v668 = vpop.f32.mrf.mxu0
    %v669 = vadd.f32 0.0, %v668
    %v670 = vpop.f32.mrf.mxu0
    %v671 = vadd.f32 0.0, %v670
    %v672 = vpop.f32.mrf.mxu0
    %v673 = vpop.f32.mrf.mxu0
    %674 = vdwg.mxu0
    %675 = vmatprep.subr.bf16.mxu0 %v601
    %676 = vmatpush1.bf16.msra.mxu0 %v600
    %677 = vmatprep.subr.bf16.mxu0 %v597
    %678 = vmatpush1.bf16.msra.mxu0 %v596
    %679 = vmatprep.subr.bf16.mxu0 %v593
    %680 = vmatpush1.bf16.msra.mxu0 %v592
    %681 = vmatprep.subr.bf16.mxu0 %v589
    %682 = vmatpush1.bf16.msra.mxu0 %v588
    %683 = vmatprep.subr.bf16.mxu0 %v585
    %684 = vmatpush1.bf16.msra.mxu0 %v584
    %685 = vmatprep.subr.bf16.mxu0 %v581
    %686 = vmatpush1.bf16.msra.mxu0 %v580
    %687 = vmatprep.subr.bf16.mxu0 %v577
    %688 = vmatpush1.bf16.msra.mxu0 %v576
    %689 = vmatprep.subr.bf16.mxu0 %v573
    %690 = vmatpush1.bf16.msra.mxu0 %v572
    %691 = vmatprep.subr.bf16.mxu0 0
    %692 = vmatpush2.bf16.msra.mxu0 0
    %693 = vmatprep.subr.bf16.mxu0 0
    %694 = vmatpush2.bf16.msra.mxu0 0
    %695 = vmatprep.subr.bf16.mxu0 0
    %696 = vmatpush2.bf16.msra.mxu0 0
    %697 = vmatprep.subr.bf16.mxu0 0
    %698 = vmatpush2.bf16.msra.mxu0 0
    %699 = vmatprep.subr.bf16.mxu0 0
    %700 = vmatpush2.bf16.msra.mxu0 0
    %701 = vmatprep.subr.bf16.mxu0 0
    %702 = vmatpush2.bf16.msra.mxu0 0
    %703 = vmatprep.subr.bf16.mxu0 0
    %704 = vmatpush2.bf16.msra.mxu0 0
    %705 = vmatprep.subr.bf16.mxu0 0
    %706 = vmatpush2.bf16.msra.mxu0 0
    %707 = vmatprep.mubr.bf16.mxu0 0
    %708 = vmatmul.mubr.bf16.gmra.mxu0 0
    %v709 = vpop.f32.mrf.mxu0
    %v710 = vadd.f32 0.0, %v709
    %v711 = vpop.f32.mrf.mxu0
    %v712 = vadd.f32 0.0, %v711
    %v713 = vpop.f32.mrf.mxu0
    %v714 = vpop.f32.mrf.mxu0
    %715 = vdwg.mxu0
    %v716 = vadd.f32 %v470, %v669
    %v717 = vadd.f32 %v471, %v671
    %v718 = vadd.f32 %v472, %v710
    %v719 = vadd.f32 %v473, %v712
    %v720 = vmul.f32 %v716, 0.5
    %v721 = vmul.f32 %v717, 0.5
    %v722 = vmul.f32 %v718, 0.5
    %v723 = vtanh.pop %v720
    %v724 = vtanh.pop %v721
    %v725 = vtanh.pop %v722
    %v726 = vmul.f32 %v723, 0.5
    %v727 = vmul.f32 %v724, 0.5
    %v728 = vmul.f32 %v725, 0.5
    %v729 = vadd.f32 %v726, 0.5
    %v730 = vadd.f32 %v727, 0.5
    %v731 = vadd.f32 %v728, 0.5
    %v732 = vtanh.pop %v719
    %v733 = vmul.f32 %v730, 0.0
    %v734 = vmul.f32 %v729, %v732
    %v735 = vadd.f32 %v733, %v734
    %v736 = vtanh.pop %v735
    %v737 = vmul.f32 %v731, %v736
    %v738 = vpack.c.bf16 %v737, %v737
    %v771 = vunpack.c.l.b16 %v384
    %v772 = vunpack.c.h.b16 %v384
    %v773 = vunpack.c.l.b16 %v385
    %v774 = vunpack.c.h.b16 %v385
    %v775 = vunpack.c.l.b16 %v386
    %v776 = vunpack.c.h.b16 %v386
    %v777 = vunpack.c.l.b16 %v387
    %v778 = vunpack.c.h.b16 %v387
    %v779 = vunpack.c.l.b16 %v388
    %v780 = vunpack.c.h.b16 %v388
    %v781 = vunpack.c.l.b16 %v389
    %v782 = vunpack.c.h.b16 %v389
    %v783 = vunpack.c.l.b16 %v390
    %v784 = vunpack.c.h.b16 %v390
    %v785 = vunpack.c.l.b16 %v391
    %v786 = vunpack.c.h.b16 %v391
    %v787 = vunpack.c.l.b16 %v392
    %v788 = vunpack.c.h.b16 %v392
    %v789 = vunpack.c.l.b16 %v393
    %v790 = vunpack.c.h.b16 %v393
    %v791 = vunpack.c.l.b16 %v394
    %v792 = vunpack.c.h.b16 %v394
    %v793 = vunpack.c.l.b16 %v395
    %v794 = vunpack.c.h.b16 %v395
    %v795 = vunpack.c.l.b16 %v396
    %v796 = vunpack.c.h.b16 %v396
    %v797 = vunpack.c.l.b16 %v397
    %v798 = vunpack.c.h.b16 %v397
    %v799 = vunpack.c.l.b16 %v398
    %v800 = vunpack.c.h.b16 %v398
    %v801 = vunpack.c.l.b16 %v399
    %v802 = vunpack.c.h.b16 %v399
    %v803 = vunpack.c.l.b16 %v400
    %v804 = vunpack.c.h.b16 %v400
    %v805 = vunpack.c.l.b16 %v401
    %v806 = vunpack.c.h.b16 %v401
    %v807 = vunpack.c.l.b16 %v402
    %v808 = vunpack.c.h.b16 %v402
    %v809 = vunpack.c.l.b16 %v403
    %v810 = vunpack.c.h.b16 %v403
    %v811 = vunpack.c.l.b16 %v404
    %v812 = vunpack.c.h.b16 %v404
    %v813 = vunpack.c.l.b16 %v405
    %v814 = vunpack.c.h.b16 %v405
    %v815 = vunpack.c.l.b16 %v406
    %v816 = vunpack.c.h.b16 %v406
    %v817 = vunpack.c.l.b16 %v407
    %v818 = vunpack.c.h.b16 %v407
    %v819 = vunpack.c.l.b16 %v408
    %v820 = vunpack.c.h.b16 %v408
    %v821 = vunpack.c.l.b16 %v409
    %v822 = vunpack.c.h.b16 %v409
    %v823 = vunpack.c.l.b16 %v410
    %v824 = vunpack.c.h.b16 %v410
    %v825 = vunpack.c.l.b16 %v411
    %v826 = vunpack.c.h.b16 %v411
    %v827 = vunpack.c.l.b16 %v412
    %v828 = vunpack.c.h.b16 %v412
    %v829 = vunpack.c.l.b16 %v413
    %v830 = vunpack.c.h.b16 %v413
    %v831 = vunpack.c.l.b16 %v414
    %v832 = vunpack.c.h.b16 %v414
    %v833 = vunpack.c.l.b16 %v415
    %v834 = vunpack.c.h.b16 %v415
    %v835 = vpack.c.b16 %v775, %v771
    %v836 = vpack.c.b16 %v776, %v772
    %v837 = vpack.c.b16 %v777, %v773
    %v838 = vpack.c.b16 %v778, %v774
    %v839 = vpack.c.b16 %v783, %v779
    %v840 = vpack.c.b16 %v784, %v780
    %v841 = vpack.c.b16 %v785, %v781
    %v842 = vpack.c.b16 %v786, %v782
    %v843 = vpack.c.b16 %v791, %v787
    %v844 = vpack.c.b16 %v792, %v788
    %v845 = vpack.c.b16 %v793, %v789
    %v846 = vpack.c.b16 %v794, %v790
    %v847 = vpack.c.b16 %v799, %v795
    %v848 = vpack.c.b16 %v800, %v796
    %v849 = vpack.c.b16 %v801, %v797
    %v850 = vpack.c.b16 %v802, %v798
    %v851 = vpack.c.b16 %v807, %v803
    %v852 = vpack.c.b16 %v808, %v804
    %v853 = vpack.c.b16 %v809, %v805
    %v854 = vpack.c.b16 %v810, %v806
    %v855 = vpack.c.b16 %v815, %v811
    %v856 = vpack.c.b16 %v816, %v812
    %v857 = vpack.c.b16 %v817, %v813
    %v858 = vpack.c.b16 %v818, %v814
    %v859 = vpack.c.b16 %v823, %v819
    %v860 = vpack.c.b16 %v824, %v820
    %v861 = vpack.c.b16 %v825, %v821
    %v862 = vpack.c.b16 %v826, %v822
    %v863 = vpack.c.b16 %v831, %v827
    %v864 = vpack.c.b16 %v832, %v828
    %v865 = vpack.c.b16 %v833, %v829
    %v866 = vpack.c.b16 %v834, %v830
    %899 = vmatprep.subr.bf16.mxu0 %v864
    %900 = vmatpush1.bf16.msra.mxu0 %v863
    %901 = vmatprep.subr.bf16.mxu0 %v860
    %902 = vmatpush1.bf16.msra.mxu0 %v859
    %903 = vmatprep.subr.bf16.mxu0 %v856
    %904 = vmatpush1.bf16.msra.mxu0 %v855
    %905 = vmatprep.subr.bf16.mxu0 %v852
    %906 = vmatpush1.bf16.msra.mxu0 %v851
    %907 = vmatprep.subr.bf16.mxu0 %v848
    %908 = vmatpush1.bf16.msra.mxu0 %v847
    %909 = vmatprep.subr.bf16.mxu0 %v844
    %910 = vmatpush1.bf16.msra.mxu0 %v843
    %911 = vmatprep.subr.bf16.mxu0 %v840
    %912 = vmatpush1.bf16.msra.mxu0 %v839
    %913 = vmatprep.subr.bf16.mxu0 %v836
    %914 = vmatpush1.bf16.msra.mxu0 %v835
    %915 = vmatprep.subr.bf16.mxu0 0
    %916 = vmatpush2.bf16.msra.mxu0 0
    %917 = vmatprep.subr.bf16.mxu0 0
    %918 = vmatpush2.bf16.msra.mxu0 0
    %919 = vmatprep.subr.bf16.mxu0 0
    %920 = vmatpush2.bf16.msra.mxu0 0
    %921 = vmatprep.subr.bf16.mxu0 0
    %922 = vmatpush2.bf16.msra.mxu0 0
    %923 = vmatprep.subr.bf16.mxu0 0
    %924 = vmatpush2.bf16.msra.mxu0 0
    %925 = vmatprep.subr.bf16.mxu0 0
    %926 = vmatpush2.bf16.msra.mxu0 0
    %927 = vmatprep.subr.bf16.mxu0 0
    %928 = vmatpush2.bf16.msra.mxu0 0
    %929 = vmatprep.subr.bf16.mxu0 0
    %930 = vmatpush2.bf16.msra.mxu0 0
    %931 = vmatprep.mubr.bf16.mxu0 0
    %932 = vmatmul.mubr.bf16.gmra.mxu0 %v738
    %v933 = vpop.f32.mrf.mxu0
    %v934 = vadd.f32 0.0, %v933
    %v935 = vpop.f32.mrf.mxu0
    %v936 = vadd.f32 0.0, %v935
    %v937 = vpop.f32.mrf.mxu0
    %v938 = vpop.f32.mrf.mxu0
    %939 = vdwg.mxu0
    %940 = vmatprep.subr.bf16.mxu0 %v866
    %941 = vmatpush1.bf16.msra.mxu0 %v865
    %942 = vmatprep.subr.bf16.mxu0 %v862
    %943 = vmatpush1.bf16.msra.mxu0 %v861
    %944 = vmatprep.subr.bf16.mxu0 %v858
    %945 = vmatpush1.bf16.msra.mxu0 %v857
    %946 = vmatprep.subr.bf16.mxu0 %v854
    %947 = vmatpush1.bf16.msra.mxu0 %v853
    %948 = vmatprep.subr.bf16.mxu0 %v850
    %949 = vmatpush1.bf16.msra.mxu0 %v849
    %950 = vmatprep.subr.bf16.mxu0 %v846
    %951 = vmatpush1.bf16.msra.mxu0 %v845
    %952 = vmatprep.subr.bf16.mxu0 %v842
    %953 = vmatpush1.bf16.msra.mxu0 %v841
    %954 = vmatprep.subr.bf16.mxu0 %v838
    %955 = vmatpush1.bf16.msra.mxu0 %v837
    %956 = vmatprep.subr.bf16.mxu0 0
    %957 = vmatpush2.bf16.msra.mxu0 0
    %958 = vmatprep.subr.bf16.mxu0 0
    %959 = vmatpush2.bf16.msra.mxu0 0
    %960 = vmatprep.subr.bf16.mxu0 0
    %961 = vmatpush2.bf16.msra.mxu0 0
    %962 = vmatprep.subr.bf16.mxu0 0
    %963 = vmatpush2.bf16.msra.mxu0 0
    %964 = vmatprep.subr.bf16.mxu0 0
    %965 = vmatpush2.bf16.msra.mxu0 0
    %966 = vmatprep.subr.bf16.mxu0 0
    %967 = vmatpush2.bf16.msra.mxu0 0
    %968 = vmatprep.subr.bf16.mxu0 0
    %969 = vmatpush2.bf16.msra.mxu0 0
    %970 = vmatprep.subr.bf16.mxu0 0
    %971 = vmatpush2.bf16.msra.mxu0 0
    %972 = vmatprep.mubr.bf16.mxu0 0
    %973 = vmatmul.mubr.bf16.gmra.mxu0 %v738
    %v974 = vpop.f32.mrf.mxu0
    %v975 = vadd.f32 0.0, %v974
    %v976 = vpop.f32.mrf.mxu0
    %v977 = vadd.f32 0.0, %v976
    %v978 = vpop.f32.mrf.mxu0
    %v979 = vpop.f32.mrf.mxu0
    %980 = vdwg.mxu0
    %v1013 = vunpack.c.l.b16 %v416
    %v1014 = vunpack.c.h.b16 %v416
    %v1015 = vunpack.c.l.b16 %v417
    %v1016 = vunpack.c.h.b16 %v417
    %v1017 = vunpack.c.l.b16 %v418
    %v1018 = vunpack.c.h.b16 %v418
    %v1019 = vunpack.c.l.b16 %v419
    %v1020 = vunpack.c.h.b16 %v419
    %v1021 = vunpack.c.l.b16 %v420
    %v1022 = vunpack.c.h.b16 %v420
    %v1023 = vunpack.c.l.b16 %v421
    %v1024 = vunpack.c.h.b16 %v421
    %v1025 = vunpack.c.l.b16 %v422
    %v1026 = vunpack.c.h.b16 %v422
    %v1027 = vunpack.c.l.b16 %v423
    %v1028 = vunpack.c.h.b16 %v423
    %v1029 = vunpack.c.l.b16 %v424
    %v1030 = vunpack.c.h.b16 %v424
    %v1031 = vunpack.c.l.b16 %v425
    %v1032 = vunpack.c.h.b16 %v425
    %v1033 = vunpack.c.l.b16 %v426
    %v1034 = vunpack.c.h.b16 %v426
    %v1035 = vunpack.c.l.b16 %v427
    %v1036 = vunpack.c.h.b16 %v427
    %v1037 = vunpack.c.l.b16 %v428
    %v1038 = vunpack.c.h.b16 %v428
    %v1039 = vunpack.c.l.b16 %v429
    %v1040 = vunpack.c.h.b16 %v429
    %v1041 = vunpack.c.l.b16 %v430
    %v1042 = vunpack.c.h.b16 %v430
    %v1043 = vunpack.c.l.b16 %v431
    %v1044 = vunpack.c.h.b16 %v431
    %v1045 = vunpack.c.l.b16 %v432
    %v1046 = vunpack.c.h.b16 %v432
    %v1047 = vunpack.c.l.b16 %v433
    %v1048 = vunpack.c.h.b16 %v433
    %v1049 = vunpack.c.l.b16 %v434
    %v1050 = vunpack.c.h.b16 %v434
    %v1051 = vunpack.c.l.b16 %v435
    %v1052 = vunpack.c.h.b16 %v435
    %v1053 = vunpack.c.l.b16 %v436
    %v1054 = vunpack.c.h.b16 %v436
    %v1055 = vunpack.c.l.b16 %v437
    %v1056 = vunpack.c.h.b16 %v437
    %v1057 = vunpack.c.l.b16 %v438
    %v1058 = vunpack.c.h.b16 %v438
    %v1059 = vunpack.c.l.b16 %v439
    %v1060 = vunpack.c.h.b16 %v439
    %v1061 = vunpack.c.l.b16 %v440
    %v1062 = vunpack.c.h.b16 %v440
    %v1063 = vunpack.c.l.b16 %v441
    %v1064 = vunpack.c.h.b16 %v441
    %v1065 = vunpack.c.l.b16 %v442
    %v1066 = vunpack.c.h.b16 %v442
    %v1067 = vunpack.c.l.b16 %v443
    %v1068 = vunpack.c.h.b16 %v443
    %v1069 = vunpack.c.l.b16 %v444
    %v1070 = vunpack.c.h.b16 %v444
    %v1071 = vunpack.c.l.b16 %v445
    %v1072 = vunpack.c.h.b16 %v445
    %v1073 = vunpack.c.l.b16 %v446
    %v1074 = vunpack.c.h.b16 %v446
    %v1075 = vunpack.c.l.b16 %v447
    %v1076 = vunpack.c.h.b16 %v447
    %v1077 = vpack.c.b16 %v1017, %v1013
    %v1078 = vpack.c.b16 %v1018, %v1014
    %v1079 = vpack.c.b16 %v1019, %v1015
    %v1080 = vpack.c.b16 %v1020, %v1016
    %v1081 = vpack.c.b16 %v1025, %v1021
    %v1082 = vpack.c.b16 %v1026, %v1022
    %v1083 = vpack.c.b16 %v1027, %v1023
    %v1084 = vpack.c.b16 %v1028, %v1024
    %v1085 = vpack.c.b16 %v1033, %v1029
    %v1086 = vpack.c.b16 %v1034, %v1030
    %v1087 = vpack.c.b16 %v1035, %v1031
    %v1088 = vpack.c.b16 %v1036, %v1032
    %v1089 = vpack.c.b16 %v1041, %v1037
    %v1090 = vpack.c.b16 %v1042, %v1038
    %v1091 = vpack.c.b16 %v1043, %v1039
    %v1092 = vpack.c.b16 %v1044, %v1040
    %v1093 = vpack.c.b16 %v1049, %v1045
    %v1094 = vpack.c.b16 %v1050, %v1046
    %v1095 = vpack.c.b16 %v1051, %v1047
    %v1096 = vpack.c.b16 %v1052, %v1048
    %v1097 = vpack.c.b16 %v1057, %v1053
    %v1098 = vpack.c.b16 %v1058, %v1054
    %v1099 = vpack.c.b16 %v1059, %v1055
    %v1100 = vpack.c.b16 %v1060, %v1056
    %v1101 = vpack.c.b16 %v1065, %v1061
    %v1102 = vpack.c.b16 %v1066, %v1062
    %v1103 = vpack.c.b16 %v1067, %v1063
    %v1104 = vpack.c.b16 %v1068, %v1064
    %v1105 = vpack.c.b16 %v1073, %v1069
    %v1106 = vpack.c.b16 %v1074, %v1070
    %v1107 = vpack.c.b16 %v1075, %v1071
    %v1108 = vpack.c.b16 %v1076, %v1072
    %1141 = vmatprep.subr.bf16.mxu0 %v1106
    %1142 = vmatpush1.bf16.msra.mxu0 %v1105
    %1143 = vmatprep.subr.bf16.mxu0 %v1102
    %1144 = vmatpush1.bf16.msra.mxu0 %v1101
    %1145 = vmatprep.subr.bf16.mxu0 %v1098
    %1146 = vmatpush1.bf16.msra.mxu0 %v1097
    %1147 = vmatprep.subr.bf16.mxu0 %v1094
    %1148 = vmatpush1.bf16.msra.mxu0 %v1093
    %1149 = vmatprep.subr.bf16.mxu0 %v1090
    %1150 = vmatpush1.bf16.msra.mxu0 %v1089
    %1151 = vmatprep.subr.bf16.mxu0 %v1086
    %1152 = vmatpush1.bf16.msra.mxu0 %v1085
    %1153 = vmatprep.subr.bf16.mxu0 %v1082
    %1154 = vmatpush1.bf16.msra.mxu0 %v1081
    %1155 = vmatprep.subr.bf16.mxu0 %v1078
    %1156 = vmatpush1.bf16.msra.mxu0 %v1077
    %1157 = vmatprep.subr.bf16.mxu0 0
    %1158 = vmatpush2.bf16.msra.mxu0 0
    %1159 = vmatprep.subr.bf16.mxu0 0
    %1160 = vmatpush2.bf16.msra.mxu0 0
    %1161 = vmatprep.subr.bf16.mxu0 0
    %1162 = vmatpush2.bf16.msra.mxu0 0
    %1163 = vmatprep.subr.bf16.mxu0 0
    %1164 = vmatpush2.bf16.msra.mxu0 0
    %1165 = vmatprep.subr.bf16.mxu0 0
    %1166 = vmatpush2.bf16.msra.mxu0 0
    %1167 = vmatprep.subr.bf16.mxu0 0
    %1168 = vmatpush2.bf16.msra.mxu0 0
    %1169 = vmatprep.subr.bf16.mxu0 0
    %1170 = vmatpush2.bf16.msra.mxu0 0
    %1171 = vmatprep.subr.bf16.mxu0 0
    %1172 = vmatpush2.bf16.msra.mxu0 0
    %1173 = vmatprep.mubr.bf16.mxu0 0
    %1174 = vmatmul.mubr.bf16.gmra.mxu0 0
    %v1175 = vpop.f32.mrf.mxu0
    %v1176 = vadd.f32 %v934, %v1175
    %v1177 = vpop.f32.mrf.mxu0
    %v1178 = vadd.f32 %v936, %v1177
    %v1179 = vpop.f32.mrf.mxu0
    %v1180 = vpop.f32.mrf.mxu0
    %1181 = vdwg.mxu0
    %1182 = vmatprep.subr.bf16.mxu0 %v1108
    %1183 = vmatpush1.bf16.msra.mxu0 %v1107
    %1184 = vmatprep.subr.bf16.mxu0 %v1104
    %1185 = vmatpush1.bf16.msra.mxu0 %v1103
    %1186 = vmatprep.subr.bf16.mxu0 %v1100
    %1187 = vmatpush1.bf16.msra.mxu0 %v1099
    %1188 = vmatprep.subr.bf16.mxu0 %v1096
    %1189 = vmatpush1.bf16.msra.mxu0 %v1095
    %1190 = vmatprep.subr.bf16.mxu0 %v1092
    %1191 = vmatpush1.bf16.msra.mxu0 %v1091
    %1192 = vmatprep.subr.bf16.mxu0 %v1088
    %1193 = vmatpush1.bf16.msra.mxu0 %v1087
    %1194 = vmatprep.subr.bf16.mxu0 %v1084
    %1195 = vmatpush1.bf16.msra.mxu0 %v1083
    %1196 = vmatprep.subr.bf16.mxu0 %v1080
    %1197 = vmatpush1.bf16.msra.mxu0 %v1079
    %1198 = vmatprep.subr.bf16.mxu0 0
    %1199 = vmatpush2.bf16.msra.mxu0 0
    %1200 = vmatprep.subr.bf16.mxu0 0
    %1201 = vmatpush2.bf16.msra.mxu0 0
    %1202 = vmatprep.subr.bf16.mxu0 0
    %1203 = vmatpush2.bf16.msra.mxu0 0
    %1204 = vmatprep.subr.bf16.mxu0 0
    %1205 = vmatpush2.bf16.msra.mxu0 0
    %1206 = vmatprep.subr.bf16.mxu0 0
    %1207 = vmatpush2.bf16.msra.mxu0 0
    %1208 = vmatprep.subr.bf16.mxu0 0
    %1209 = vmatpush2.bf16.msra.mxu0 0
    %1210 = vmatprep.subr.bf16.mxu0 0
    %1211 = vmatpush2.bf16.msra.mxu0 0
    %1212 = vmatprep.subr.bf16.mxu0 0
    %1213 = vmatpush2.bf16.msra.mxu0 0
    %1214 = vmatprep.mubr.bf16.mxu0 0
    %1215 = vmatmul.mubr.bf16.gmra.mxu0 0
    %v1216 = vpop.f32.mrf.mxu0
    %v1217 = vadd.f32 %v975, %v1216
    %v1218 = vpop.f32.mrf.mxu0
    %v1219 = vadd.f32 %v977, %v1218
    %v1220 = vpop.f32.mrf.mxu0
    %v1221 = vpop.f32.mrf.mxu0
    %1222 = vdwg.mxu0
    %v1223 = vadd.f32 %v1176, %v453
    %v1224 = vadd.f32 %v1178, %v457
    %v1225 = vadd.f32 %v1217, %v461
    %v1226 = vadd.f32 %v1219, %v465
    %v1227 = vmul.f32 %v1223, 0.5
    %v1228 = vmul.f32 %v1224, 0.5
    %v1229 = vmul.f32 %v1225, 0.5
    %v1230 = vtanh.pop %v1227
    %v1231 = vtanh.pop %v1228
    %v1232 = vtanh.pop %v1229
    %v1233 = vmul.f32 %v1230, 0.5
    %v1234 = vmul.f32 %v1231, 0.5
    %v1235 = vmul.f32 %v1232, 0.5
    %v1236 = vadd.f32 %v1233, 0.5
    %v1237 = vadd.f32 %v1234, 0.5
    %v1238 = vadd.f32 %v1235, 0.5
    %v1239 = vtanh.pop %v1226
    %v1240 = vmul.f32 %v1237, 0.0
    %v1241 = vmul.f32 %v1236, %v1239
    %v1242 = vadd.f32 %v1240, %v1241
    %v1243 = vtanh.pop %v1242
    %v1244 = vmul.f32 %v1238, %v1243
    %v1245 = vld [vmem:[#allocation2 + $0x20] sm:$0xff]
    %v1246 = vld [vmem:[#allocation2 + $0x28] sm:$0xff]
    %v1247 = vld [vmem:[#allocation2 + $0x30] sm:$0xff]
    %v1248 = vld [vmem:[#allocation2 + $0x38] sm:$0xff]
    %1249 = vmatprep.subr.bf16.mxu0 %v599
    %1250 = vmatpush1.bf16.msra.mxu0 %v598
    %1251 = vmatprep.subr.bf16.mxu0 %v595
    %1252 = vmatpush1.bf16.msra.mxu0 %v594
    %1253 = vmatprep.subr.bf16.mxu0 %v591
    %1254 = vmatpush1.bf16.msra.mxu0 %v590
    %1255 = vmatprep.subr.bf16.mxu0 %v587
    %1256 = vmatpush1.bf16.msra.mxu0 %v586
    %1257 = vmatprep.subr.bf16.mxu0 %v583
    %1258 = vmatpush1.bf16.msra.mxu0 %v582
    %1259 = vmatprep.subr.bf16.mxu0 %v579
    %1260 = vmatpush1.bf16.msra.mxu0 %v578
    %1261 = vmatprep.subr.bf16.mxu0 %v575
    %1262 = vmatpush1.bf16.msra.mxu0 %v574
    %1263 = vmatprep.subr.bf16.mxu0 %v571
    %1264 = vmatpush1.bf16.msra.mxu0 %v570
    %1265 = vmatprep.subr.bf16.mxu0 0
    %1266 = vmatpush2.bf16.msra.mxu0 0
    %1267 = vmatprep.subr.bf16.mxu0 0
    %1268 = vmatpush2.bf16.msra.mxu0 0
    %1269 = vmatprep.subr.bf16.mxu0 0
    %1270 = vmatpush2.bf16.msra.mxu0 0
    %1271 = vmatprep.subr.bf16.mxu0 0
    %1272 = vmatpush2.bf16.msra.mxu0 0
    %1273 = vmatprep.subr.bf16.mxu0 0
    %1274 = vmatpush2.bf16.msra.mxu0 0
    %1275 = vmatprep.subr.bf16.mxu0 0
    %1276 = vmatpush2.bf16.msra.mxu0 0
    %1277 = vmatprep.subr.bf16.mxu0 0
    %1278 = vmatpush2.bf16.msra.mxu0 0
    %1279 = vmatprep.subr.bf16.mxu0 0
    %1280 = vmatpush2.bf16.msra.mxu0 0
    %1281 = vmatprep.mubr.bf16.mxu0 0
    %1282 = vmatmul.mubr.bf16.gmra.mxu0 %v738
    %v1283 = vpop.f32.mrf.mxu0
    %v1284 = vadd.f32 0.0, %v1283
    %v1285 = vpop.f32.mrf.mxu0
    %v1286 = vadd.f32 0.0, %v1285
    %v1287 = vpop.f32.mrf.mxu0
    %v1288 = vpop.f32.mrf.mxu0
    %1289 = vdwg.mxu0
    %1290 = vmatprep.subr.bf16.mxu0 %v601
    %1291 = vmatpush1.bf16.msra.mxu0 %v600
    %1292 = vmatprep.subr.bf16.mxu0 %v597
    %1293 = vmatpush1.bf16.msra.mxu0 %v596
    %1294 = vmatprep.subr.bf16.mxu0 %v593
    %1295 = vmatpush1.bf16.msra.mxu0 %v592
    %1296 = vmatprep.subr.bf16.mxu0 %v589
    %1297 = vmatpush1.bf16.msra.mxu0 %v588
    %1298 = vmatprep.subr.bf16.mxu0 %v585
    %1299 = vmatpush1.bf16.msra.mxu0 %v584
    %1300 = vmatprep.subr.bf16.mxu0 %v581
    %1301 = vmatpush1.bf16.msra.mxu0 %v580
    %1302 = vmatprep.subr.bf16.mxu0 %v577
    %1303 = vmatpush1.bf16.msra.mxu0 %v576
    %1304 = vmatprep.subr.bf16.mxu0 %v573
    %1305 = vmatpush1.bf16.msra.mxu0 %v572
    %1306 = vmatprep.subr.bf16.mxu0 0
    %1307 = vmatpush2.bf16.msra.mxu0 0
    %1308 = vmatprep.subr.bf16.mxu0 0
    %1309 = vmatpush2.bf16.msra.mxu0 0
    %1310 = vmatprep.subr.bf16.mxu0 0
    %1311 = vmatpush2.bf16.msra.mxu0 0
    %1312 = vmatprep.subr.bf16.mxu0 0
    %1313 = vmatpush2.bf16.msra.mxu0 0
    %1314 = vmatprep.subr.bf16.mxu0 0
    %1315 = vmatpush2.bf16.msra.mxu0 0
    %1316 = vmatprep.subr.bf16.mxu0 0
    %1317 = vmatpush2.bf16.msra.mxu0 0
    %1318 = vmatprep.subr.bf16.mxu0 0
    %1319 = vmatpush2.bf16.msra.mxu0 0
    %1320 = vmatprep.subr.bf16.mxu0 0
    %1321 = vmatpush2.bf16.msra.mxu0 0
    %1322 = vmatprep.mubr.bf16.mxu0 0
    %1323 = vmatmul.mubr.bf16.gmra.mxu0 %v738
    %v1324 = vpop.f32.mrf.mxu0
    %v1325 = vadd.f32 0.0, %v1324
    %v1326 = vpop.f32.mrf.mxu0
    %v1327 = vadd.f32 0.0, %v1326
    %v1328 = vpop.f32.mrf.mxu0
    %v1329 = vpop.f32.mrf.mxu0
    %1330 = vdwg.mxu0
    %v1331 = vadd.f32 %v1245, %v1284
    %v1332 = vadd.f32 %v1246, %v1286
    %v1333 = vadd.f32 %v1247, %v1325
    %v1334 = vadd.f32 %v1248, %v1327
    %v1335 = vpack.c.bf16 %v1244, %v1244
    %v1336 = vmul.f32 %v1331, 0.5
    %v1337 = vmul.f32 %v1332, 0.5
    %v1338 = vmul.f32 %v1333, 0.5
    %v1339 = vtanh.pop %v1336
    %v1340 = vtanh.pop %v1337
    %v1341 = vtanh.pop %v1338
    %v1342 = vmul.f32 %v1339, 0.5
    %v1343 = vmul.f32 %v1340, 0.5
    %v1344 = vmul.f32 %v1341, 0.5
    %v1345 = vadd.f32 %v1342, 0.5
    %v1346 = vadd.f32 %v1343, 0.5
    %v1347 = vadd.f32 %v1344, 0.5
    %v1348 = vtanh.pop %v1334
    %v1349 = vmul.f32 %v1346, %v735
    %v1350 = vmul.f32 %v1345, %v1348
    %v1351 = vadd.f32 %v1349, %v1350
    %v1352 = vtanh.pop %v1351
    %v1353 = vmul.f32 %v1347, %v1352
    %v1354 = vpack.c.bf16 %v1353, %v1353
    %1355 = vmatprep.subr.bf16.mxu0 %v864
    %1356 = vmatpush1.bf16.msra.mxu0 %v863
    %1357 = vmatprep.subr.bf16.mxu0 %v860
    %1358 = vmatpush1.bf16.msra.mxu0 %v859
    %1359 = vmatprep.subr.bf16.mxu0 %v856
    %1360 = vmatpush1.bf16.msra.mxu0 %v855
    %1361 = vmatprep.subr.bf16.mxu0 %v852
    %1362 = vmatpush1.bf16.msra.mxu0 %v851
    %1363 = vmatprep.subr.bf16.mxu0 %v848
    %1364 = vmatpush1.bf16.msra.mxu0 %v847
    %1365 = vmatprep.subr.bf16.mxu0 %v844
    %1366 = vmatpush1.bf16.msra.mxu0 %v843
    %1367 = vmatprep.subr.bf16.mxu0 %v840
    %1368 = vmatpush1.bf16.msra.mxu0 %v839
    %1369 = vmatprep.subr.bf16.mxu0 %v836
    %1370 = vmatpush1.bf16.msra.mxu0 %v835
    %1371 = vmatprep.subr.bf16.mxu0 0
    %1372 = vmatpush2.bf16.msra.mxu0 0
    %1373 = vmatprep.subr.bf16.mxu0 0
    %1374 = vmatpush2.bf16.msra.mxu0 0
    %1375 = vmatprep.subr.bf16.mxu0 0
    %1376 = vmatpush2.bf16.msra.mxu0 0
    %1377 = vmatprep.subr.bf16.mxu0 0
    %1378 = vmatpush2.bf16.msra.mxu0 0
    %1379 = vmatprep.subr.bf16.mxu0 0
    %1380 = vmatpush2.bf16.msra.mxu0 0
    %1381 = vmatprep.subr.bf16.mxu0 0
    %1382 = vmatpush2.bf16.msra.mxu0 0
    %1383 = vmatprep.subr.bf16.mxu0 0
    %1384 = vmatpush2.bf16.msra.mxu0 0
    %1385 = vmatprep.subr.bf16.mxu0 0
    %1386 = vmatpush2.bf16.msra.mxu0 0
    %1387 = vmatprep.mubr.bf16.mxu0 0
    %1388 = vmatmul.mubr.bf16.gmra.mxu0 %v1354
    %v1389 = vpop.f32.mrf.mxu0
    %v1390 = vadd.f32 0.0, %v1389
    %v1391 = vpop.f32.mrf.mxu0
    %v1392 = vadd.f32 0.0, %v1391
    %v1393 = vpop.f32.mrf.mxu0
    %v1394 = vpop.f32.mrf.mxu0
    %1395 = vdwg.mxu0
    %1396 = vmatprep.subr.bf16.mxu0 %v866
    %1397 = vmatpush1.bf16.msra.mxu0 %v865
    %1398 = vmatprep.subr.bf16.mxu0 %v862
    %1399 = vmatpush1.bf16.msra.mxu0 %v861
    %1400 = vmatprep.subr.bf16.mxu0 %v858
    %1401 = vmatpush1.bf16.msra.mxu0 %v857
    %1402 = vmatprep.subr.bf16.mxu0 %v854
    %1403 = vmatpush1.bf16.msra.mxu0 %v853
    %1404 = vmatprep.subr.bf16.mxu0 %v850
    %1405 = vmatpush1.bf16.msra.mxu0 %v849
    %1406 = vmatprep.subr.bf16.mxu0 %v846
    %1407 = vmatpush1.bf16.msra.mxu0 %v845
    %1408 = vmatprep.subr.bf16.mxu0 %v842
    %1409 = vmatpush1.bf16.msra.mxu0 %v841
    %1410 = vmatprep.subr.bf16.mxu0 %v838
    %1411 = vmatpush1.bf16.msra.mxu0 %v837
    %1412 = vmatprep.subr.bf16.mxu0 0
    %1413 = vmatpush2.bf16.msra.mxu0 0
    %1414 = vmatprep.subr.bf16.mxu0 0
    %1415 = vmatpush2.bf16.msra.mxu0 0
    %1416 = vmatprep.subr.bf16.mxu0 0
    %1417 = vmatpush2.bf16.msra.mxu0 0
    %1418 = vmatprep.subr.bf16.mxu0 0
    %1419 = vmatpush2.bf16.msra.mxu0 0
    %1420 = vmatprep.subr.bf16.mxu0 0
    %1421 = vmatpush2.bf16.msra.mxu0 0
    %1422 = vmatprep.subr.bf16.mxu0 0
    %1423 = vmatpush2.bf16.msra.mxu0 0
    %1424 = vmatprep.subr.bf16.mxu0 0
    %1425 = vmatpush2.bf16.msra.mxu0 0
    %1426 = vmatprep.subr.bf16.mxu0 0
    %1427 = vmatpush2.bf16.msra.mxu0 0
    %1428 = vmatprep.mubr.bf16.mxu0 0
    %1429 = vmatmul.mubr.bf16.gmra.mxu0 %v1354
    %v1430 = vpop.f32.mrf.mxu0
    %v1431 = vadd.f32 0.0, %v1430
    %v1432 = vpop.f32.mrf.mxu0
    %v1433 = vadd.f32 0.0, %v1432
    %v1434 = vpop.f32.mrf.mxu0
    %v1435 = vpop.f32.mrf.mxu0
    %1436 = vdwg.mxu0
    %1437 = vmatprep.subr.bf16.mxu0 %v1106
    %1438 = vmatpush1.bf16.msra.mxu0 %v1105
    %1439 = vmatprep.subr.bf16.mxu0 %v1102
    %1440 = vmatpush1.bf16.msra.mxu0 %v1101
    %1441 = vmatprep.subr.bf16.mxu0 %v1098
    %1442 = vmatpush1.bf16.msra.mxu0 %v1097
    %1443 = vmatprep.subr.bf16.mxu0 %v1094
    %1444 = vmatpush1.bf16.msra.mxu0 %v1093
    %1445 = vmatprep.subr.bf16.mxu0 %v1090
    %1446 = vmatpush1.bf16.msra.mxu0 %v1089
    %1447 = vmatprep.subr.bf16.mxu0 %v1086
    %1448 = vmatpush1.bf16.msra.mxu0 %v1085
    %1449 = vmatprep.subr.bf16.mxu0 %v1082
    %1450 = vmatpush1.bf16.msra.mxu0 %v1081
    %1451 = vmatprep.subr.bf16.mxu0 %v1078
    %1452 = vmatpush1.bf16.msra.mxu0 %v1077
    %1453 = vmatprep.subr.bf16.mxu0 0
    %1454 = vmatpush2.bf16.msra.mxu0 0
    %1455 = vmatprep.subr.bf16.mxu0 0
    %1456 = vmatpush2.bf16.msra.mxu0 0
    %1457 = vmatprep.subr.bf16.mxu0 0
    %1458 = vmatpush2.bf16.msra.mxu0 0
    %1459 = vmatprep.subr.bf16.mxu0 0
    %1460 = vmatpush2.bf16.msra.mxu0 0
    %1461 = vmatprep.subr.bf16.mxu0 0
    %1462 = vmatpush2.bf16.msra.mxu0 0
    %1463 = vmatprep.subr.bf16.mxu0 0
    %1464 = vmatpush2.bf16.msra.mxu0 0
    %1465 = vmatprep.subr.bf16.mxu0 0
    %1466 = vmatpush2.bf16.msra.mxu0 0
    %1467 = vmatprep.subr.bf16.mxu0 0
    %1468 = vmatpush2.bf16.msra.mxu0 0
    %1469 = vmatprep.mubr.bf16.mxu0 0
    %1470 = vmatmul.mubr.bf16.gmra.mxu0 %v1335
    %v1471 = vpop.f32.mrf.mxu0
    %v1472 = vadd.f32 %v1390, %v1471
    %v1473 = vpop.f32.mrf.mxu0
    %v1474 = vadd.f32 %v1392, %v1473
    %v1475 = vpop.f32.mrf.mxu0
    %v1476 = vpop.f32.mrf.mxu0
    %1477 = vdwg.mxu0
    %1478 = vmatprep.subr.bf16.mxu0 %v1108
    %1479 = vmatpush1.bf16.msra.mxu0 %v1107
    %1480 = vmatprep.subr.bf16.mxu0 %v1104
    %1481 = vmatpush1.bf16.msra.mxu0 %v1103
    %1482 = vmatprep.subr.bf16.mxu0 %v1100
    %1483 = vmatpush1.bf16.msra.mxu0 %v1099
    %1484 = vmatprep.subr.bf16.mxu0 %v1096
    %1485 = vmatpush1.bf16.msra.mxu0 %v1095
    %1486 = vmatprep.subr.bf16.mxu0 %v1092
    %1487 = vmatpush1.bf16.msra.mxu0 %v1091
    %1488 = vmatprep.subr.bf16.mxu0 %v1088
    %1489 = vmatpush1.bf16.msra.mxu0 %v1087
    %1490 = vmatprep.subr.bf16.mxu0 %v1084
    %1491 = vmatpush1.bf16.msra.mxu0 %v1083
    %1492 = vmatprep.subr.bf16.mxu0 %v1080
    %1493 = vmatpush1.bf16.msra.mxu0 %v1079
    %1494 = vmatprep.subr.bf16.mxu0 0
    %1495 = vmatpush2.bf16.msra.mxu0 0
    %1496 = vmatprep.subr.bf16.mxu0 0
    %1497 = vmatpush2.bf16.msra.mxu0 0
    %1498 = vmatprep.subr.bf16.mxu0 0
    %1499 = vmatpush2.bf16.msra.mxu0 0
    %1500 = vmatprep.subr.bf16.mxu0 0
    %1501 = vmatpush2.bf16.msra.mxu0 0
    %1502 = vmatprep.subr.bf16.mxu0 0
    %1503 = vmatpush2.bf16.msra.mxu0 0
    %1504 = vmatprep.subr.bf16.mxu0 0
    %1505 = vmatpush2.bf16.msra.mxu0 0
    %1506 = vmatprep.subr.bf16.mxu0 0
    %1507 = vmatpush2.bf16.msra.mxu0 0
    %1508 = vmatprep.subr.bf16.mxu0 0
    %1509 = vmatpush2.bf16.msra.mxu0 0
    %1510 = vmatprep.mubr.bf16.mxu0 0
    %1511 = vmatmul.mubr.bf16.gmra.mxu0 %v1335
    %v1512 = vpop.f32.mrf.mxu0
    %v1513 = vadd.f32 %v1431, %v1512
    %v1514 = vpop.f32.mrf.mxu0
    %v1515 = vadd.f32 %v1433, %v1514
    %v1516 = vpop.f32.mrf.mxu0
    %v1517 = vpop.f32.mrf.mxu0
    %1518 = vdwg.mxu0
    %v1519 = vadd.f32 %v1472, %v453
    %v1520 = vadd.f32 %v1474, %v457
    %v1521 = vadd.f32 %v1513, %v461
    %v1522 = vadd.f32 %v1515, %v465
    %v1523 = vmul.f32 %v1519, 0.5
    %v1524 = vmul.f32 %v1520, 0.5
    %v1525 = vmul.f32 %v1521, 0.5
    %v1526 = vtanh.pop %v1523
    %v1527 = vtanh.pop %v1524
    %v1528 = vtanh.pop %v1525
    %v1529 = vmul.f32 %v1526, 0.5
    %v1530 = vmul.f32 %v1527, 0.5
    %v1531 = vmul.f32 %v1528, 0.5
    %v1532 = vadd.f32 %v1529, 0.5
    %v1533 = vadd.f32 %v1530, 0.5
    %v1534 = vadd.f32 %v1531, 0.5
    %v1535 = vtanh.pop %v1522
    %v1536 = vmul.f32 %v1533, %v1242
    %v1537 = vmul.f32 %v1532, %v1535
    %v1538 = vadd.f32 %v1536, %v1537
    %v1539 = vtanh.pop %v1538
    %v1540 = vmul.f32 %v1534, %v1539
    %v1541 = vld [vmem:[#allocation2 + $0x40] sm:$0xff]
    %v1542 = vld [vmem:[#allocation2 + $0x48] sm:$0xff]
    %v1543 = vld [vmem:[#allocation2 + $0x50] sm:$0xff]
    %v1544 = vld [vmem:[#allocation2 + $0x58] sm:$0xff]
    %1545 = vmatprep.subr.bf16.mxu0 %v599
    %1546 = vmatpush1.bf16.msra.mxu0 %v598
    %1547 = vmatprep.subr.bf16.mxu0 %v595
    %1548 = vmatpush1.bf16.msra.mxu0 %v594
    %1549 = vmatprep.subr.bf16.mxu0 %v591
    %1550 = vmatpush1.bf16.msra.mxu0 %v590
    %1551 = vmatprep.subr.bf16.mxu0 %v587
    %1552 = vmatpush1.bf16.msra.mxu0 %v586
    %1553 = vmatprep.subr.bf16.mxu0 %v583
    %1554 = vmatpush1.bf16.msra.mxu0 %v582
    %1555 = vmatprep.subr.bf16.mxu0 %v579
    %1556 = vmatpush1.bf16.msra.mxu0 %v578
    %1557 = vmatprep.subr.bf16.mxu0 %v575
    %1558 = vmatpush1.bf16.msra.mxu0 %v574
    %1559 = vmatprep.subr.bf16.mxu0 %v571
    %1560 = vmatpush1.bf16.msra.mxu0 %v570
    %1561 = vmatprep.subr.bf16.mxu0 0
    %1562 = vmatpush2.bf16.msra.mxu0 0
    %1563 = vmatprep.subr.bf16.mxu0 0
    %1564 = vmatpush2.bf16.msra.mxu0 0
    %1565 = vmatprep.subr.bf16.mxu0 0
    %1566 = vmatpush2.bf16.msra.mxu0 0
    %1567 = vmatprep.subr.bf16.mxu0 0
    %1568 = vmatpush2.bf16.msra.mxu0 0
    %1569 = vmatprep.subr.bf16.mxu0 0
    %1570 = vmatpush2.bf16.msra.mxu0 0
    %1571 = vmatprep.subr.bf16.mxu0 0
    %1572 = vmatpush2.bf16.msra.mxu0 0
    %1573 = vmatprep.subr.bf16.mxu0 0
    %1574 = vmatpush2.bf16.msra.mxu0 0
    %1575 = vmatprep.subr.bf16.mxu0 0
    %1576 = vmatpush2.bf16.msra.mxu0 0
    %1577 = vmatprep.mubr.bf16.mxu0 0
    %1578 = vmatmul.mubr.bf16.gmra.mxu0 %v1354
    %v1579 = vpop.f32.mrf.mxu0
    %v1580 = vadd.f32 0.0, %v1579
    %v1581 = vpop.f32.mrf.mxu0
    %v1582 = vadd.f32 0.0, %v1581
    %v1583 = vpop.f32.mrf.mxu0
    %v1584 = vpop.f32.mrf.mxu0
    %1585 = vdwg.mxu0
    %1586 = vmatprep.subr.bf16.mxu0 %v601
    %1587 = vmatpush1.bf16.msra.mxu0 %v600
    %1588 = vmatprep.subr.bf16.mxu0 %v597
    %1589 = vmatpush1.bf16.msra.mxu0 %v596
    %1590 = vmatprep.subr.bf16.mxu0 %v593
    %1591 = vmatpush1.bf16.msra.mxu0 %v592
    %1592 = vmatprep.subr.bf16.mxu0 %v589
    %1593 = vmatpush1.bf16.msra.mxu0 %v588
    %1594 = vmatprep.subr.bf16.mxu0 %v585
    %1595 = vmatpush1.bf16.msra.mxu0 %v584
    %1596 = vmatprep.subr.bf16.mxu0 %v581
    %1597 = vmatpush1.bf16.msra.mxu0 %v580
    %1598 = vmatprep.subr.bf16.mxu0 %v577
    %1599 = vmatpush1.bf16.msra.mxu0 %v576
    %1600 = vmatprep.subr.bf16.mxu0 %v573
    %1601 = vmatpush1.bf16.msra.mxu0 %v572
    %1602 = vmatprep.subr.bf16.mxu0 0
    %1603 = vmatpush2.bf16.msra.mxu0 0
    %1604 = vmatprep.subr.bf16.mxu0 0
    %1605 = vmatpush2.bf16.msra.mxu0 0
    %1606 = vmatprep.subr.bf16.mxu0 0
    %1607 = vmatpush2.bf16.msra.mxu0 0
    %1608 = vmatprep.subr.bf16.mxu0 0
    %1609 = vmatpush2.bf16.msra.mxu0 0
    %1610 = vmatprep.subr.bf16.mxu0 0
    %1611 = vmatpush2.bf16.msra.mxu0 0
    %1612 = vmatprep.subr.bf16.mxu0 0
    %1613 = vmatpush2.bf16.msra.mxu0 0
    %1614 = vmatprep.subr.bf16.mxu0 0
    %1615 = vmatpush2.bf16.msra.mxu0 0
    %1616 = vmatprep.subr.bf16.mxu0 0
    %1617 = vmatpush2.bf16.msra.mxu0 0
    %1618 = vmatprep.mubr.bf16.mxu0 0
    %1619 = vmatmul.mubr.bf16.gmra.mxu0 %v1354
    %v1620 = vpop.f32.mrf.mxu0
    %v1621 = vadd.f32 0.0, %v1620
    %v1622 = vpop.f32.mrf.mxu0
    %v1623 = vadd.f32 0.0, %v1622
    %v1624 = vpop.f32.mrf.mxu0
    %v1625 = vpop.f32.mrf.mxu0
    %1626 = vdwg.mxu0
    %v1627 = vadd.f32 %v1541, %v1580
    %v1628 = vadd.f32 %v1542, %v1582
    %v1629 = vadd.f32 %v1543, %v1621
    %v1630 = vadd.f32 %v1544, %v1623
    %v1631 = vpack.c.bf16 %v1540, %v1540
    %v1632 = vmul.f32 %v1627, 0.5
    %v1633 = vmul.f32 %v1628, 0.5
    %v1634 = vmul.f32 %v1629, 0.5
    %v1635 = vtanh.pop %v1632
    %v1636 = vtanh.pop %v1633
    %v1637 = vtanh.pop %v1634
    %v1638 = vmul.f32 %v1635, 0.5
    %v1639 = vmul.f32 %v1636, 0.5
    %v1640 = vmul.f32 %v1637, 0.5
    %v1641 = vadd.f32 %v1638, 0.5
    %v1642 = vadd.f32 %v1639, 0.5
    %v1643 = vadd.f32 %v1640, 0.5
    %v1644 = vtanh.pop %v1630
    %v1645 = vmul.f32 %v1642, %v1351
    %v1646 = vmul.f32 %v1641, %v1644
    %v1647 = vadd.f32 %v1645, %v1646
    %v1648 = vtanh.pop %v1647
    %v1649 = vmul.f32 %v1643, %v1648
    %v1650 = vpack.c.bf16 %v1649, %v1649
    %1651 = vmatprep.subr.bf16.mxu0 %v864
    %1652 = vmatpush1.bf16.msra.mxu0 %v863
    %1653 = vmatprep.subr.bf16.mxu0 %v860
    %1654 = vmatpush1.bf16.msra.mxu0 %v859
    %1655 = vmatprep.subr.bf16.mxu0 %v856
    %1656 = vmatpush1.bf16.msra.mxu0 %v855
    %1657 = vmatprep.subr.bf16.mxu0 %v852
    %1658 = vmatpush1.bf16.msra.mxu0 %v851
    %1659 = vmatprep.subr.bf16.mxu0 %v848
    %1660 = vmatpush1.bf16.msra.mxu0 %v847
    %1661 = vmatprep.subr.bf16.mxu0 %v844
    %1662 = vmatpush1.bf16.msra.mxu0 %v843
    %1663 = vmatprep.subr.bf16.mxu0 %v840
    %1664 = vmatpush1.bf16.msra.mxu0 %v839
    %1665 = vmatprep.subr.bf16.mxu0 %v836
    %1666 = vmatpush1.bf16.msra.mxu0 %v835
    %1667 = vmatprep.subr.bf16.mxu0 0
    %1668 = vmatpush2.bf16.msra.mxu0 0
    %1669 = vmatprep.subr.bf16.mxu0 0
    %1670 = vmatpush2.bf16.msra.mxu0 0
    %1671 = vmatprep.subr.bf16.mxu0 0
    %1672 = vmatpush2.bf16.msra.mxu0 0
    %1673 = vmatprep.subr.bf16.mxu0 0
    %1674 = vmatpush2.bf16.msra.mxu0 0
    %1675 = vmatprep.subr.bf16.mxu0 0
    %1676 = vmatpush2.bf16.msra.mxu0 0
    %1677 = vmatprep.subr.bf16.mxu0 0
    %1678 = vmatpush2.bf16.msra.mxu0 0
    %1679 = vmatprep.subr.bf16.mxu0 0
    %1680 = vmatpush2.bf16.msra.mxu0 0
    %1681 = vmatprep.subr.bf16.mxu0 0
    %1682 = vmatpush2.bf16.msra.mxu0 0
    %1683 = vmatprep.mubr.bf16.mxu0 0
    %1684 = vmatmul.mubr.bf16.gmra.mxu0 %v1650
    %v1685 = vpop.f32.mrf.mxu0
    %v1686 = vadd.f32 0.0, %v1685
    %v1687 = vpop.f32.mrf.mxu0
    %v1688 = vadd.f32 0.0, %v1687
    %v1689 = vpop.f32.mrf.mxu0
    %v1690 = vpop.f32.mrf.mxu0
    %1691 = vdwg.mxu0
    %1692 = vmatprep.subr.bf16.mxu0 %v866
    %1693 = vmatpush1.bf16.msra.mxu0 %v865
    %1694 = vmatprep.subr.bf16.mxu0 %v862
    %1695 = vmatpush1.bf16.msra.mxu0 %v861
    %1696 = vmatprep.subr.bf16.mxu0 %v858
    %1697 = vmatpush1.bf16.msra.mxu0 %v857
    %1698 = vmatprep.subr.bf16.mxu0 %v854
    %1699 = vmatpush1.bf16.msra.mxu0 %v853
    %1700 = vmatprep.subr.bf16.mxu0 %v850
    %1701 = vmatpush1.bf16.msra.mxu0 %v849
    %1702 = vmatprep.subr.bf16.mxu0 %v846
    %1703 = vmatpush1.bf16.msra.mxu0 %v845
    %1704 = vmatprep.subr.bf16.mxu0 %v842
    %1705 = vmatpush1.bf16.msra.mxu0 %v841
    %1706 = vmatprep.subr.bf16.mxu0 %v838
    %1707 = vmatpush1.bf16.msra.mxu0 %v837
    %1708 = vmatprep.subr.bf16.mxu0 0
    %1709 = vmatpush2.bf16.msra.mxu0 0
    %1710 = vmatprep.subr.bf16.mxu0 0
    %1711 = vmatpush2.bf16.msra.mxu0 0
    %1712 = vmatprep.subr.bf16.mxu0 0
    %1713 = vmatpush2.bf16.msra.mxu0 0
    %1714 = vmatprep.subr.bf16.mxu0 0
    %1715 = vmatpush2.bf16.msra.mxu0 0
    %1716 = vmatprep.subr.bf16.mxu0 0
    %1717 = vmatpush2.bf16.msra.mxu0 0
    %1718 = vmatprep.subr.bf16.mxu0 0
    %1719 = vmatpush2.bf16.msra.mxu0 0
    %1720 = vmatprep.subr.bf16.mxu0 0
    %1721 = vmatpush2.bf16.msra.mxu0 0
    %1722 = vmatprep.subr.bf16.mxu0 0
    %1723 = vmatpush2.bf16.msra.mxu0 0
    %1724 = vmatprep.mubr.bf16.mxu0 0
    %1725 = vmatmul.mubr.bf16.gmra.mxu0 %v1650
    %v1726 = vpop.f32.mrf.mxu0
    %v1727 = vadd.f32 0.0, %v1726
    %v1728 = vpop.f32.mrf.mxu0
    %v1729 = vadd.f32 0.0, %v1728
    %v1730 = vpop.f32.mrf.mxu0
    %v1731 = vpop.f32.mrf.mxu0
    %1732 = vdwg.mxu0
    %1733 = vmatprep.subr.bf16.mxu0 %v1106
    %1734 = vmatpush1.bf16.msra.mxu0 %v1105
    %1735 = vmatprep.subr.bf16.mxu0 %v1102
    %1736 = vmatpush1.bf16.msra.mxu0 %v1101
    %1737 = vmatprep.subr.bf16.mxu0 %v1098
    %1738 = vmatpush1.bf16.msra.mxu0 %v1097
    %1739 = vmatprep.subr.bf16.mxu0 %v1094
    %1740 = vmatpush1.bf16.msra.mxu0 %v1093
    %1741 = vmatprep.subr.bf16.mxu0 %v1090
    %1742 = vmatpush1.bf16.msra.mxu0 %v1089
    %1743 = vmatprep.subr.bf16.mxu0 %v1086
    %1744 = vmatpush1.bf16.msra.mxu0 %v1085
    %1745 = vmatprep.subr.bf16.mxu0 %v1082
    %1746 = vmatpush1.bf16.msra.mxu0 %v1081
    %1747 = vmatprep.subr.bf16.mxu0 %v1078
    %1748 = vmatpush1.bf16.msra.mxu0 %v1077
    %1749 = vmatprep.subr.bf16.mxu0 0
    %1750 = vmatpush2.bf16.msra.mxu0 0
    %1751 = vmatprep.subr.bf16.mxu0 0
    %1752 = vmatpush2.bf16.msra.mxu0 0
    %1753 = vmatprep.subr.bf16.mxu0 0
    %1754 = vmatpush2.bf16.msra.mxu0 0
    %1755 = vmatprep.subr.bf16.mxu0 0
    %1756 = vmatpush2.bf16.msra.mxu0 0
    %1757 = vmatprep.subr.bf16.mxu0 0
    %1758 = vmatpush2.bf16.msra.mxu0 0
    %1759 = vmatprep.subr.bf16.mxu0 0
    %1760 = vmatpush2.bf16.msra.mxu0 0
    %1761 = vmatprep.subr.bf16.mxu0 0
    %1762 = vmatpush2.bf16.msra.mxu0 0
    %1763 = vmatprep.subr.bf16.mxu0 0
    %1764 = vmatpush2.bf16.msra.mxu0 0
    %1765 = vmatprep.mubr.bf16.mxu0 0
    %1766 = vmatmul.mubr.bf16.gmra.mxu0 %v1631
    %v1767 = vpop.f32.mrf.mxu0
    %v1768 = vadd.f32 %v1686, %v1767
    %v1769 = vpop.f32.mrf.mxu0
    %v1770 = vadd.f32 %v1688, %v1769
    %v1771 = vpop.f32.mrf.mxu0
    %v1772 = vpop.f32.mrf.mxu0
    %1773 = vdwg.mxu0
    %1774 = vmatprep.subr.bf16.mxu0 %v1108
    %1775 = vmatpush1.bf16.msra.mxu0 %v1107
    %1776 = vmatprep.subr.bf16.mxu0 %v1104
    %1777 = vmatpush1.bf16.msra.mxu0 %v1103
    %1778 = vmatprep.subr.bf16.mxu0 %v1100
    %1779 = vmatpush1.bf16.msra.mxu0 %v1099
    %1780 = vmatprep.subr.bf16.mxu0 %v1096
    %1781 = vmatpush1.bf16.msra.mxu0 %v1095
    %1782 = vmatprep.subr.bf16.mxu0 %v1092
    %1783 = vmatpush1.bf16.msra.mxu0 %v1091
    %1784 = vmatprep.subr.bf16.mxu0 %v1088
    %1785 = vmatpush1.bf16.msra.mxu0 %v1087
    %1786 = vmatprep.subr.bf16.mxu0 %v1084
    %1787 = vmatpush1.bf16.msra.mxu0 %v1083
    %1788 = vmatprep.subr.bf16.mxu0 %v1080
    %1789 = vmatpush1.bf16.msra.mxu0 %v1079
    %1790 = vmatprep.subr.bf16.mxu0 0
    %1791 = vmatpush2.bf16.msra.mxu0 0
    %1792 = vmatprep.subr.bf16.mxu0 0
    %1793 = vmatpush2.bf16.msra.mxu0 0
    %1794 = vmatprep.subr.bf16.mxu0 0
    %1795 = vmatpush2.bf16.msra.mxu0 0
    %1796 = vmatprep.subr.bf16.mxu0 0
    %1797 = vmatpush2.bf16.msra.mxu0 0
    %1798 = vmatprep.subr.bf16.mxu0 0
    %1799 = vmatpush2.bf16.msra.mxu0 0
    %1800 = vmatprep.subr.bf16.mxu0 0
    %1801 = vmatpush2.bf16.msra.mxu0 0
    %1802 = vmatprep.subr.bf16.mxu0 0
    %1803 = vmatpush2.bf16.msra.mxu0 0
    %1804 = vmatprep.subr.bf16.mxu0 0
    %1805 = vmatpush2.bf16.msra.mxu0 0
    %1806 = vmatprep.mubr.bf16.mxu0 0
    %1807 = vmatmul.mubr.bf16.gmra.mxu0 %v1631
    %v1808 = vpop.f32.mrf.mxu0
    %v1809 = vadd.f32 %v1727, %v1808
    %v1810 = vpop.f32.mrf.mxu0
    %v1811 = vadd.f32 %v1729, %v1810
    %v1812 = vpop.f32.mrf.mxu0
    %v1813 = vpop.f32.mrf.mxu0
    %1814 = vdwg.mxu0
    %v1815 = vadd.f32 %v1768, %v453
    %v1816 = vadd.f32 %v1770, %v457
    %v1817 = vadd.f32 %v1809, %v461
    %v1818 = vadd.f32 %v1811, %v465
    %v1819 = vmul.f32 %v1815, 0.5
    %v1820 = vmul.f32 %v1816, 0.5
    %v1821 = vmul.f32 %v1817, 0.5
    %v1822 = vtanh.pop %v1819
    %v1823 = vtanh.pop %v1820
    %v1824 = vtanh.pop %v1821
    %v1825 = vmul.f32 %v1822, 0.5
    %v1826 = vmul.f32 %v1823, 0.5
    %v1827 = vmul.f32 %v1824, 0.5
    %v1828 = vadd.f32 %v1825, 0.5
    %v1829 = vadd.f32 %v1826, 0.5
    %v1830 = vadd.f32 %v1827, 0.5
    %v1831 = vtanh.pop %v1818
    %v1832 = vmul.f32 %v1829, %v1538
    %v1833 = vmul.f32 %v1828, %v1831
    %v1834 = vadd.f32 %v1832, %v1833
    %v1835 = vtanh.pop %v1834
    %v1836 = vmul.f32 %v1830, %v1835
    %v1837 = vld [vmem:[#allocation2 + $0x60] sm:$0xff]
    %v1838 = vld [vmem:[#allocation2 + $0x68] sm:$0xff]
    %v1839 = vld [vmem:[#allocation2 + $0x70] sm:$0xff]
    %v1840 = vld [vmem:[#allocation2 + $0x78] sm:$0xff]
    %1841 = vmatprep.subr.bf16.mxu0 %v599
    %1842 = vmatpush1.bf16.msra.mxu0 %v598
    %1843 = vmatprep.subr.bf16.mxu0 %v595
    %1844 = vmatpush1.bf16.msra.mxu0 %v594
    %1845 = vmatprep.subr.bf16.mxu0 %v591
    %1846 = vmatpush1.bf16.msra.mxu0 %v590
    %1847 = vmatprep.subr.bf16.mxu0 %v587
    %1848 = vmatpush1.bf16.msra.mxu0 %v586
    %1849 = vmatprep.subr.bf16.mxu0 %v583
    %1850 = vmatpush1.bf16.msra.mxu0 %v582
    %1851 = vmatprep.subr.bf16.mxu0 %v579
    %1852 = vmatpush1.bf16.msra.mxu0 %v578
    %1853 = vmatprep.subr.bf16.mxu0 %v575
    %1854 = vmatpush1.bf16.msra.mxu0 %v574
    %1855 = vmatprep.subr.bf16.mxu0 %v571
    %1856 = vmatpush1.bf16.msra.mxu0 %v570
    %1857 = vmatprep.subr.bf16.mxu0 0
    %1858 = vmatpush2.bf16.msra.mxu0 0
    %1859 = vmatprep.subr.bf16.mxu0 0
    %1860 = vmatpush2.bf16.msra.mxu0 0
    %1861 = vmatprep.subr.bf16.mxu0 0
    %1862 = vmatpush2.bf16.msra.mxu0 0
    %1863 = vmatprep.subr.bf16.mxu0 0
    %1864 = vmatpush2.bf16.msra.mxu0 0
    %1865 = vmatprep.subr.bf16.mxu0 0
    %1866 = vmatpush2.bf16.msra.mxu0 0
    %1867 = vmatprep.subr.bf16.mxu0 0
    %1868 = vmatpush2.bf16.msra.mxu0 0
    %1869 = vmatprep.subr.bf16.mxu0 0
    %1870 = vmatpush2.bf16.msra.mxu0 0
    %1871 = vmatprep.subr.bf16.mxu0 0
    %1872 = vmatpush2.bf16.msra.mxu0 0
    %1873 = vmatprep.mubr.bf16.mxu0 0
    %1874 = vmatmul.mubr.bf16.gmra.mxu0 %v1650
    %v1875 = vpop.f32.mrf.mxu0
    %v1876 = vadd.f32 0.0, %v1875
    %v1877 = vpop.f32.mrf.mxu0
    %v1878 = vadd.f32 0.0, %v1877
    %v1879 = vpop.f32.mrf.mxu0
    %v1880 = vpop.f32.mrf.mxu0
    %1881 = vdwg.mxu0
    %1882 = vmatprep.subr.bf16.mxu0 %v601
    %1883 = vmatpush1.bf16.msra.mxu0 %v600
    %1884 = vmatprep.subr.bf16.mxu0 %v597
    %1885 = vmatpush1.bf16.msra.mxu0 %v596
    %1886 = vmatprep.subr.bf16.mxu0 %v593
    %1887 = vmatpush1.bf16.msra.mxu0 %v592
    %1888 = vmatprep.subr.bf16.mxu0 %v589
    %1889 = vmatpush1.bf16.msra.mxu0 %v588
    %1890 = vmatprep.subr.bf16.mxu0 %v585
    %1891 = vmatpush1.bf16.msra.mxu0 %v584
    %1892 = vmatprep.subr.bf16.mxu0 %v581
    %1893 = vmatpush1.bf16.msra.mxu0 %v580
    %1894 = vmatprep.subr.bf16.mxu0 %v577
    %1895 = vmatpush1.bf16.msra.mxu0 %v576
    %1896 = vmatprep.subr.bf16.mxu0 %v573
    %1897 = vmatpush1.bf16.msra.mxu0 %v572
    %1898 = vmatprep.subr.bf16.mxu0 0
    %1899 = vmatpush2.bf16.msra.mxu0 0
    %1900 = vmatprep.subr.bf16.mxu0 0
    %1901 = vmatpush2.bf16.msra.mxu0 0
    %1902 = vmatprep.subr.bf16.mxu0 0
    %1903 = vmatpush2.bf16.msra.mxu0 0
    %1904 = vmatprep.subr.bf16.mxu0 0
    %1905 = vmatpush2.bf16.msra.mxu0 0
    %1906 = vmatprep.subr.bf16.mxu0 0
    %1907 = vmatpush2.bf16.msra.mxu0 0
    %1908 = vmatprep.subr.bf16.mxu0 0
    %1909 = vmatpush2.bf16.msra.mxu0 0
    %1910 = vmatprep.subr.bf16.mxu0 0
    %1911 = vmatpush2.bf16.msra.mxu0 0
    %1912 = vmatprep.subr.bf16.mxu0 0
    %1913 = vmatpush2.bf16.msra.mxu0 0
    %1914 = vmatprep.mubr.bf16.mxu0 0
    %1915 = vmatmul.mubr.bf16.gmra.mxu0 %v1650
    %v1916 = vpop.f32.mrf.mxu0
    %v1917 = vadd.f32 0.0, %v1916
    %v1918 = vpop.f32.mrf.mxu0
    %v1919 = vadd.f32 0.0, %v1918
    %v1920 = vpop.f32.mrf.mxu0
    %v1921 = vpop.f32.mrf.mxu0
    %1922 = vdwg.mxu0
    %v1923 = vadd.f32 %v1837, %v1876
    %v1924 = vadd.f32 %v1838, %v1878
    %v1925 = vadd.f32 %v1839, %v1917
    %v1926 = vadd.f32 %v1840, %v1919
    %v1927 = vpack.c.bf16 %v1836, %v1836
    %v1928 = vmul.f32 %v1923, 0.5
    %v1929 = vmul.f32 %v1924, 0.5
    %v1930 = vmul.f32 %v1925, 0.5
    %v1931 = vtanh.pop %v1928
    %v1932 = vtanh.pop %v1929
    %v1933 = vtanh.pop %v1930
    %v1934 = vmul.f32 %v1931, 0.5
    %v1935 = vmul.f32 %v1932, 0.5
    %v1936 = vmul.f32 %v1933, 0.5
    %v1937 = vadd.f32 %v1934, 0.5
    %v1938 = vadd.f32 %v1935, 0.5
    %v1939 = vadd.f32 %v1936, 0.5
    %v1940 = vtanh.pop %v1926
    %v1941 = vmul.f32 %v1938, %v1647
    %v1942 = vmul.f32 %v1937, %v1940
    %v1943 = vadd.f32 %v1941, %v1942
    %v1944 = vtanh.pop %v1943
    %v1945 = vmul.f32 %v1939, %v1944
    %v1946 = vpack.c.bf16 %v1945, %v1945
    %1947 = vmatprep.subr.bf16.mxu0 %v864
    %1948 = vmatpush1.bf16.msra.mxu0 %v863
    %1949 = vmatprep.subr.bf16.mxu0 %v860
    %1950 = vmatpush1.bf16.msra.mxu0 %v859
    %1951 = vmatprep.subr.bf16.mxu0 %v856
    %1952 = vmatpush1.bf16.msra.mxu0 %v855
    %1953 = vmatprep.subr.bf16.mxu0 %v852
    %1954 = vmatpush1.bf16.msra.mxu0 %v851
    %1955 = vmatprep.subr.bf16.mxu0 %v848
    %1956 = vmatpush1.bf16.msra.mxu0 %v847
    %1957 = vmatprep.subr.bf16.mxu0 %v844
    %1958 = vmatpush1.bf16.msra.mxu0 %v843
    %1959 = vmatprep.subr.bf16.mxu0 %v840
    %1960 = vmatpush1.bf16.msra.mxu0 %v839
    %1961 = vmatprep.subr.bf16.mxu0 %v836
    %1962 = vmatpush1.bf16.msra.mxu0 %v835
    %1963 = vmatprep.subr.bf16.mxu0 0
    %1964 = vmatpush2.bf16.msra.mxu0 0
    %1965 = vmatprep.subr.bf16.mxu0 0
    %1966 = vmatpush2.bf16.msra.mxu0 0
    %1967 = vmatprep.subr.bf16.mxu0 0
    %1968 = vmatpush2.bf16.msra.mxu0 0
    %1969 = vmatprep.subr.bf16.mxu0 0
    %1970 = vmatpush2.bf16.msra.mxu0 0
    %1971 = vmatprep.subr.bf16.mxu0 0
    %1972 = vmatpush2.bf16.msra.mxu0 0
    %1973 = vmatprep.subr.bf16.mxu0 0
    %1974 = vmatpush2.bf16.msra.mxu0 0
    %1975 = vmatprep.subr.bf16.mxu0 0
    %1976 = vmatpush2.bf16.msra.mxu0 0
    %1977 = vmatprep.subr.bf16.mxu0 0
    %1978 = vmatpush2.bf16.msra.mxu0 0
    %1979 = vmatprep.mubr.bf16.mxu0 0
    %1980 = vmatmul.mubr.bf16.gmra.mxu0 %v1946
    %v1981 = vpop.f32.mrf.mxu0
    %v1982 = vadd.f32 0.0, %v1981
    %v1983 = vpop.f32.mrf.mxu0
    %v1984 = vadd.f32 0.0, %v1983
    %v1985 = vpop.f32.mrf.mxu0
    %v1986 = vpop.f32.mrf.mxu0
    %1987 = vdwg.mxu0
    %1988 = vmatprep.subr.bf16.mxu0 %v866
    %1989 = vmatpush1.bf16.msra.mxu0 %v865
    %1990 = vmatprep.subr.bf16.mxu0 %v862
    %1991 = vmatpush1.bf16.msra.mxu0 %v861
    %1992 = vmatprep.subr.bf16.mxu0 %v858
    %1993 = vmatpush1.bf16.msra.mxu0 %v857
    %1994 = vmatprep.subr.bf16.mxu0 %v854
    %1995 = vmatpush1.bf16.msra.mxu0 %v853
    %1996 = vmatprep.subr.bf16.mxu0 %v850
    %1997 = vmatpush1.bf16.msra.mxu0 %v849
    %1998 = vmatprep.subr.bf16.mxu0 %v846
    %1999 = vmatpush1.bf16.msra.mxu0 %v845
    %2000 = vmatprep.subr.bf16.mxu0 %v842
    %2001 = vmatpush1.bf16.msra.mxu0 %v841
    %2002 = vmatprep.subr.bf16.mxu0 %v838
    %2003 = vmatpush1.bf16.msra.mxu0 %v837
    %2004 = vmatprep.subr.bf16.mxu0 0
    %2005 = vmatpush2.bf16.msra.mxu0 0
    %2006 = vmatprep.subr.bf16.mxu0 0
    %2007 = vmatpush2.bf16.msra.mxu0 0
    %2008 = vmatprep.subr.bf16.mxu0 0
    %2009 = vmatpush2.bf16.msra.mxu0 0
    %2010 = vmatprep.subr.bf16.mxu0 0
    %2011 = vmatpush2.bf16.msra.mxu0 0
    %2012 = vmatprep.subr.bf16.mxu0 0
    %2013 = vmatpush2.bf16.msra.mxu0 0
    %2014 = vmatprep.subr.bf16.mxu0 0
    %2015 = vmatpush2.bf16.msra.mxu0 0
    %2016 = vmatprep.subr.bf16.mxu0 0
    %2017 = vmatpush2.bf16.msra.mxu0 0
    %2018 = vmatprep.subr.bf16.mxu0 0
    %2019 = vmatpush2.bf16.msra.mxu0 0
    %2020 = vmatprep.mubr.bf16.mxu0 0
    %2021 = vmatmul.mubr.bf16.gmra.mxu0 %v1946
    %v2022 = vpop.f32.mrf.mxu0
    %v2023 = vadd.f32 0.0, %v2022
    %v2024 = vpop.f32.mrf.mxu0
    %v2025 = vadd.f32 0.0, %v2024
    %v2026 = vpop.f32.mrf.mxu0
    %v2027 = vpop.f32.mrf.mxu0
    %2028 = vdwg.mxu0
    %2029 = vmatprep.subr.bf16.mxu0 %v1106
    %2030 = vmatpush1.bf16.msra.mxu0 %v1105
    %2031 = vmatprep.subr.bf16.mxu0 %v1102
    %2032 = vmatpush1.bf16.msra.mxu0 %v1101
    %2033 = vmatprep.subr.bf16.mxu0 %v1098
    %2034 = vmatpush1.bf16.msra.mxu0 %v1097
    %2035 = vmatprep.subr.bf16.mxu0 %v1094
    %2036 = vmatpush1.bf16.msra.mxu0 %v1093
    %2037 = vmatprep.subr.bf16.mxu0 %v1090
    %2038 = vmatpush1.bf16.msra.mxu0 %v1089
    %2039 = vmatprep.subr.bf16.mxu0 %v1086
    %2040 = vmatpush1.bf16.msra.mxu0 %v1085
    %2041 = vmatprep.subr.bf16.mxu0 %v1082
    %2042 = vmatpush1.bf16.msra.mxu0 %v1081
    %2043 = vmatprep.subr.bf16.mxu0 %v1078
    %2044 = vmatpush1.bf16.msra.mxu0 %v1077
    %2045 = vmatprep.subr.bf16.mxu0 0
    %2046 = vmatpush2.bf16.msra.mxu0 0
    %2047 = vmatprep.subr.bf16.mxu0 0
    %2048 = vmatpush2.bf16.msra.mxu0 0
    %2049 = vmatprep.subr.bf16.mxu0 0
    %2050 = vmatpush2.bf16.msra.mxu0 0
    %2051 = vmatprep.subr.bf16.mxu0 0
    %2052 = vmatpush2.bf16.msra.mxu0 0
    %2053 = vmatprep.subr.bf16.mxu0 0
    %2054 = vmatpush2.bf16.msra.mxu0 0
    %2055 = vmatprep.subr.bf16.mxu0 0
    %2056 = vmatpush2.bf16.msra.mxu0 0
    %2057 = vmatprep.subr.bf16.mxu0 0
    %2058 = vmatpush2.bf16.msra.mxu0 0
    %2059 = vmatprep.subr.bf16.mxu0 0
    %2060 = vmatpush2.bf16.msra.mxu0 0
    %2061 = vmatprep.mubr.bf16.mxu0 0
    %2062 = vmatmul.mubr.bf16.gmra.mxu0 %v1927
    %v2063 = vpop.f32.mrf.mxu0
    %v2064 = vadd.f32 %v1982, %v2063
    %v2065 = vpop.f32.mrf.mxu0
    %v2066 = vadd.f32 %v1984, %v2065
    %v2067 = vpop.f32.mrf.mxu0
    %v2068 = vpop.f32.mrf.mxu0
    %2069 = vdwg.mxu0
    %2070 = vmatprep.subr.bf16.mxu0 %v1108
    %2071 = vmatpush1.bf16.msra.mxu0 %v1107
    %2072 = vmatprep.subr.bf16.mxu0 %v1104
    %2073 = vmatpush1.bf16.msra.mxu0 %v1103
    %2074 = vmatprep.subr.bf16.mxu0 %v1100
    %2075 = vmatpush1.bf16.msra.mxu0 %v1099
    %2076 = vmatprep.subr.bf16.mxu0 %v1096
    %2077 = vmatpush1.bf16.msra.mxu0 %v1095
    %2078 = vmatprep.subr.bf16.mxu0 %v1092
    %2079 = vmatpush1.bf16.msra.mxu0 %v1091
    %2080 = vmatprep.subr.bf16.mxu0 %v1088
    %2081 = vmatpush1.bf16.msra.mxu0 %v1087
    %2082 = vmatprep.subr.bf16.mxu0 %v1084
    %2083 = vmatpush1.bf16.msra.mxu0 %v1083
    %2084 = vmatprep.subr.bf16.mxu0 %v1080
    %2085 = vmatpush1.bf16.msra.mxu0 %v1079
    %2086 = vmatprep.subr.bf16.mxu0 0
    %2087 = vmatpush2.bf16.msra.mxu0 0
    %2088 = vmatprep.subr.bf16.mxu0 0
    %2089 = vmatpush2.bf16.msra.mxu0 0
    %2090 = vmatprep.subr.bf16.mxu0 0
    %2091 = vmatpush2.bf16.msra.mxu0 0
    %2092 = vmatprep.subr.bf16.mxu0 0
    %2093 = vmatpush2.bf16.msra.mxu0 0
    %2094 = vmatprep.subr.bf16.mxu0 0
    %2095 = vmatpush2.bf16.msra.mxu0 0
    %2096 = vmatprep.subr.bf16.mxu0 0
    %2097 = vmatpush2.bf16.msra.mxu0 0
    %2098 = vmatprep.subr.bf16.mxu0 0
    %2099 = vmatpush2.bf16.msra.mxu0 0
    %2100 = vmatprep.subr.bf16.mxu0 0
    %2101 = vmatpush2.bf16.msra.mxu0 0
    %2102 = vmatprep.mubr.bf16.mxu0 0
    %2103 = vmatmul.mubr.bf16.gmra.mxu0 %v1927
    %v2104 = vpop.f32.mrf.mxu0
    %v2105 = vadd.f32 %v2023, %v2104
    %v2106 = vpop.f32.mrf.mxu0
    %v2107 = vadd.f32 %v2025, %v2106
    %v2108 = vpop.f32.mrf.mxu0
    %v2109 = vpop.f32.mrf.mxu0
    %2110 = vdwg.mxu0
    %v2111 = vadd.f32 %v2064, %v453
    %v2112 = vadd.f32 %v2066, %v457
    %v2113 = vadd.f32 %v2105, %v461
    %v2114 = vadd.f32 %v2107, %v465
    %v2115 = vmul.f32 %v2111, 0.5
    %v2116 = vmul.f32 %v2112, 0.5
    %v2117 = vmul.f32 %v2113, 0.5
    %v2118 = vtanh.pop %v2115
    %v2119 = vtanh.pop %v2116
    %v2120 = vtanh.pop %v2117
    %v2121 = vmul.f32 %v2118, 0.5
    %v2122 = vmul.f32 %v2119, 0.5
    %v2123 = vmul.f32 %v2120, 0.5
    %v2124 = vadd.f32 %v2121, 0.5
    %v2125 = vadd.f32 %v2122, 0.5
    %v2126 = vadd.f32 %v2123, 0.5
    %v2127 = vtanh.pop %v2114
    %v2128 = vmul.f32 %v2125, %v1834
    %v2129 = vmul.f32 %v2124, %v2127
    %v2130 = vadd.f32 %v2128, %v2129
    %v2131 = vtanh.pop %v2130
    %v2132 = vmul.f32 %v2126, %v2131
    %v2133 = vld [vmem:[#allocation2 + $0x80] sm:$0xff]
    %v2134 = vld [vmem:[#allocation2 + $0x88] sm:$0xff]
    %v2135 = vld [vmem:[#allocation2 + $0x90] sm:$0xff]
    %v2136 = vld [vmem:[#allocation2 + $0x98] sm:$0xff]
    %2137 = vmatprep.subr.bf16.mxu0 %v599
    %2138 = vmatpush1.bf16.msra.mxu0 %v598
    %2139 = vmatprep.subr.bf16.mxu0 %v595
    %2140 = vmatpush1.bf16.msra.mxu0 %v594
    %2141 = vmatprep.subr.bf16.mxu0 %v591
    %2142 = vmatpush1.bf16.msra.mxu0 %v590
    %2143 = vmatprep.subr.bf16.mxu0 %v587
    %2144 = vmatpush1.bf16.msra.mxu0 %v586
    %2145 = vmatprep.subr.bf16.mxu0 %v583
    %2146 = vmatpush1.bf16.msra.mxu0 %v582
    %2147 = vmatprep.subr.bf16.mxu0 %v579
    %2148 = vmatpush1.bf16.msra.mxu0 %v578
    %2149 = vmatprep.subr.bf16.mxu0 %v575
    %2150 = vmatpush1.bf16.msra.mxu0 %v574
    %2151 = vmatprep.subr.bf16.mxu0 %v571
    %2152 = vmatpush1.bf16.msra.mxu0 %v570
    %2153 = vmatprep.subr.bf16.mxu0 0
    %2154 = vmatpush2.bf16.msra.mxu0 0
    %2155 = vmatprep.subr.bf16.mxu0 0
    %2156 = vmatpush2.bf16.msra.mxu0 0
    %2157 = vmatprep.subr.bf16.mxu0 0
    %2158 = vmatpush2.bf16.msra.mxu0 0
    %2159 = vmatprep.subr.bf16.mxu0 0
    %2160 = vmatpush2.bf16.msra.mxu0 0
    %2161 = vmatprep.subr.bf16.mxu0 0
    %2162 = vmatpush2.bf16.msra.mxu0 0
    %2163 = vmatprep.subr.bf16.mxu0 0
    %2164 = vmatpush2.bf16.msra.mxu0 0
    %2165 = vmatprep.subr.bf16.mxu0 0
    %2166 = vmatpush2.bf16.msra.mxu0 0
    %2167 = vmatprep.subr.bf16.mxu0 0
    %2168 = vmatpush2.bf16.msra.mxu0 0
    %2169 = vmatprep.mubr.bf16.mxu0 0
    %2170 = vmatmul.mubr.bf16.gmra.mxu0 %v1946
    %v2171 = vpop.f32.mrf.mxu0
    %v2172 = vadd.f32 0.0, %v2171
    %v2173 = vpop.f32.mrf.mxu0
    %v2174 = vadd.f32 0.0, %v2173
    %v2175 = vpop.f32.mrf.mxu0
    %v2176 = vpop.f32.mrf.mxu0
    %2177 = vdwg.mxu0
    %2178 = vmatprep.subr.bf16.mxu0 %v601
    %2179 = vmatpush1.bf16.msra.mxu0 %v600
    %2180 = vmatprep.subr.bf16.mxu0 %v597
    %2181 = vmatpush1.bf16.msra.mxu0 %v596
    %2182 = vmatprep.subr.bf16.mxu0 %v593
    %2183 = vmatpush1.bf16.msra.mxu0 %v592
    %2184 = vmatprep.subr.bf16.mxu0 %v589
    %2185 = vmatpush1.bf16.msra.mxu0 %v588
    %2186 = vmatprep.subr.bf16.mxu0 %v585
    %2187 = vmatpush1.bf16.msra.mxu0 %v584
    %2188 = vmatprep.subr.bf16.mxu0 %v581
    %2189 = vmatpush1.bf16.msra.mxu0 %v580
    %2190 = vmatprep.subr.bf16.mxu0 %v577
    %2191 = vmatpush1.bf16.msra.mxu0 %v576
    %2192 = vmatprep.subr.bf16.mxu0 %v573
    %2193 = vmatpush1.bf16.msra.mxu0 %v572
    %2194 = vmatprep.subr.bf16.mxu0 0
    %2195 = vmatpush2.bf16.msra.mxu0 0
    %2196 = vmatprep.subr.bf16.mxu0 0
    %2197 = vmatpush2.bf16.msra.mxu0 0
    %2198 = vmatprep.subr.bf16.mxu0 0
    %2199 = vmatpush2.bf16.msra.mxu0 0
    %2200 = vmatprep.subr.bf16.mxu0 0
    %2201 = vmatpush2.bf16.msra.mxu0 0
    %2202 = vmatprep.subr.bf16.mxu0 0
    %2203 = vmatpush2.bf16.msra.mxu0 0
    %2204 = vmatprep.subr.bf16.mxu0 0
    %2205 = vmatpush2.bf16.msra.mxu0 0
    %2206 = vmatprep.subr.bf16.mxu0 0
    %2207 = vmatpush2.bf16.msra.mxu0 0
    %2208 = vmatprep.subr.bf16.mxu0 0
    %2209 = vmatpush2.bf16.msra.mxu0 0
    %2210 = vmatprep.mubr.bf16.mxu0 0
    %2211 = vmatmul.mubr.bf16.gmra.mxu0 %v1946
    %v2212 = vpop.f32.mrf.mxu0
    %v2213 = vadd.f32 0.0, %v2212
    %v2214 = vpop.f32.mrf.mxu0
    %v2215 = vadd.f32 0.0, %v2214
    %v2216 = vpop.f32.mrf.mxu0
    %v2217 = vpop.f32.mrf.mxu0
    %2218 = vdwg.mxu0
    %v2219 = vadd.f32 %v2133, %v2172
    %v2220 = vadd.f32 %v2134, %v2174
    %v2221 = vadd.f32 %v2135, %v2213
    %v2222 = vadd.f32 %v2136, %v2215
    %v2223 = vpack.c.bf16 %v2132, %v2132
    %v2224 = vmul.f32 %v2219, 0.5
    %v2225 = vmul.f32 %v2220, 0.5
    %v2226 = vmul.f32 %v2221, 0.5
    %v2227 = vtanh.pop %v2224
    %v2228 = vtanh.pop %v2225
    %v2229 = vtanh.pop %v2226
    %v2230 = vmul.f32 %v2227, 0.5
    %v2231 = vmul.f32 %v2228, 0.5
    %v2232 = vmul.f32 %v2229, 0.5
    %v2233 = vadd.f32 %v2230, 0.5
    %v2234 = vadd.f32 %v2231, 0.5
    %v2235 = vadd.f32 %v2232, 0.5
    %v2236 = vtanh.pop %v2222
    %v2237 = vmul.f32 %v2234, %v1943
    %v2238 = vmul.f32 %v2233, %v2236
    %v2239 = vadd.f32 %v2237, %v2238
    %v2240 = vtanh.pop %v2239
    %v2241 = vmul.f32 %v2235, %v2240
    %v2242 = vpack.c.bf16 %v2241, %v2241
    %2243 = vmatprep.subr.bf16.mxu0 %v864
    %2244 = vmatpush1.bf16.msra.mxu0 %v863
    %2245 = vmatprep.subr.bf16.mxu0 %v860
    %2246 = vmatpush1.bf16.msra.mxu0 %v859
    %2247 = vmatprep.subr.bf16.mxu0 %v856
    %2248 = vmatpush1.bf16.msra.mxu0 %v855
    %2249 = vmatprep.subr.bf16.mxu0 %v852
    %2250 = vmatpush1.bf16.msra.mxu0 %v851
    %2251 = vmatprep.subr.bf16.mxu0 %v848
    %2252 = vmatpush1.bf16.msra.mxu0 %v847
    %2253 = vmatprep.subr.bf16.mxu0 %v844
    %2254 = vmatpush1.bf16.msra.mxu0 %v843
    %2255 = vmatprep.subr.bf16.mxu0 %v840
    %2256 = vmatpush1.bf16.msra.mxu0 %v839
    %2257 = vmatprep.subr.bf16.mxu0 %v836
    %2258 = vmatpush1.bf16.msra.mxu0 %v835
    %2259 = vmatprep.subr.bf16.mxu0 0
    %2260 = vmatpush2.bf16.msra.mxu0 0
    %2261 = vmatprep.subr.bf16.mxu0 0
    %2262 = vmatpush2.bf16.msra.mxu0 0
    %2263 = vmatprep.subr.bf16.mxu0 0
    %2264 = vmatpush2.bf16.msra.mxu0 0
    %2265 = vmatprep.subr.bf16.mxu0 0
    %2266 = vmatpush2.bf16.msra.mxu0 0
    %2267 = vmatprep.subr.bf16.mxu0 0
    %2268 = vmatpush2.bf16.msra.mxu0 0
    %2269 = vmatprep.subr.bf16.mxu0 0
    %2270 = vmatpush2.bf16.msra.mxu0 0
    %2271 = vmatprep.subr.bf16.mxu0 0
    %2272 = vmatpush2.bf16.msra.mxu0 0
    %2273 = vmatprep.subr.bf16.mxu0 0
    %2274 = vmatpush2.bf16.msra.mxu0 0
    %2275 = vmatprep.mubr.bf16.mxu0 0
    %2276 = vmatmul.mubr.bf16.gmra.mxu0 %v2242
    %v2277 = vpop.f32.mrf.mxu0
    %v2278 = vadd.f32 0.0, %v2277
    %v2279 = vpop.f32.mrf.mxu0
    %v2280 = vadd.f32 0.0, %v2279
    %v2281 = vpop.f32.mrf.mxu0
    %v2282 = vpop.f32.mrf.mxu0
    %2283 = vdwg.mxu0
    %2284 = vmatprep.subr.bf16.mxu0 %v866
    %2285 = vmatpush1.bf16.msra.mxu0 %v865
    %2286 = vmatprep.subr.bf16.mxu0 %v862
    %2287 = vmatpush1.bf16.msra.mxu0 %v861
    %2288 = vmatprep.subr.bf16.mxu0 %v858
    %2289 = vmatpush1.bf16.msra.mxu0 %v857
    %2290 = vmatprep.subr.bf16.mxu0 %v854
    %2291 = vmatpush1.bf16.msra.mxu0 %v853
    %2292 = vmatprep.subr.bf16.mxu0 %v850
    %2293 = vmatpush1.bf16.msra.mxu0 %v849
    %2294 = vmatprep.subr.bf16.mxu0 %v846
    %2295 = vmatpush1.bf16.msra.mxu0 %v845
    %2296 = vmatprep.subr.bf16.mxu0 %v842
    %2297 = vmatpush1.bf16.msra.mxu0 %v841
    %2298 = vmatprep.subr.bf16.mxu0 %v838
    %2299 = vmatpush1.bf16.msra.mxu0 %v837
    %2300 = vmatprep.subr.bf16.mxu0 0
    %2301 = vmatpush2.bf16.msra.mxu0 0
    %2302 = vmatprep.subr.bf16.mxu0 0
    %2303 = vmatpush2.bf16.msra.mxu0 0
    %2304 = vmatprep.subr.bf16.mxu0 0
    %2305 = vmatpush2.bf16.msra.mxu0 0
    %2306 = vmatprep.subr.bf16.mxu0 0
    %2307 = vmatpush2.bf16.msra.mxu0 0
    %2308 = vmatprep.subr.bf16.mxu0 0
    %2309 = vmatpush2.bf16.msra.mxu0 0
    %2310 = vmatprep.subr.bf16.mxu0 0
    %2311 = vmatpush2.bf16.msra.mxu0 0
    %2312 = vmatprep.subr.bf16.mxu0 0
    %2313 = vmatpush2.bf16.msra.mxu0 0
    %2314 = vmatprep.subr.bf16.mxu0 0
    %2315 = vmatpush2.bf16.msra.mxu0 0
    %2316 = vmatprep.mubr.bf16.mxu0 0
    %2317 = vmatmul.mubr.bf16.gmra.mxu0 %v2242
    %v2318 = vpop.f32.mrf.mxu0
    %v2319 = vadd.f32 0.0, %v2318
    %v2320 = vpop.f32.mrf.mxu0
    %v2321 = vadd.f32 0.0, %v2320
    %v2322 = vpop.f32.mrf.mxu0
    %v2323 = vpop.f32.mrf.mxu0
    %2324 = vdwg.mxu0
    %2325 = vmatprep.subr.bf16.mxu0 %v1106
    %2326 = vmatpush1.bf16.msra.mxu0 %v1105
    %2327 = vmatprep.subr.bf16.mxu0 %v1102
    %2328 = vmatpush1.bf16.msra.mxu0 %v1101
    %2329 = vmatprep.subr.bf16.mxu0 %v1098
    %2330 = vmatpush1.bf16.msra.mxu0 %v1097
    %2331 = vmatprep.subr.bf16.mxu0 %v1094
    %2332 = vmatpush1.bf16.msra.mxu0 %v1093
    %2333 = vmatprep.subr.bf16.mxu0 %v1090
    %2334 = vmatpush1.bf16.msra.mxu0 %v1089
    %2335 = vmatprep.subr.bf16.mxu0 %v1086
    %2336 = vmatpush1.bf16.msra.mxu0 %v1085
    %2337 = vmatprep.subr.bf16.mxu0 %v1082
    %2338 = vmatpush1.bf16.msra.mxu0 %v1081
    %2339 = vmatprep.subr.bf16.mxu0 %v1078
    %2340 = vmatpush1.bf16.msra.mxu0 %v1077
    %2341 = vmatprep.subr.bf16.mxu0 0
    %2342 = vmatpush2.bf16.msra.mxu0 0
    %2343 = vmatprep.subr.bf16.mxu0 0
    %2344 = vmatpush2.bf16.msra.mxu0 0
    %2345 = vmatprep.subr.bf16.mxu0 0
    %2346 = vmatpush2.bf16.msra.mxu0 0
    %2347 = vmatprep.subr.bf16.mxu0 0
    %2348 = vmatpush2.bf16.msra.mxu0 0
    %2349 = vmatprep.subr.bf16.mxu0 0
    %2350 = vmatpush2.bf16.msra.mxu0 0
    %2351 = vmatprep.subr.bf16.mxu0 0
    %2352 = vmatpush2.bf16.msra.mxu0 0
    %2353 = vmatprep.subr.bf16.mxu0 0
    %2354 = vmatpush2.bf16.msra.mxu0 0
    %2355 = vmatprep.subr.bf16.mxu0 0
    %2356 = vmatpush2.bf16.msra.mxu0 0
    %2357 = vmatprep.mubr.bf16.mxu0 0
    %2358 = vmatmul.mubr.bf16.gmra.mxu0 %v2223
    %v2359 = vpop.f32.mrf.mxu0
    %v2360 = vadd.f32 %v2278, %v2359
    %v2361 = vpop.f32.mrf.mxu0
    %v2362 = vadd.f32 %v2280, %v2361
    %v2363 = vpop.f32.mrf.mxu0
    %v2364 = vpop.f32.mrf.mxu0
    %2365 = vdwg.mxu0
    %2366 = vmatprep.subr.bf16.mxu0 %v1108
    %2367 = vmatpush1.bf16.msra.mxu0 %v1107
    %2368 = vmatprep.subr.bf16.mxu0 %v1104
    %2369 = vmatpush1.bf16.msra.mxu0 %v1103
    %2370 = vmatprep.subr.bf16.mxu0 %v1100
    %2371 = vmatpush1.bf16.msra.mxu0 %v1099
    %2372 = vmatprep.subr.bf16.mxu0 %v1096
    %2373 = vmatpush1.bf16.msra.mxu0 %v1095
    %2374 = vmatprep.subr.bf16.mxu0 %v1092
    %2375 = vmatpush1.bf16.msra.mxu0 %v1091
    %2376 = vmatprep.subr.bf16.mxu0 %v1088
    %2377 = vmatpush1.bf16.msra.mxu0 %v1087
    %2378 = vmatprep.subr.bf16.mxu0 %v1084
    %2379 = vmatpush1.bf16.msra.mxu0 %v1083
    %2380 = vmatprep.subr.bf16.mxu0 %v1080
    %2381 = vmatpush1.bf16.msra.mxu0 %v1079
    %2382 = vmatprep.subr.bf16.mxu0 0
    %2383 = vmatpush2.bf16.msra.mxu0 0
    %2384 = vmatprep.subr.bf16.mxu0 0
    %2385 = vmatpush2.bf16.msra.mxu0 0
    %2386 = vmatprep.subr.bf16.mxu0 0
    %2387 = vmatpush2.bf16.msra.mxu0 0
    %2388 = vmatprep.subr.bf16.mxu0 0
    %2389 = vmatpush2.bf16.msra.mxu0 0
    %2390 = vmatprep.subr.bf16.mxu0 0
    %2391 = vmatpush2.bf16.msra.mxu0 0
    %2392 = vmatprep.subr.bf16.mxu0 0
    %2393 = vmatpush2.bf16.msra.mxu0 0
    %2394 = vmatprep.subr.bf16.mxu0 0
    %2395 = vmatpush2.bf16.msra.mxu0 0
    %2396 = vmatprep.subr.bf16.mxu0 0
    %2397 = vmatpush2.bf16.msra.mxu0 0
    %2398 = vmatprep.mubr.bf16.mxu0 0
    %2399 = vmatmul.mubr.bf16.gmra.mxu0 %v2223
    %v2400 = vpop.f32.mrf.mxu0
    %v2401 = vadd.f32 %v2319, %v2400
    %v2402 = vpop.f32.mrf.mxu0
    %v2403 = vadd.f32 %v2321, %v2402
    %v2404 = vpop.f32.mrf.mxu0
    %v2405 = vpop.f32.mrf.mxu0
    %2406 = vdwg.mxu0
    %v2407 = vadd.f32 %v2360, %v453
    %v2408 = vadd.f32 %v2362, %v457
    %v2409 = vadd.f32 %v2401, %v461
    %v2410 = vadd.f32 %v2403, %v465
    %v2411 = vmul.f32 %v2407, 0.5
    %v2412 = vmul.f32 %v2408, 0.5
    %v2413 = vmul.f32 %v2409, 0.5
    %v2414 = vtanh.pop %v2411
    %v2415 = vtanh.pop %v2412
    %v2416 = vtanh.pop %v2413
    %v2417 = vmul.f32 %v2414, 0.5
    %v2418 = vmul.f32 %v2415, 0.5
    %v2419 = vmul.f32 %v2416, 0.5
    %v2420 = vadd.f32 %v2417, 0.5
    %v2421 = vadd.f32 %v2418, 0.5
    %v2422 = vadd.f32 %v2419, 0.5
    %v2423 = vtanh.pop %v2410
    %v2424 = vmul.f32 %v2421, %v2130
    %v2425 = vmul.f32 %v2420, %v2423
    %v2426 = vadd.f32 %v2424, %v2425
    %v2427 = vtanh.pop %v2426
    %v2428 = vmul.f32 %v2422, %v2427
    %v2429 = vld [vmem:[#allocation2 + $0xa0] sm:$0xff]
    %v2430 = vld [vmem:[#allocation2 + $0xa8] sm:$0xff]
    %v2431 = vld [vmem:[#allocation2 + $0xb0] sm:$0xff]
    %v2432 = vld [vmem:[#allocation2 + $0xb8] sm:$0xff]
    %2433 = vmatprep.subr.bf16.mxu0 %v599
    %2434 = vmatpush1.bf16.msra.mxu0 %v598
    %2435 = vmatprep.subr.bf16.mxu0 %v595
    %2436 = vmatpush1.bf16.msra.mxu0 %v594
    %2437 = vmatprep.subr.bf16.mxu0 %v591
    %2438 = vmatpush1.bf16.msra.mxu0 %v590
    %2439 = vmatprep.subr.bf16.mxu0 %v587
    %2440 = vmatpush1.bf16.msra.mxu0 %v586
    %2441 = vmatprep.subr.bf16.mxu0 %v583
    %2442 = vmatpush1.bf16.msra.mxu0 %v582
    %2443 = vmatprep.subr.bf16.mxu0 %v579
    %2444 = vmatpush1.bf16.msra.mxu0 %v578
    %2445 = vmatprep.subr.bf16.mxu0 %v575
    %2446 = vmatpush1.bf16.msra.mxu0 %v574
    %2447 = vmatprep.subr.bf16.mxu0 %v571
    %2448 = vmatpush1.bf16.msra.mxu0 %v570
    %2449 = vmatprep.subr.bf16.mxu0 0
    %2450 = vmatpush2.bf16.msra.mxu0 0
    %2451 = vmatprep.subr.bf16.mxu0 0
    %2452 = vmatpush2.bf16.msra.mxu0 0
    %2453 = vmatprep.subr.bf16.mxu0 0
    %2454 = vmatpush2.bf16.msra.mxu0 0
    %2455 = vmatprep.subr.bf16.mxu0 0
    %2456 = vmatpush2.bf16.msra.mxu0 0
    %2457 = vmatprep.subr.bf16.mxu0 0
    %2458 = vmatpush2.bf16.msra.mxu0 0
    %2459 = vmatprep.subr.bf16.mxu0 0
    %2460 = vmatpush2.bf16.msra.mxu0 0
    %2461 = vmatprep.subr.bf16.mxu0 0
    %2462 = vmatpush2.bf16.msra.mxu0 0
    %2463 = vmatprep.subr.bf16.mxu0 0
    %2464 = vmatpush2.bf16.msra.mxu0 0
    %2465 = vmatprep.mubr.bf16.mxu0 0
    %2466 = vmatmul.mubr.bf16.gmra.mxu0 %v2242
    %v2467 = vpop.f32.mrf.mxu0
    %v2468 = vadd.f32 0.0, %v2467
    %v2469 = vpop.f32.mrf.mxu0
    %v2470 = vadd.f32 0.0, %v2469
    %v2471 = vpop.f32.mrf.mxu0
    %v2472 = vpop.f32.mrf.mxu0
    %2473 = vdwg.mxu0
    %2474 = vmatprep.subr.bf16.mxu0 %v601
    %2475 = vmatpush1.bf16.msra.mxu0 %v600
    %2476 = vmatprep.subr.bf16.mxu0 %v597
    %2477 = vmatpush1.bf16.msra.mxu0 %v596
    %2478 = vmatprep.subr.bf16.mxu0 %v593
    %2479 = vmatpush1.bf16.msra.mxu0 %v592
    %2480 = vmatprep.subr.bf16.mxu0 %v589
    %2481 = vmatpush1.bf16.msra.mxu0 %v588
    %2482 = vmatprep.subr.bf16.mxu0 %v585
    %2483 = vmatpush1.bf16.msra.mxu0 %v584
    %2484 = vmatprep.subr.bf16.mxu0 %v581
    %2485 = vmatpush1.bf16.msra.mxu0 %v580
    %2486 = vmatprep.subr.bf16.mxu0 %v577
    %2487 = vmatpush1.bf16.msra.mxu0 %v576
    %2488 = vmatprep.subr.bf16.mxu0 %v573
    %2489 = vmatpush1.bf16.msra.mxu0 %v572
    %2490 = vmatprep.subr.bf16.mxu0 0
    %2491 = vmatpush2.bf16.msra.mxu0 0
    %2492 = vmatprep.subr.bf16.mxu0 0
    %2493 = vmatpush2.bf16.msra.mxu0 0
    %2494 = vmatprep.subr.bf16.mxu0 0
    %2495 = vmatpush2.bf16.msra.mxu0 0
    %2496 = vmatprep.subr.bf16.mxu0 0
    %2497 = vmatpush2.bf16.msra.mxu0 0
    %2498 = vmatprep.subr.bf16.mxu0 0
    %2499 = vmatpush2.bf16.msra.mxu0 0
    %2500 = vmatprep.subr.bf16.mxu0 0
    %2501 = vmatpush2.bf16.msra.mxu0 0
    %2502 = vmatprep.subr.bf16.mxu0 0
    %2503 = vmatpush2.bf16.msra.mxu0 0
    %2504 = vmatprep.subr.bf16.mxu0 0
    %2505 = vmatpush2.bf16.msra.mxu0 0
    %2506 = vmatprep.mubr.bf16.mxu0 0
    %2507 = vmatmul.mubr.bf16.gmra.mxu0 %v2242
    %v2508 = vpop.f32.mrf.mxu0
    %v2509 = vadd.f32 0.0, %v2508
    %v2510 = vpop.f32.mrf.mxu0
    %v2511 = vadd.f32 0.0, %v2510
    %v2512 = vpop.f32.mrf.mxu0
    %v2513 = vpop.f32.mrf.mxu0
    %2514 = vdwg.mxu0
    %v2515 = vadd.f32 %v2429, %v2468
    %v2516 = vadd.f32 %v2430, %v2470
    %v2517 = vadd.f32 %v2431, %v2509
    %v2518 = vadd.f32 %v2432, %v2511
    %v2519 = vpack.c.bf16 %v2428, %v2428
    %v2520 = vmul.f32 %v2515, 0.5
    %v2521 = vmul.f32 %v2516, 0.5
    %v2522 = vmul.f32 %v2517, 0.5
    %v2523 = vtanh.pop %v2520
    %v2524 = vtanh.pop %v2521
    %v2525 = vtanh.pop %v2522
    %v2526 = vmul.f32 %v2523, 0.5
    %v2527 = vmul.f32 %v2524, 0.5
    %v2528 = vmul.f32 %v2525, 0.5
    %v2529 = vadd.f32 %v2526, 0.5
    %v2530 = vadd.f32 %v2527, 0.5
    %v2531 = vadd.f32 %v2528, 0.5
    %v2532 = vtanh.pop %v2518
    %v2533 = vmul.f32 %v2530, %v2239
    %v2534 = vmul.f32 %v2529, %v2532
    %v2535 = vadd.f32 %v2533, %v2534
    %v2536 = vtanh.pop %v2535
    %v2537 = vmul.f32 %v2531, %v2536
    %v2538 = vpack.c.bf16 %v2537, %v2537
    %2539 = vmatprep.subr.bf16.mxu0 %v864
    %2540 = vmatpush1.bf16.msra.mxu0 %v863
    %2541 = vmatprep.subr.bf16.mxu0 %v860
    %2542 = vmatpush1.bf16.msra.mxu0 %v859
    %2543 = vmatprep.subr.bf16.mxu0 %v856
    %2544 = vmatpush1.bf16.msra.mxu0 %v855
    %2545 = vmatprep.subr.bf16.mxu0 %v852
    %2546 = vmatpush1.bf16.msra.mxu0 %v851
    %2547 = vmatprep.subr.bf16.mxu0 %v848
    %2548 = vmatpush1.bf16.msra.mxu0 %v847
    %2549 = vmatprep.subr.bf16.mxu0 %v844
    %2550 = vmatpush1.bf16.msra.mxu0 %v843
    %2551 = vmatprep.subr.bf16.mxu0 %v840
    %2552 = vmatpush1.bf16.msra.mxu0 %v839
    %2553 = vmatprep.subr.bf16.mxu0 %v836
    %2554 = vmatpush1.bf16.msra.mxu0 %v835
    %2555 = vmatprep.subr.bf16.mxu0 0
    %2556 = vmatpush2.bf16.msra.mxu0 0
    %2557 = vmatprep.subr.bf16.mxu0 0
    %2558 = vmatpush2.bf16.msra.mxu0 0
    %2559 = vmatprep.subr.bf16.mxu0 0
    %2560 = vmatpush2.bf16.msra.mxu0 0
    %2561 = vmatprep.subr.bf16.mxu0 0
    %2562 = vmatpush2.bf16.msra.mxu0 0
    %2563 = vmatprep.subr.bf16.mxu0 0
    %2564 = vmatpush2.bf16.msra.mxu0 0
    %2565 = vmatprep.subr.bf16.mxu0 0
    %2566 = vmatpush2.bf16.msra.mxu0 0
    %2567 = vmatprep.subr.bf16.mxu0 0
    %2568 = vmatpush2.bf16.msra.mxu0 0
    %2569 = vmatprep.subr.bf16.mxu0 0
    %2570 = vmatpush2.bf16.msra.mxu0 0
    %2571 = vmatprep.mubr.bf16.mxu0 0
    %2572 = vmatmul.mubr.bf16.gmra.mxu0 %v2538
    %v2573 = vpop.f32.mrf.mxu0
    %v2574 = vadd.f32 0.0, %v2573
    %v2575 = vpop.f32.mrf.mxu0
    %v2576 = vadd.f32 0.0, %v2575
    %v2577 = vpop.f32.mrf.mxu0
    %v2578 = vpop.f32.mrf.mxu0
    %2579 = vdwg.mxu0
    %2580 = vmatprep.subr.bf16.mxu0 %v866
    %2581 = vmatpush1.bf16.msra.mxu0 %v865
    %2582 = vmatprep.subr.bf16.mxu0 %v862
    %2583 = vmatpush1.bf16.msra.mxu0 %v861
    %2584 = vmatprep.subr.bf16.mxu0 %v858
    %2585 = vmatpush1.bf16.msra.mxu0 %v857
    %2586 = vmatprep.subr.bf16.mxu0 %v854
    %2587 = vmatpush1.bf16.msra.mxu0 %v853
    %2588 = vmatprep.subr.bf16.mxu0 %v850
    %2589 = vmatpush1.bf16.msra.mxu0 %v849
    %2590 = vmatprep.subr.bf16.mxu0 %v846
    %2591 = vmatpush1.bf16.msra.mxu0 %v845
    %2592 = vmatprep.subr.bf16.mxu0 %v842
    %2593 = vmatpush1.bf16.msra.mxu0 %v841
    %2594 = vmatprep.subr.bf16.mxu0 %v838
    %2595 = vmatpush1.bf16.msra.mxu0 %v837
    %2596 = vmatprep.subr.bf16.mxu0 0
    %2597 = vmatpush2.bf16.msra.mxu0 0
    %2598 = vmatprep.subr.bf16.mxu0 0
    %2599 = vmatpush2.bf16.msra.mxu0 0
    %2600 = vmatprep.subr.bf16.mxu0 0
    %2601 = vmatpush2.bf16.msra.mxu0 0
    %2602 = vmatprep.subr.bf16.mxu0 0
    %2603 = vmatpush2.bf16.msra.mxu0 0
    %2604 = vmatprep.subr.bf16.mxu0 0
    %2605 = vmatpush2.bf16.msra.mxu0 0
    %2606 = vmatprep.subr.bf16.mxu0 0
    %2607 = vmatpush2.bf16.msra.mxu0 0
    %2608 = vmatprep.subr.bf16.mxu0 0
    %2609 = vmatpush2.bf16.msra.mxu0 0
    %2610 = vmatprep.subr.bf16.mxu0 0
    %2611 = vmatpush2.bf16.msra.mxu0 0
    %2612 = vmatprep.mubr.bf16.mxu0 0
    %2613 = vmatmul.mubr.bf16.gmra.mxu0 %v2538
    %v2614 = vpop.f32.mrf.mxu0
    %v2615 = vadd.f32 0.0, %v2614
    %v2616 = vpop.f32.mrf.mxu0
    %v2617 = vadd.f32 0.0, %v2616
    %v2618 = vpop.f32.mrf.mxu0
    %v2619 = vpop.f32.mrf.mxu0
    %2620 = vdwg.mxu0
    %2621 = vmatprep.subr.bf16.mxu0 %v1106
    %2622 = vmatpush1.bf16.msra.mxu0 %v1105
    %2623 = vmatprep.subr.bf16.mxu0 %v1102
    %2624 = vmatpush1.bf16.msra.mxu0 %v1101
    %2625 = vmatprep.subr.bf16.mxu0 %v1098
    %2626 = vmatpush1.bf16.msra.mxu0 %v1097
    %2627 = vmatprep.subr.bf16.mxu0 %v1094
    %2628 = vmatpush1.bf16.msra.mxu0 %v1093
    %2629 = vmatprep.subr.bf16.mxu0 %v1090
    %2630 = vmatpush1.bf16.msra.mxu0 %v1089
    %2631 = vmatprep.subr.bf16.mxu0 %v1086
    %2632 = vmatpush1.bf16.msra.mxu0 %v1085
    %2633 = vmatprep.subr.bf16.mxu0 %v1082
    %2634 = vmatpush1.bf16.msra.mxu0 %v1081
    %2635 = vmatprep.subr.bf16.mxu0 %v1078
    %2636 = vmatpush1.bf16.msra.mxu0 %v1077
    %2637 = vmatprep.subr.bf16.mxu0 0
    %2638 = vmatpush2.bf16.msra.mxu0 0
    %2639 = vmatprep.subr.bf16.mxu0 0
    %2640 = vmatpush2.bf16.msra.mxu0 0
    %2641 = vmatprep.subr.bf16.mxu0 0
    %2642 = vmatpush2.bf16.msra.mxu0 0
    %2643 = vmatprep.subr.bf16.mxu0 0
    %2644 = vmatpush2.bf16.msra.mxu0 0
    %2645 = vmatprep.subr.bf16.mxu0 0
    %2646 = vmatpush2.bf16.msra.mxu0 0
    %2647 = vmatprep.subr.bf16.mxu0 0
    %2648 = vmatpush2.bf16.msra.mxu0 0
    %2649 = vmatprep.subr.bf16.mxu0 0
    %2650 = vmatpush2.bf16.msra.mxu0 0
    %2651 = vmatprep.subr.bf16.mxu0 0
    %2652 = vmatpush2.bf16.msra.mxu0 0
    %2653 = vmatprep.mubr.bf16.mxu0 0
    %2654 = vmatmul.mubr.bf16.gmra.mxu0 %v2519
    %v2655 = vpop.f32.mrf.mxu0
    %v2656 = vadd.f32 %v2574, %v2655
    %v2657 = vpop.f32.mrf.mxu0
    %v2658 = vadd.f32 %v2576, %v2657
    %v2659 = vpop.f32.mrf.mxu0
    %v2660 = vpop.f32.mrf.mxu0
    %2661 = vdwg.mxu0
    %2662 = vmatprep.subr.bf16.mxu0 %v1108
    %2663 = vmatpush1.bf16.msra.mxu0 %v1107
    %2664 = vmatprep.subr.bf16.mxu0 %v1104
    %2665 = vmatpush1.bf16.msra.mxu0 %v1103
    %2666 = vmatprep.subr.bf16.mxu0 %v1100
    %2667 = vmatpush1.bf16.msra.mxu0 %v1099
    %2668 = vmatprep.subr.bf16.mxu0 %v1096
    %2669 = vmatpush1.bf16.msra.mxu0 %v1095
    %2670 = vmatprep.subr.bf16.mxu0 %v1092
    %2671 = vmatpush1.bf16.msra.mxu0 %v1091
    %2672 = vmatprep.subr.bf16.mxu0 %v1088
    %2673 = vmatpush1.bf16.msra.mxu0 %v1087
    %2674 = vmatprep.subr.bf16.mxu0 %v1084
    %2675 = vmatpush1.bf16.msra.mxu0 %v1083
    %2676 = vmatprep.subr.bf16.mxu0 %v1080
    %2677 = vmatpush1.bf16.msra.mxu0 %v1079
    %2678 = vmatprep.subr.bf16.mxu0 0
    %2679 = vmatpush2.bf16.msra.mxu0 0
    %2680 = vmatprep.subr.bf16.mxu0 0
    %2681 = vmatpush2.bf16.msra.mxu0 0
    %2682 = vmatprep.subr.bf16.mxu0 0
    %2683 = vmatpush2.bf16.msra.mxu0 0
    %2684 = vmatprep.subr.bf16.mxu0 0
    %2685 = vmatpush2.bf16.msra.mxu0 0
    %2686 = vmatprep.subr.bf16.mxu0 0
    %2687 = vmatpush2.bf16.msra.mxu0 0
    %2688 = vmatprep.subr.bf16.mxu0 0
    %2689 = vmatpush2.bf16.msra.mxu0 0
    %2690 = vmatprep.subr.bf16.mxu0 0
    %2691 = vmatpush2.bf16.msra.mxu0 0
    %2692 = vmatprep.subr.bf16.mxu0 0
    %2693 = vmatpush2.bf16.msra.mxu0 0
    %2694 = vmatprep.mubr.bf16.mxu0 0
    %2695 = vmatmul.mubr.bf16.gmra.mxu0 %v2519
    %v2696 = vpop.f32.mrf.mxu0
    %v2697 = vadd.f32 %v2615, %v2696
    %v2698 = vpop.f32.mrf.mxu0
    %v2699 = vadd.f32 %v2617, %v2698
    %v2700 = vpop.f32.mrf.mxu0
    %v2701 = vpop.f32.mrf.mxu0
    %2702 = vdwg.mxu0
    %v2703 = vadd.f32 %v2656, %v453
    %v2704 = vadd.f32 %v2658, %v457
    %v2705 = vadd.f32 %v2697, %v461
    %v2706 = vadd.f32 %v2699, %v465
    %v2707 = vmul.f32 %v2703, 0.5
    %v2708 = vmul.f32 %v2704, 0.5
    %v2709 = vmul.f32 %v2705, 0.5
    %v2710 = vtanh.pop %v2707
    %v2711 = vtanh.pop %v2708
    %v2712 = vtanh.pop %v2709
    %v2713 = vmul.f32 %v2710, 0.5
    %v2714 = vmul.f32 %v2711, 0.5
    %v2715 = vmul.f32 %v2712, 0.5
    %v2716 = vadd.f32 %v2713, 0.5
    %v2717 = vadd.f32 %v2714, 0.5
    %v2718 = vadd.f32 %v2715, 0.5
    %v2719 = vtanh.pop %v2706
    %v2720 = vmul.f32 %v2717, %v2426
    %v2721 = vmul.f32 %v2716, %v2719
    %v2722 = vadd.f32 %v2720, %v2721
    %v2723 = vtanh.pop %v2722
    %v2724 = vmul.f32 %v2718, %v2723
    %v2725 = vld [vmem:[#allocation2 + $0xc0] sm:$0xff]
    %v2726 = vld [vmem:[#allocation2 + $0xc8] sm:$0xff]
    %v2727 = vld [vmem:[#allocation2 + $0xd0] sm:$0xff]
    %v2728 = vld [vmem:[#allocation2 + $0xd8] sm:$0xff]
    %2729 = vmatprep.subr.bf16.mxu0 %v599
    %2730 = vmatpush1.bf16.msra.mxu0 %v598
    %2731 = vmatprep.subr.bf16.mxu0 %v595
    %2732 = vmatpush1.bf16.msra.mxu0 %v594
    %2733 = vmatprep.subr.bf16.mxu0 %v591
    %2734 = vmatpush1.bf16.msra.mxu0 %v590
    %2735 = vmatprep.subr.bf16.mxu0 %v587
    %2736 = vmatpush1.bf16.msra.mxu0 %v586
    %2737 = vmatprep.subr.bf16.mxu0 %v583
    %2738 = vmatpush1.bf16.msra.mxu0 %v582
    %2739 = vmatprep.subr.bf16.mxu0 %v579
    %2740 = vmatpush1.bf16.msra.mxu0 %v578
    %2741 = vmatprep.subr.bf16.mxu0 %v575
    %2742 = vmatpush1.bf16.msra.mxu0 %v574
    %2743 = vmatprep.subr.bf16.mxu0 %v571
    %2744 = vmatpush1.bf16.msra.mxu0 %v570
    %2745 = vmatprep.subr.bf16.mxu0 0
    %2746 = vmatpush2.bf16.msra.mxu0 0
    %2747 = vmatprep.subr.bf16.mxu0 0
    %2748 = vmatpush2.bf16.msra.mxu0 0
    %2749 = vmatprep.subr.bf16.mxu0 0
    %2750 = vmatpush2.bf16.msra.mxu0 0
    %2751 = vmatprep.subr.bf16.mxu0 0
    %2752 = vmatpush2.bf16.msra.mxu0 0
    %2753 = vmatprep.subr.bf16.mxu0 0
    %2754 = vmatpush2.bf16.msra.mxu0 0
    %2755 = vmatprep.subr.bf16.mxu0 0
    %2756 = vmatpush2.bf16.msra.mxu0 0
    %2757 = vmatprep.subr.bf16.mxu0 0
    %2758 = vmatpush2.bf16.msra.mxu0 0
    %2759 = vmatprep.subr.bf16.mxu0 0
    %2760 = vmatpush2.bf16.msra.mxu0 0
    %2761 = vmatprep.mubr.bf16.mxu0 0
    %2762 = vmatmul.mubr.bf16.gmra.mxu0 %v2538
    %v2763 = vpop.f32.mrf.mxu0
    %v2764 = vadd.f32 0.0, %v2763
    %v2765 = vpop.f32.mrf.mxu0
    %v2766 = vadd.f32 0.0, %v2765
    %v2767 = vpop.f32.mrf.mxu0
    %v2768 = vpop.f32.mrf.mxu0
    %2769 = vdwg.mxu0
    %2770 = vmatprep.subr.bf16.mxu0 %v601
    %2771 = vmatpush1.bf16.msra.mxu0 %v600
    %2772 = vmatprep.subr.bf16.mxu0 %v597
    %2773 = vmatpush1.bf16.msra.mxu0 %v596
    %2774 = vmatprep.subr.bf16.mxu0 %v593
    %2775 = vmatpush1.bf16.msra.mxu0 %v592
    %2776 = vmatprep.subr.bf16.mxu0 %v589
    %2777 = vmatpush1.bf16.msra.mxu0 %v588
    %2778 = vmatprep.subr.bf16.mxu0 %v585
    %2779 = vmatpush1.bf16.msra.mxu0 %v584
    %2780 = vmatprep.subr.bf16.mxu0 %v581
    %2781 = vmatpush1.bf16.msra.mxu0 %v580
    %2782 = vmatprep.subr.bf16.mxu0 %v577
    %2783 = vmatpush1.bf16.msra.mxu0 %v576
    %2784 = vmatprep.subr.bf16.mxu0 %v573
    %2785 = vmatpush1.bf16.msra.mxu0 %v572
    %2786 = vmatprep.subr.bf16.mxu0 0
    %2787 = vmatpush2.bf16.msra.mxu0 0
    %2788 = vmatprep.subr.bf16.mxu0 0
    %2789 = vmatpush2.bf16.msra.mxu0 0
    %2790 = vmatprep.subr.bf16.mxu0 0
    %2791 = vmatpush2.bf16.msra.mxu0 0
    %2792 = vmatprep.subr.bf16.mxu0 0
    %2793 = vmatpush2.bf16.msra.mxu0 0
    %2794 = vmatprep.subr.bf16.mxu0 0
    %2795 = vmatpush2.bf16.msra.mxu0 0
    %2796 = vmatprep.subr.bf16.mxu0 0
    %2797 = vmatpush2.bf16.msra.mxu0 0
    %2798 = vmatprep.subr.bf16.mxu0 0
    %2799 = vmatpush2.bf16.msra.mxu0 0
    %2800 = vmatprep.subr.bf16.mxu0 0
    %2801 = vmatpush2.bf16.msra.mxu0 0
    %2802 = vmatprep.mubr.bf16.mxu0 0
    %2803 = vmatmul.mubr.bf16.gmra.mxu0 %v2538
    %v2804 = vpop.f32.mrf.mxu0
    %v2805 = vadd.f32 0.0, %v2804
    %v2806 = vpop.f32.mrf.mxu0
    %v2807 = vadd.f32 0.0, %v2806
    %v2808 = vpop.f32.mrf.mxu0
    %v2809 = vpop.f32.mrf.mxu0
    %2810 = vdwg.mxu0
    %v2811 = vadd.f32 %v2725, %v2764
    %v2812 = vadd.f32 %v2726, %v2766
    %v2813 = vadd.f32 %v2727, %v2805
    %v2814 = vadd.f32 %v2728, %v2807
    %v2815 = vpack.c.bf16 %v2724, %v2724
    %v2816 = vmul.f32 %v2811, 0.5
    %v2817 = vmul.f32 %v2812, 0.5
    %v2818 = vmul.f32 %v2813, 0.5
    %v2819 = vtanh.pop %v2816
    %v2820 = vtanh.pop %v2817
    %v2821 = vtanh.pop %v2818
    %v2822 = vmul.f32 %v2819, 0.5
    %v2823 = vmul.f32 %v2820, 0.5
    %v2824 = vmul.f32 %v2821, 0.5
    %v2825 = vadd.f32 %v2822, 0.5
    %v2826 = vadd.f32 %v2823, 0.5
    %v2827 = vadd.f32 %v2824, 0.5
    %v2828 = vtanh.pop %v2814
    %v2829 = vmul.f32 %v2826, %v2535
    %v2830 = vmul.f32 %v2825, %v2828
    %v2831 = vadd.f32 %v2829, %v2830
    %v2832 = vtanh.pop %v2831
    %v2833 = vmul.f32 %v2827, %v2832
    %v2834 = vpack.c.bf16 %v2833, %v2833
    %2835 = vmatprep.subr.bf16.mxu0 %v864
    %2836 = vmatpush1.bf16.msra.mxu0 %v863
    %2837 = vmatprep.subr.bf16.mxu0 %v860
    %2838 = vmatpush1.bf16.msra.mxu0 %v859
    %2839 = vmatprep.subr.bf16.mxu0 %v856
    %2840 = vmatpush1.bf16.msra.mxu0 %v855
    %2841 = vmatprep.subr.bf16.mxu0 %v852
    %2842 = vmatpush1.bf16.msra.mxu0 %v851
    %2843 = vmatprep.subr.bf16.mxu0 %v848
    %2844 = vmatpush1.bf16.msra.mxu0 %v847
    %2845 = vmatprep.subr.bf16.mxu0 %v844
    %2846 = vmatpush1.bf16.msra.mxu0 %v843
    %2847 = vmatprep.subr.bf16.mxu0 %v840
    %2848 = vmatpush1.bf16.msra.mxu0 %v839
    %2849 = vmatprep.subr.bf16.mxu0 %v836
    %2850 = vmatpush1.bf16.msra.mxu0 %v835
    %2851 = vmatprep.subr.bf16.mxu0 0
    %2852 = vmatpush2.bf16.msra.mxu0 0
    %2853 = vmatprep.subr.bf16.mxu0 0
    %2854 = vmatpush2.bf16.msra.mxu0 0
    %2855 = vmatprep.subr.bf16.mxu0 0
    %2856 = vmatpush2.bf16.msra.mxu0 0
    %2857 = vmatprep.subr.bf16.mxu0 0
    %2858 = vmatpush2.bf16.msra.mxu0 0
    %2859 = vmatprep.subr.bf16.mxu0 0
    %2860 = vmatpush2.bf16.msra.mxu0 0
    %2861 = vmatprep.subr.bf16.mxu0 0
    %2862 = vmatpush2.bf16.msra.mxu0 0
    %2863 = vmatprep.subr.bf16.mxu0 0
    %2864 = vmatpush2.bf16.msra.mxu0 0
    %2865 = vmatprep.subr.bf16.mxu0 0
    %2866 = vmatpush2.bf16.msra.mxu0 0
    %2867 = vmatprep.mubr.bf16.mxu0 0
    %2868 = vmatmul.mubr.bf16.gmra.mxu0 %v2834
    %v2869 = vpop.f32.mrf.mxu0
    %v2870 = vadd.f32 0.0, %v2869
    %v2871 = vpop.f32.mrf.mxu0
    %v2872 = vadd.f32 0.0, %v2871
    %v2873 = vpop.f32.mrf.mxu0
    %v2874 = vpop.f32.mrf.mxu0
    %2875 = vdwg.mxu0
    %2876 = vmatprep.subr.bf16.mxu0 %v866
    %2877 = vmatpush1.bf16.msra.mxu0 %v865
    %2878 = vmatprep.subr.bf16.mxu0 %v862
    %2879 = vmatpush1.bf16.msra.mxu0 %v861
    %2880 = vmatprep.subr.bf16.mxu0 %v858
    %2881 = vmatpush1.bf16.msra.mxu0 %v857
    %2882 = vmatprep.subr.bf16.mxu0 %v854
    %2883 = vmatpush1.bf16.msra.mxu0 %v853
    %2884 = vmatprep.subr.bf16.mxu0 %v850
    %2885 = vmatpush1.bf16.msra.mxu0 %v849
    %2886 = vmatprep.subr.bf16.mxu0 %v846
    %2887 = vmatpush1.bf16.msra.mxu0 %v845
    %2888 = vmatprep.subr.bf16.mxu0 %v842
    %2889 = vmatpush1.bf16.msra.mxu0 %v841
    %2890 = vmatprep.subr.bf16.mxu0 %v838
    %2891 = vmatpush1.bf16.msra.mxu0 %v837
    %2892 = vmatprep.subr.bf16.mxu0 0
    %2893 = vmatpush2.bf16.msra.mxu0 0
    %2894 = vmatprep.subr.bf16.mxu0 0
    %2895 = vmatpush2.bf16.msra.mxu0 0
    %2896 = vmatprep.subr.bf16.mxu0 0
    %2897 = vmatpush2.bf16.msra.mxu0 0
    %2898 = vmatprep.subr.bf16.mxu0 0
    %2899 = vmatpush2.bf16.msra.mxu0 0
    %2900 = vmatprep.subr.bf16.mxu0 0
    %2901 = vmatpush2.bf16.msra.mxu0 0
    %2902 = vmatprep.subr.bf16.mxu0 0
    %2903 = vmatpush2.bf16.msra.mxu0 0
    %2904 = vmatprep.subr.bf16.mxu0 0
    %2905 = vmatpush2.bf16.msra.mxu0 0
    %2906 = vmatprep.subr.bf16.mxu0 0
    %2907 = vmatpush2.bf16.msra.mxu0 0
    %2908 = vmatprep.mubr.bf16.mxu0 0
    %2909 = vmatmul.mubr.bf16.gmra.mxu0 %v2834
    %v2910 = vpop.f32.mrf.mxu0
    %v2911 = vadd.f32 0.0, %v2910
    %v2912 = vpop.f32.mrf.mxu0
    %v2913 = vadd.f32 0.0, %v2912
    %v2914 = vpop.f32.mrf.mxu0
    %v2915 = vpop.f32.mrf.mxu0
    %2916 = vdwg.mxu0
    %2917 = vmatprep.subr.bf16.mxu0 %v1106
    %2918 = vmatpush1.bf16.msra.mxu0 %v1105
    %2919 = vmatprep.subr.bf16.mxu0 %v1102
    %2920 = vmatpush1.bf16.msra.mxu0 %v1101
    %2921 = vmatprep.subr.bf16.mxu0 %v1098
    %2922 = vmatpush1.bf16.msra.mxu0 %v1097
    %2923 = vmatprep.subr.bf16.mxu0 %v1094
    %2924 = vmatpush1.bf16.msra.mxu0 %v1093
    %2925 = vmatprep.subr.bf16.mxu0 %v1090
    %2926 = vmatpush1.bf16.msra.mxu0 %v1089
    %2927 = vmatprep.subr.bf16.mxu0 %v1086
    %2928 = vmatpush1.bf16.msra.mxu0 %v1085
    %2929 = vmatprep.subr.bf16.mxu0 %v1082
    %2930 = vmatpush1.bf16.msra.mxu0 %v1081
    %2931 = vmatprep.subr.bf16.mxu0 %v1078
    %2932 = vmatpush1.bf16.msra.mxu0 %v1077
    %2933 = vmatprep.subr.bf16.mxu0 0
    %2934 = vmatpush2.bf16.msra.mxu0 0
    %2935 = vmatprep.subr.bf16.mxu0 0
    %2936 = vmatpush2.bf16.msra.mxu0 0
    %2937 = vmatprep.subr.bf16.mxu0 0
    %2938 = vmatpush2.bf16.msra.mxu0 0
    %2939 = vmatprep.subr.bf16.mxu0 0
    %2940 = vmatpush2.bf16.msra.mxu0 0
    %2941 = vmatprep.subr.bf16.mxu0 0
    %2942 = vmatpush2.bf16.msra.mxu0 0
    %2943 = vmatprep.subr.bf16.mxu0 0
    %2944 = vmatpush2.bf16.msra.mxu0 0
    %2945 = vmatprep.subr.bf16.mxu0 0
    %2946 = vmatpush2.bf16.msra.mxu0 0
    %2947 = vmatprep.subr.bf16.mxu0 0
    %2948 = vmatpush2.bf16.msra.mxu0 0
    %2949 = vmatprep.mubr.bf16.mxu0 0
    %2950 = vmatmul.mubr.bf16.gmra.mxu0 %v2815
    %v2951 = vpop.f32.mrf.mxu0
    %v2952 = vadd.f32 %v2870, %v2951
    %v2953 = vpop.f32.mrf.mxu0
    %v2954 = vadd.f32 %v2872, %v2953
    %v2955 = vpop.f32.mrf.mxu0
    %v2956 = vpop.f32.mrf.mxu0
    %2957 = vdwg.mxu0
    %2958 = vmatprep.subr.bf16.mxu0 %v1108
    %2959 = vmatpush1.bf16.msra.mxu0 %v1107
    %2960 = vmatprep.subr.bf16.mxu0 %v1104
    %2961 = vmatpush1.bf16.msra.mxu0 %v1103
    %2962 = vmatprep.subr.bf16.mxu0 %v1100
    %2963 = vmatpush1.bf16.msra.mxu0 %v1099
    %2964 = vmatprep.subr.bf16.mxu0 %v1096
    %2965 = vmatpush1.bf16.msra.mxu0 %v1095
    %2966 = vmatprep.subr.bf16.mxu0 %v1092
    %2967 = vmatpush1.bf16.msra.mxu0 %v1091
    %2968 = vmatprep.subr.bf16.mxu0 %v1088
    %2969 = vmatpush1.bf16.msra.mxu0 %v1087
    %2970 = vmatprep.subr.bf16.mxu0 %v1084
    %2971 = vmatpush1.bf16.msra.mxu0 %v1083
    %2972 = vmatprep.subr.bf16.mxu0 %v1080
    %2973 = vmatpush1.bf16.msra.mxu0 %v1079
    %2974 = vmatprep.subr.bf16.mxu0 0
    %2975 = vmatpush2.bf16.msra.mxu0 0
    %2976 = vmatprep.subr.bf16.mxu0 0
    %2977 = vmatpush2.bf16.msra.mxu0 0
    %2978 = vmatprep.subr.bf16.mxu0 0
    %2979 = vmatpush2.bf16.msra.mxu0 0
    %2980 = vmatprep.subr.bf16.mxu0 0
    %2981 = vmatpush2.bf16.msra.mxu0 0
    %2982 = vmatprep.subr.bf16.mxu0 0
    %2983 = vmatpush2.bf16.msra.mxu0 0
    %2984 = vmatprep.subr.bf16.mxu0 0
    %2985 = vmatpush2.bf16.msra.mxu0 0
    %2986 = vmatprep.subr.bf16.mxu0 0
    %2987 = vmatpush2.bf16.msra.mxu0 0
    %2988 = vmatprep.subr.bf16.mxu0 0
    %2989 = vmatpush2.bf16.msra.mxu0 0
    %2990 = vmatprep.mubr.bf16.mxu0 0
    %2991 = vmatmul.mubr.bf16.gmra.mxu0 %v2815
    %v2992 = vpop.f32.mrf.mxu0
    %v2993 = vadd.f32 %v2911, %v2992
    %v2994 = vpop.f32.mrf.mxu0
    %v2995 = vadd.f32 %v2913, %v2994
    %v2996 = vpop.f32.mrf.mxu0
    %v2997 = vpop.f32.mrf.mxu0
    %2998 = vdwg.mxu0
    %v2999 = vadd.f32 %v2952, %v453
    %v3000 = vadd.f32 %v2954, %v457
    %v3001 = vadd.f32 %v2993, %v461
    %v3002 = vadd.f32 %v2995, %v465
    %v3003 = vmul.f32 %v2999, 0.5
    %v3004 = vmul.f32 %v3000, 0.5
    %v3005 = vmul.f32 %v3001, 0.5
    %v3006 = vtanh.pop %v3003
    %v3007 = vtanh.pop %v3004
    %v3008 = vtanh.pop %v3005
    %v3009 = vmul.f32 %v3006, 0.5
    %v3010 = vmul.f32 %v3007, 0.5
    %v3011 = vmul.f32 %v3008, 0.5
    %v3012 = vadd.f32 %v3009, 0.5
    %v3013 = vadd.f32 %v3010, 0.5
    %v3014 = vadd.f32 %v3011, 0.5
    %v3015 = vtanh.pop %v3002
    %v3016 = vmul.f32 %v3013, %v2722
    %v3017 = vmul.f32 %v3012, %v3015
    %v3018 = vadd.f32 %v3016, %v3017
    %v3019 = vtanh.pop %v3018
    %v3020 = vmul.f32 %v3014, %v3019
    %v3021 = vld [vmem:[#allocation2 + $0xe0] sm:$0xff]
    %v3022 = vld [vmem:[#allocation2 + $0xe8] sm:$0xff]
    %v3023 = vld [vmem:[#allocation2 + $0xf0] sm:$0xff]
    %v3024 = vld [vmem:[#allocation2 + $0xf8] sm:$0xff]
    %3025 = vmatprep.subr.bf16.mxu0 %v599
    %3026 = vmatpush1.bf16.msra.mxu0 %v598
    %3027 = vmatprep.subr.bf16.mxu0 %v595
    %3028 = vmatpush1.bf16.msra.mxu0 %v594
    %3029 = vmatprep.subr.bf16.mxu0 %v591
    %3030 = vmatpush1.bf16.msra.mxu0 %v590
    %3031 = vmatprep.subr.bf16.mxu0 %v587
    %3032 = vmatpush1.bf16.msra.mxu0 %v586
    %3033 = vmatprep.subr.bf16.mxu0 %v583
    %3034 = vmatpush1.bf16.msra.mxu0 %v582
    %3035 = vmatprep.subr.bf16.mxu0 %v579
    %3036 = vmatpush1.bf16.msra.mxu0 %v578
    %3037 = vmatprep.subr.bf16.mxu0 %v575
    %3038 = vmatpush1.bf16.msra.mxu0 %v574
    %3039 = vmatprep.subr.bf16.mxu0 %v571
    %3040 = vmatpush1.bf16.msra.mxu0 %v570
    %3041 = vmatprep.subr.bf16.mxu0 0
    %3042 = vmatpush2.bf16.msra.mxu0 0
    %3043 = vmatprep.subr.bf16.mxu0 0
    %3044 = vmatpush2.bf16.msra.mxu0 0
    %3045 = vmatprep.subr.bf16.mxu0 0
    %3046 = vmatpush2.bf16.msra.mxu0 0
    %3047 = vmatprep.subr.bf16.mxu0 0
    %3048 = vmatpush2.bf16.msra.mxu0 0
    %3049 = vmatprep.subr.bf16.mxu0 0
    %3050 = vmatpush2.bf16.msra.mxu0 0
    %3051 = vmatprep.subr.bf16.mxu0 0
    %3052 = vmatpush2.bf16.msra.mxu0 0
    %3053 = vmatprep.subr.bf16.mxu0 0
    %3054 = vmatpush2.bf16.msra.mxu0 0
    %3055 = vmatprep.subr.bf16.mxu0 0
    %3056 = vmatpush2.bf16.msra.mxu0 0
    %3057 = vmatprep.mubr.bf16.mxu0 0
    %3058 = vmatmul.mubr.bf16.gmra.mxu0 %v2834
    %v3059 = vpop.f32.mrf.mxu0
    %v3060 = vadd.f32 0.0, %v3059
    %v3061 = vpop.f32.mrf.mxu0
    %v3062 = vadd.f32 0.0, %v3061
    %v3063 = vpop.f32.mrf.mxu0
    %v3064 = vpop.f32.mrf.mxu0
    %3065 = vdwg.mxu0
    %3066 = vmatprep.subr.bf16.mxu0 %v601
    %3067 = vmatpush1.bf16.msra.mxu0 %v600
    %3068 = vmatprep.subr.bf16.mxu0 %v597
    %3069 = vmatpush1.bf16.msra.mxu0 %v596
    %3070 = vmatprep.subr.bf16.mxu0 %v593
    %3071 = vmatpush1.bf16.msra.mxu0 %v592
    %3072 = vmatprep.subr.bf16.mxu0 %v589
    %3073 = vmatpush1.bf16.msra.mxu0 %v588
    %3074 = vmatprep.subr.bf16.mxu0 %v585
    %3075 = vmatpush1.bf16.msra.mxu0 %v584
    %3076 = vmatprep.subr.bf16.mxu0 %v581
    %3077 = vmatpush1.bf16.msra.mxu0 %v580
    %3078 = vmatprep.subr.bf16.mxu0 %v577
    %3079 = vmatpush1.bf16.msra.mxu0 %v576
    %3080 = vmatprep.subr.bf16.mxu0 %v573
    %3081 = vmatpush1.bf16.msra.mxu0 %v572
    %3082 = vmatprep.subr.bf16.mxu0 0
    %3083 = vmatpush2.bf16.msra.mxu0 0
    %3084 = vmatprep.subr.bf16.mxu0 0
    %3085 = vmatpush2.bf16.msra.mxu0 0
    %3086 = vmatprep.subr.bf16.mxu0 0
    %3087 = vmatpush2.bf16.msra.mxu0 0
    %3088 = vmatprep.subr.bf16.mxu0 0
    %3089 = vmatpush2.bf16.msra.mxu0 0
    %3090 = vmatprep.subr.bf16.mxu0 0
    %3091 = vmatpush2.bf16.msra.mxu0 0
    %3092 = vmatprep.subr.bf16.mxu0 0
    %3093 = vmatpush2.bf16.msra.mxu0 0
    %3094 = vmatprep.subr.bf16.mxu0 0
    %3095 = vmatpush2.bf16.msra.mxu0 0
    %3096 = vmatprep.subr.bf16.mxu0 0
    %3097 = vmatpush2.bf16.msra.mxu0 0
    %3098 = vmatprep.mubr.bf16.mxu0 0
    %3099 = vmatmul.mubr.bf16.gmra.mxu0 %v2834
    %v3100 = vpop.f32.mrf.mxu0
    %v3101 = vadd.f32 0.0, %v3100
    %v3102 = vpop.f32.mrf.mxu0
    %v3103 = vadd.f32 0.0, %v3102
    %v3104 = vpop.f32.mrf.mxu0
    %v3105 = vpop.f32.mrf.mxu0
    %3106 = vdwg.mxu0
    %v3107 = vadd.f32 %v3021, %v3060
    %v3108 = vadd.f32 %v3022, %v3062
    %v3109 = vadd.f32 %v3023, %v3101
    %v3110 = vadd.f32 %v3024, %v3103
    %v3111 = vpack.c.bf16 %v3020, %v3020
    %v3112 = vmul.f32 %v3107, 0.5
    %v3113 = vmul.f32 %v3108, 0.5
    %v3114 = vmul.f32 %v3109, 0.5
    %v3115 = vtanh.pop %v3112
    %v3116 = vtanh.pop %v3113
    %v3117 = vtanh.pop %v3114
    %v3118 = vmul.f32 %v3115, 0.5
    %v3119 = vmul.f32 %v3116, 0.5
    %v3120 = vmul.f32 %v3117, 0.5
    %v3121 = vadd.f32 %v3118, 0.5
    %v3122 = vadd.f32 %v3119, 0.5
    %v3123 = vadd.f32 %v3120, 0.5
    %v3124 = vtanh.pop %v3110
    %v3125 = vmul.f32 %v3122, %v2831
    %v3126 = vmul.f32 %v3121, %v3124
    %v3127 = vadd.f32 %v3125, %v3126
    %v3128 = vtanh.pop %v3127
    %v3129 = vmul.f32 %v3123, %v3128
    %v3130 = vpack.c.bf16 %v3129, %v3129
    %3131 = vmatprep.subr.bf16.mxu0 %v864
    %3132 = vmatpush1.bf16.msra.mxu0 %v863
    %3133 = vmatprep.subr.bf16.mxu0 %v860
    %3134 = vmatpush1.bf16.msra.mxu0 %v859
    %3135 = vmatprep.subr.bf16.mxu0 %v856
    %3136 = vmatpush1.bf16.msra.mxu0 %v855
    %3137 = vmatprep.subr.bf16.mxu0 %v852
    %3138 = vmatpush1.bf16.msra.mxu0 %v851
    %3139 = vmatprep.subr.bf16.mxu0 %v848
    %3140 = vmatpush1.bf16.msra.mxu0 %v847
    %3141 = vmatprep.subr.bf16.mxu0 %v844
    %3142 = vmatpush1.bf16.msra.mxu0 %v843
    %3143 = vmatprep.subr.bf16.mxu0 %v840
    %3144 = vmatpush1.bf16.msra.mxu0 %v839
    %3145 = vmatprep.subr.bf16.mxu0 %v836
    %3146 = vmatpush1.bf16.msra.mxu0 %v835
    %3147 = vmatprep.subr.bf16.mxu0 0
    %3148 = vmatpush2.bf16.msra.mxu0 0
    %3149 = vmatprep.subr.bf16.mxu0 0
    %3150 = vmatpush2.bf16.msra.mxu0 0
    %3151 = vmatprep.subr.bf16.mxu0 0
    %3152 = vmatpush2.bf16.msra.mxu0 0
    %3153 = vmatprep.subr.bf16.mxu0 0
    %3154 = vmatpush2.bf16.msra.mxu0 0
    %3155 = vmatprep.subr.bf16.mxu0 0
    %3156 = vmatpush2.bf16.msra.mxu0 0
    %3157 = vmatprep.subr.bf16.mxu0 0
    %3158 = vmatpush2.bf16.msra.mxu0 0
    %3159 = vmatprep.subr.bf16.mxu0 0
    %3160 = vmatpush2.bf16.msra.mxu0 0
    %3161 = vmatprep.subr.bf16.mxu0 0
    %3162 = vmatpush2.bf16.msra.mxu0 0
    %3163 = vmatprep.mubr.bf16.mxu0 0
    %3164 = vmatmul.mubr.bf16.gmra.mxu0 %v3130
    %v3165 = vpop.f32.mrf.mxu0
    %v3166 = vadd.f32 0.0, %v3165
    %v3167 = vpop.f32.mrf.mxu0
    %v3168 = vadd.f32 0.0, %v3167
    %v3169 = vpop.f32.mrf.mxu0
    %v3170 = vpop.f32.mrf.mxu0
    %3171 = vdwg.mxu0
    %3172 = vmatprep.subr.bf16.mxu0 %v866
    %3173 = vmatpush1.bf16.msra.mxu0 %v865
    %3174 = vmatprep.subr.bf16.mxu0 %v862
    %3175 = vmatpush1.bf16.msra.mxu0 %v861
    %3176 = vmatprep.subr.bf16.mxu0 %v858
    %3177 = vmatpush1.bf16.msra.mxu0 %v857
    %3178 = vmatprep.subr.bf16.mxu0 %v854
    %3179 = vmatpush1.bf16.msra.mxu0 %v853
    %3180 = vmatprep.subr.bf16.mxu0 %v850
    %3181 = vmatpush1.bf16.msra.mxu0 %v849
    %3182 = vmatprep.subr.bf16.mxu0 %v846
    %3183 = vmatpush1.bf16.msra.mxu0 %v845
    %3184 = vmatprep.subr.bf16.mxu0 %v842
    %3185 = vmatpush1.bf16.msra.mxu0 %v841
    %3186 = vmatprep.subr.bf16.mxu0 %v838
    %3187 = vmatpush1.bf16.msra.mxu0 %v837
    %3188 = vmatprep.subr.bf16.mxu0 0
    %3189 = vmatpush2.bf16.msra.mxu0 0
    %3190 = vmatprep.subr.bf16.mxu0 0
    %3191 = vmatpush2.bf16.msra.mxu0 0
    %3192 = vmatprep.subr.bf16.mxu0 0
    %3193 = vmatpush2.bf16.msra.mxu0 0
    %3194 = vmatprep.subr.bf16.mxu0 0
    %3195 = vmatpush2.bf16.msra.mxu0 0
    %3196 = vmatprep.subr.bf16.mxu0 0
    %3197 = vmatpush2.bf16.msra.mxu0 0
    %3198 = vmatprep.subr.bf16.mxu0 0
    %3199 = vmatpush2.bf16.msra.mxu0 0
    %3200 = vmatprep.subr.bf16.mxu0 0
    %3201 = vmatpush2.bf16.msra.mxu0 0
    %3202 = vmatprep.subr.bf16.mxu0 0
    %3203 = vmatpush2.bf16.msra.mxu0 0
    %3204 = vmatprep.mubr.bf16.mxu0 0
    %3205 = vmatmul.mubr.bf16.gmra.mxu0 %v3130
    %v3206 = vpop.f32.mrf.mxu0
    %v3207 = vadd.f32 0.0, %v3206
    %v3208 = vpop.f32.mrf.mxu0
    %v3209 = vadd.f32 0.0, %v3208
    %v3210 = vpop.f32.mrf.mxu0
    %v3211 = vpop.f32.mrf.mxu0
    %3212 = vdwg.mxu0
    %3213 = vmatprep.subr.bf16.mxu0 %v1106
    %3214 = vmatpush1.bf16.msra.mxu0 %v1105
    %3215 = vmatprep.subr.bf16.mxu0 %v1102
    %3216 = vmatpush1.bf16.msra.mxu0 %v1101
    %3217 = vmatprep.subr.bf16.mxu0 %v1098
    %3218 = vmatpush1.bf16.msra.mxu0 %v1097
    %3219 = vmatprep.subr.bf16.mxu0 %v1094
    %3220 = vmatpush1.bf16.msra.mxu0 %v1093
    %3221 = vmatprep.subr.bf16.mxu0 %v1090
    %3222 = vmatpush1.bf16.msra.mxu0 %v1089
    %3223 = vmatprep.subr.bf16.mxu0 %v1086
    %3224 = vmatpush1.bf16.msra.mxu0 %v1085
    %3225 = vmatprep.subr.bf16.mxu0 %v1082
    %3226 = vmatpush1.bf16.msra.mxu0 %v1081
    %3227 = vmatprep.subr.bf16.mxu0 %v1078
    %3228 = vmatpush1.bf16.msra.mxu0 %v1077
    %3229 = vmatprep.subr.bf16.mxu0 0
    %3230 = vmatpush2.bf16.msra.mxu0 0
    %3231 = vmatprep.subr.bf16.mxu0 0
    %3232 = vmatpush2.bf16.msra.mxu0 0
    %3233 = vmatprep.subr.bf16.mxu0 0
    %3234 = vmatpush2.bf16.msra.mxu0 0
    %3235 = vmatprep.subr.bf16.mxu0 0
    %3236 = vmatpush2.bf16.msra.mxu0 0
    %3237 = vmatprep.subr.bf16.mxu0 0
    %3238 = vmatpush2.bf16.msra.mxu0 0
    %3239 = vmatprep.subr.bf16.mxu0 0
    %3240 = vmatpush2.bf16.msra.mxu0 0
    %3241 = vmatprep.subr.bf16.mxu0 0
    %3242 = vmatpush2.bf16.msra.mxu0 0
    %3243 = vmatprep.subr.bf16.mxu0 0
    %3244 = vmatpush2.bf16.msra.mxu0 0
    %3245 = vmatprep.mubr.bf16.mxu0 0
    %3246 = vmatmul.mubr.bf16.gmra.mxu0 %v3111
    %v3247 = vpop.f32.mrf.mxu0
    %v3248 = vadd.f32 %v3166, %v3247
    %v3249 = vpop.f32.mrf.mxu0
    %v3250 = vadd.f32 %v3168, %v3249
    %v3251 = vpop.f32.mrf.mxu0
    %v3252 = vpop.f32.mrf.mxu0
    %3253 = vdwg.mxu0
    %3254 = vmatprep.subr.bf16.mxu0 %v1108
    %3255 = vmatpush1.bf16.msra.mxu0 %v1107
    %3256 = vmatprep.subr.bf16.mxu0 %v1104
    %3257 = vmatpush1.bf16.msra.mxu0 %v1103
    %3258 = vmatprep.subr.bf16.mxu0 %v1100
    %3259 = vmatpush1.bf16.msra.mxu0 %v1099
    %3260 = vmatprep.subr.bf16.mxu0 %v1096
    %3261 = vmatpush1.bf16.msra.mxu0 %v1095
    %3262 = vmatprep.subr.bf16.mxu0 %v1092
    %3263 = vmatpush1.bf16.msra.mxu0 %v1091
    %3264 = vmatprep.subr.bf16.mxu0 %v1088
    %3265 = vmatpush1.bf16.msra.mxu0 %v1087
    %3266 = vmatprep.subr.bf16.mxu0 %v1084
    %3267 = vmatpush1.bf16.msra.mxu0 %v1083
    %3268 = vmatprep.subr.bf16.mxu0 %v1080
    %3269 = vmatpush1.bf16.msra.mxu0 %v1079
    %3270 = vmatprep.subr.bf16.mxu0 0
    %3271 = vmatpush2.bf16.msra.mxu0 0
    %3272 = vmatprep.subr.bf16.mxu0 0
    %3273 = vmatpush2.bf16.msra.mxu0 0
    %3274 = vmatprep.subr.bf16.mxu0 0
    %3275 = vmatpush2.bf16.msra.mxu0 0
    %3276 = vmatprep.subr.bf16.mxu0 0
    %3277 = vmatpush2.bf16.msra.mxu0 0
    %3278 = vmatprep.subr.bf16.mxu0 0
    %3279 = vmatpush2.bf16.msra.mxu0 0
    %3280 = vmatprep.subr.bf16.mxu0 0
    %3281 = vmatpush2.bf16.msra.mxu0 0
    %3282 = vmatprep.subr.bf16.mxu0 0
    %3283 = vmatpush2.bf16.msra.mxu0 0
    %3284 = vmatprep.subr.bf16.mxu0 0
    %3285 = vmatpush2.bf16.msra.mxu0 0
    %3286 = vmatprep.mubr.bf16.mxu0 0
    %3287 = vmatmul.mubr.bf16.gmra.mxu0 %v3111
    %v3288 = vpop.f32.mrf.mxu0
    %v3289 = vadd.f32 %v3207, %v3288
    %v3290 = vpop.f32.mrf.mxu0
    %v3291 = vadd.f32 %v3209, %v3290
    %v3292 = vpop.f32.mrf.mxu0
    %v3293 = vpop.f32.mrf.mxu0
    %3294 = vdwg.mxu0
    %v3295 = vadd.f32 %v3248, %v453
    %v3296 = vadd.f32 %v3250, %v457
    %v3297 = vadd.f32 %v3289, %v461
    %v3298 = vadd.f32 %v3291, %v465
    %v3299 = vmul.f32 %v3295, 0.5
    %v3300 = vmul.f32 %v3296, 0.5
    %v3301 = vmul.f32 %v3297, 0.5
    %v3302 = vtanh.pop %v3299
    %v3303 = vtanh.pop %v3300
    %v3304 = vtanh.pop %v3301
    %v3305 = vmul.f32 %v3302, 0.5
    %v3306 = vmul.f32 %v3303, 0.5
    %v3307 = vmul.f32 %v3304, 0.5
    %v3308 = vadd.f32 %v3305, 0.5
    %v3309 = vadd.f32 %v3306, 0.5
    %v3310 = vadd.f32 %v3307, 0.5
    %v3311 = vtanh.pop %v3298
    %v3312 = vmul.f32 %v3309, %v3018
    %v3313 = vmul.f32 %v3308, %v3311
    %v3314 = vadd.f32 %v3312, %v3313
    %v3315 = vtanh.pop %v3314
    %v3316 = vmul.f32 %v3310, %v3315
    %v3317 = vld [vmem:[%s7] sm:$0xff]
    %v3318 = vld [vmem:[%s7 + $0x8] sm:$0xff]
    %v3319 = vld [vmem:[%s7 + $0x10] sm:$0xff]
    %v3320 = vld [vmem:[%s7 + $0x18] sm:$0xff]
    %v3321 = vld [vmem:[%s7 + $0x20] sm:$0xff]
    %v3322 = vld [vmem:[%s7 + $0x28] sm:$0xff]
    %v3323 = vld [vmem:[%s7 + $0x30] sm:$0xff]
    %v3324 = vld [vmem:[%s7 + $0x38] sm:$0xff]
    %v3325 = vld [vmem:[%s7 + $0x40] sm:$0xff]
    %v3326 = vld [vmem:[%s7 + $0x48] sm:$0xff]
    %v3327 = vld [vmem:[%s7 + $0x50] sm:$0xff]
    %v3328 = vld [vmem:[%s7 + $0x58] sm:$0xff]
    %v3329 = vld [vmem:[%s7 + $0x60] sm:$0xff]
    %v3330 = vld [vmem:[%s7 + $0x68] sm:$0xff]
    %v3331 = vld [vmem:[%s7 + $0x70] sm:$0xff]
    %v3332 = vld [vmem:[%s7 + $0x78] sm:$0xff]
    %v3333 = vld [vmem:[%s8] sm:$0x1]
    %v3335 = vlaneseq
    %v3336 = vshrl.u32 %v3335, 7
    %v3337 = vsub.s32 0, %v3336
    %v3338 = vrot.slane %v3333, %v3337
    %3340 = vmatprep.subr.mxu0 0.0
    %3341 = vmatpush1.msra.mxu0 %v3332
    %3342 = vmatprep.subr.mxu0 0.0
    %3343 = vmatpush1.msra.mxu0 %v3331
    %3344 = vmatprep.subr.mxu0 0.0
    %3345 = vmatpush1.msra.mxu0 %v3330
    %3346 = vmatprep.subr.mxu0 0.0
    %3347 = vmatpush1.msra.mxu0 %v3329
    %3348 = vmatprep.subr.mxu0 0.0
    %3349 = vmatpush1.msra.mxu0 %v3328
    %3350 = vmatprep.subr.mxu0 0.0
    %3351 = vmatpush1.msra.mxu0 %v3327
    %3352 = vmatprep.subr.mxu0 0.0
    %3353 = vmatpush1.msra.mxu0 %v3326
    %3354 = vmatprep.subr.mxu0 0.0
    %3355 = vmatpush1.msra.mxu0 %v3325
    %3356 = vmatprep.subr.mxu0 0.0
    %3357 = vmatpush1.msra.mxu0 %v3324
    %3358 = vmatprep.subr.mxu0 0.0
    %3359 = vmatpush1.msra.mxu0 %v3323
    %3360 = vmatprep.subr.mxu0 0.0
    %3361 = vmatpush1.msra.mxu0 %v3322
    %3362 = vmatprep.subr.mxu0 0.0
    %3363 = vmatpush1.msra.mxu0 %v3321
    %3364 = vmatprep.subr.mxu0 0.0
    %3365 = vmatpush1.msra.mxu0 %v3320
    %3366 = vmatprep.subr.mxu0 0.0
    %3367 = vmatpush1.msra.mxu0 %v3319
    %3368 = vmatprep.subr.mxu0 0.0
    %3369 = vmatpush1.msra.mxu0 %v3318
    %3370 = vmatprep.subr.mxu0 0.0
    %3371 = vmatpush1.msra.mxu0 %v3317
    %3372 = vmatprep.subr.mxu0 0.0
    %3373 = vmatpush2.msra.mxu0 0.0
    %3374 = vmatprep.subr.mxu0 0.0
    %3375 = vmatpush2.msra.mxu0 0.0
    %3376 = vmatprep.subr.mxu0 0.0
    %3377 = vmatpush2.msra.mxu0 0.0
    %3378 = vmatprep.subr.mxu0 0.0
    %3379 = vmatpush2.msra.mxu0 0.0
    %3380 = vmatprep.subr.mxu0 0.0
    %3381 = vmatpush2.msra.mxu0 0.0
    %3382 = vmatprep.subr.mxu0 0.0
    %3383 = vmatpush2.msra.mxu0 0.0
    %3384 = vmatprep.subr.mxu0 0.0
    %3385 = vmatpush2.msra.mxu0 0.0
    %3386 = vmatprep.subr.mxu0 0.0
    %3387 = vmatpush2.msra.mxu0 0.0
    %3388 = vmatprep.subr.mxu0 0.0
    %3389 = vmatpush2.msra.mxu0 0.0
    %3390 = vmatprep.subr.mxu0 0.0
    %3391 = vmatpush2.msra.mxu0 0.0
    %3392 = vmatprep.subr.mxu0 0.0
    %3393 = vmatpush2.msra.mxu0 0.0
    %3394 = vmatprep.subr.mxu0 0.0
    %3395 = vmatpush2.msra.mxu0 0.0
    %3396 = vmatprep.subr.mxu0 0.0
    %3397 = vmatpush2.msra.mxu0 0.0
    %3398 = vmatprep.subr.mxu0 0.0
    %3399 = vmatpush2.msra.mxu0 0.0
    %3400 = vmatprep.subr.mxu0 0.0
    %3401 = vmatpush2.msra.mxu0 0.0
    %3402 = vmatprep.subr.mxu0 0.0
    %3403 = vmatpush2.msra.mxu0 0.0
    %3404 = vmatprep.mubr.f32.mxu0 0.0
    %3405 = vmatmul.mubr.f32.gmra.mxu0 %v3316
    %v3406 = vpop.f32.mrf.mxu0
    %v3407 = vadd.f32 %v3338, %v3406
    %v3408 = vpop.f32.mrf.mxu0
    %3409 = vdwg.mxu0
    %v3410 = vmax.f32 %v3407, 0.0
    %v3411 = vld [vmem:[%s9] sm:$0xff]
    %v3412 = vld [vmem:[%s9 + $0x8] sm:$0xff]
    %v3413 = vld [vmem:[%s10] sm:$0x1]
    %v3415 = vlaneseq
    %v3416 = vshrl.u32 %v3415, 7
    %v3417 = vsub.s32 0, %v3416
    %v3418 = vrot.slane %v3413, %v3417
    %v3421 = vsel %vm161, %v3410, 0
    %3423 = vmatprep.subr.mxu0 0.0
    %3424 = vmatpush1.msra.mxu0 0.0
    %3425 = vmatprep.subr.mxu0 0.0
    %3426 = vmatpush1.msra.mxu0 0.0
    %3427 = vmatprep.subr.mxu0 0.0
    %3428 = vmatpush1.msra.mxu0 0.0
    %3429 = vmatprep.subr.mxu0 0.0
    %3430 = vmatpush1.msra.mxu0 0.0
    %3431 = vmatprep.subr.mxu0 0.0
    %3432 = vmatpush1.msra.mxu0 0.0
    %3433 = vmatprep.subr.mxu0 0.0
    %3434 = vmatpush1.msra.mxu0 0.0
    %3435 = vmatprep.subr.mxu0 0.0
    %3436 = vmatpush1.msra.mxu0 0.0
    %3437 = vmatprep.subr.mxu0 0.0
    %3438 = vmatpush1.msra.mxu0 0.0
    %3439 = vmatprep.subr.mxu0 0.0
    %3440 = vmatpush1.msra.mxu0 0.0
    %3441 = vmatprep.subr.mxu0 0.0
    %3442 = vmatpush1.msra.mxu0 0.0
    %3443 = vmatprep.subr.mxu0 0.0
    %3444 = vmatpush1.msra.mxu0 0.0
    %3445 = vmatprep.subr.mxu0 0.0
    %3446 = vmatpush1.msra.mxu0 0.0
    %3447 = vmatprep.subr.mxu0 0.0
    %3448 = vmatpush1.msra.mxu0 0.0
    %3449 = vmatprep.subr.mxu0 0.0
    %3450 = vmatpush1.msra.mxu0 0.0
    %3451 = vmatprep.subr.mxu0 0.0
    %3452 = vmatpush1.msra.mxu0 %v3412
    %3453 = vmatprep.subr.mxu0 0.0
    %3454 = vmatpush1.msra.mxu0 %v3411
    %3455 = vmatprep.subr.mxu0 0.0
    %3456 = vmatpush2.msra.mxu0 0.0
    %3457 = vmatprep.subr.mxu0 0.0
    %3458 = vmatpush2.msra.mxu0 0.0
    %3459 = vmatprep.subr.mxu0 0.0
    %3460 = vmatpush2.msra.mxu0 0.0
    %3461 = vmatprep.subr.mxu0 0.0
    %3462 = vmatpush2.msra.mxu0 0.0
    %3463 = vmatprep.subr.mxu0 0.0
    %3464 = vmatpush2.msra.mxu0 0.0
    %3465 = vmatprep.subr.mxu0 0.0
    %3466 = vmatpush2.msra.mxu0 0.0
    %3467 = vmatprep.subr.mxu0 0.0
    %3468 = vmatpush2.msra.mxu0 0.0
    %3469 = vmatprep.subr.mxu0 0.0
    %3470 = vmatpush2.msra.mxu0 0.0
    %3471 = vmatprep.subr.mxu0 0.0
    %3472 = vmatpush2.msra.mxu0 0.0
    %3473 = vmatprep.subr.mxu0 0.0
    %3474 = vmatpush2.msra.mxu0 0.0
    %3475 = vmatprep.subr.mxu0 0.0
    %3476 = vmatpush2.msra.mxu0 0.0
    %3477 = vmatprep.subr.mxu0 0.0
    %3478 = vmatpush2.msra.mxu0 0.0
    %3479 = vmatprep.subr.mxu0 0.0
    %3480 = vmatpush2.msra.mxu0 0.0
    %3481 = vmatprep.subr.mxu0 0.0
    %3482 = vmatpush2.msra.mxu0 0.0
    %3483 = vmatprep.subr.mxu0 0.0
    %3484 = vmatpush2.msra.mxu0 0.0
    %3485 = vmatprep.subr.mxu0 0.0
    %3486 = vmatpush2.msra.mxu0 0.0
    %3487 = vmatprep.mubr.f32.mxu0 0.0
    %3488 = vmatmul.mubr.f32.gmra.mxu0 %v3421
    %v3489 = vpop.f32.mrf.mxu0
    %v3490 = vadd.f32 %v3418, %v3489
    %v3491 = vpop.f32.mrf.mxu0
    %3492 = vdwg.mxu0
    %v3493 = vmax.f32 %v3490, 0.0
    %v3494 = vld [vmem:[%s11] sm:$0xff]
    %v3495 = vld [vmem:[%s12] sm:$0x1]
    %v3497 = vlaneseq
    %v3498 = vshrl.u32 %v3497, 7
    %v3499 = vsub.s32 0, %v3498
    %v3500 = vrot.slane %v3495, %v3499
    %vm3502 = vcmask 64512
    %v3504 = vsel %vm3502, %v3493, 0
    %3506 = vmatprep.subr.mxu0 0.0
    %3507 = vmatpush1.msra.mxu0 0.0
    %3508 = vmatprep.subr.mxu0 0.0
    %3509 = vmatpush1.msra.mxu0 0.0
    %3510 = vmatprep.subr.mxu0 0.0
    %3511 = vmatpush1.msra.mxu0 0.0
    %3512 = vmatprep.subr.mxu0 0.0
    %3513 = vmatpush1.msra.mxu0 0.0
    %3514 = vmatprep.subr.mxu0 0.0
    %3515 = vmatpush1.msra.mxu0 0.0
    %3516 = vmatprep.subr.mxu0 0.0
    %3517 = vmatpush1.msra.mxu0 0.0
    %3518 = vmatprep.subr.mxu0 0.0
    %3519 = vmatpush1.msra.mxu0 0.0
    %3520 = vmatprep.subr.mxu0 0.0
    %3521 = vmatpush1.msra.mxu0 0.0
    %3522 = vmatprep.subr.mxu0 0.0
    %3523 = vmatpush1.msra.mxu0 0.0
    %3524 = vmatprep.subr.mxu0 0.0
    %3525 = vmatpush1.msra.mxu0 0.0
    %3526 = vmatprep.subr.mxu0 0.0
    %3527 = vmatpush1.msra.mxu0 0.0
    %3528 = vmatprep.subr.mxu0 0.0
    %3529 = vmatpush1.msra.mxu0 0.0
    %3530 = vmatprep.subr.mxu0 0.0
    %3531 = vmatpush1.msra.mxu0 0.0
    %3532 = vmatprep.subr.mxu0 0.0
    %3533 = vmatpush1.msra.mxu0 0.0
    %3534 = vmatprep.subr.mxu0 0.0
    %3535 = vmatpush1.msra.mxu0 0.0
    %3536 = vmatprep.subr.mxu0 0.0
    %3537 = vmatpush1.msra.mxu0 %v3494
    %3538 = vmatprep.subr.mxu0 0.0
    %3539 = vmatpush2.msra.mxu0 0.0
    %3540 = vmatprep.subr.mxu0 0.0
    %3541 = vmatpush2.msra.mxu0 0.0
    %3542 = vmatprep.subr.mxu0 0.0
    %3543 = vmatpush2.msra.mxu0 0.0
    %3544 = vmatprep.subr.mxu0 0.0
    %3545 = vmatpush2.msra.mxu0 0.0
    %3546 = vmatprep.subr.mxu0 0.0
    %3547 = vmatpush2.msra.mxu0 0.0
    %3548 = vmatprep.subr.mxu0 0.0
    %3549 = vmatpush2.msra.mxu0 0.0
    %3550 = vmatprep.subr.mxu0 0.0
    %3551 = vmatpush2.msra.mxu0 0.0
    %3552 = vmatprep.subr.mxu0 0.0
    %3553 = vmatpush2.msra.mxu0 0.0
    %3554 = vmatprep.subr.mxu0 0.0
    %3555 = vmatpush2.msra.mxu0 0.0
    %3556 = vmatprep.subr.mxu0 0.0
    %3557 = vmatpush2.msra.mxu0 0.0
    %3558 = vmatprep.subr.mxu0 0.0
    %3559 = vmatpush2.msra.mxu0 0.0
    %3560 = vmatprep.subr.mxu0 0.0
    %3561 = vmatpush2.msra.mxu0 0.0
    %3562 = vmatprep.subr.mxu0 0.0
    %3563 = vmatpush2.msra.mxu0 0.0
    %3564 = vmatprep.subr.mxu0 0.0
    %3565 = vmatpush2.msra.mxu0 0.0
    %3566 = vmatprep.subr.mxu0 0.0
    %3567 = vmatpush2.msra.mxu0 0.0
    %3568 = vmatprep.subr.mxu0 0.0
    %3569 = vmatpush2.msra.mxu0 0.0
    %3570 = vmatprep.mubr.f32.mxu0 0.0
    %3571 = vmatmul.mubr.f32.gmra.mxu0 %v3504
    %v3572 = vpop.f32.mrf.mxu0
    %v3573 = vadd.f32 %v3500, %v3572
    %v3574 = vpop.f32.mrf.mxu0
    %3575 = vdwg.mxu0
    %v3576 = vxor.u32 %v3573, 2147483648
    %v3577 = vmul.f32 %v3576, 1.442695
    %v3578 = vpow.pop %v3577
    %v3579 = vadd.f32 %v3578, 1.0
    %v3580 = vrcp.pop %v3579
    %v3581 = vmul.f32 1.0, %v3580
    %3582 = vst [vmem:[#allocation9] sm:$0xff] %v3581
    // Predicated region
    $region66: #{tpu_custom_call.1} parent=1 // pred_check
      _
    $region67: #{tpu_custom_call.1} parent=1 // pred_check_branch
      %3584 = sbr.rel (0) target = $region69
    $region68: #{tpu_custom_call.1} parent=1 // pred_region
      %s3586 = ssub.s32 128, 128
      %3587 = vsyncadd [#allocation5], %s3586
      %s3589 = sshll.u32 [#allocation9], 4
      %s3590 = int_to_ptr.vmem [resolvable:$true] %s3589
      %3592 = dma.vmem_to_hbm [thread:$0]  %s3590, 128, %s13, [#allocation5]
    $region69: #{tpu_custom_call.1} parent=1 // pred_fallthru
      _
    // Predicated region
    $region70: #{tpu_custom_call.1} parent=1 // pred_check
      _
    $region71: #{tpu_custom_call.1} parent=1 // pred_check_branch
      %3594 = sbr.rel (0) target = $region73
    $region72: #{tpu_custom_call.1} parent=1 // pred_region
      %3595 = dma.done [#allocation5], 128
    $region73: #{tpu_custom_call.1} parent=1 // pred_fallthru
      _
    %3596 = vsyncpa [#allocation4], 1
    %3597 = vsyncpa [#allocation7], 1
    %3598 = vsyncpa [#allocation5], 1

</llo_original>
